<compile_context>
chip_gen: v5e
topology: v5e:2x2
jax: 0.10.0
libtpu: 0.0.40
codegen_flags: <defaults>
</compile_context>

<pallas_src>
import functools

import jax
import jax.numpy as jnp
from jax import lax
from jax.experimental import pallas as pl
from jax.experimental.pallas import tpu as pltpu


LANE = 128      # vreg lane width
SUBLANE = 8     # vreg sublane count


def _round_up(x, m):
    return ((x + m - 1) // m) * m


# -----------------------------------------------------------------------------
# Fused Pallas kernel: all GRU layers + linear head in one call
# -----------------------------------------------------------------------------
def _fused_gru_head_kernel(x_ref, wih_ref, whh_ref, bcomb_ref, bhhn_ref,
                           wout_ref, bout_ref, o_ref,
                           seq_scr, gi_scr, h_scr, *, num_layers):
    """Fused multi-layer GRU + linear head (fully VMEM resident).

    x_ref    : (T, Bp, Hp)     layer-0 input sequence (features padded to Hp)
    wih_ref  : (L, Hp, 3*Hp)   input->gates weights, gate blocks [r|z|n], each Hp wide
    whh_ref  : (L, Hp, 3*Hp)   hidden->gates weights, same layout
    bcomb_ref: (L, 1, 3*Hp)    b_ih (+ b_hh folded in for the r/z blocks)
    bhhn_ref : (L, 1, Hp)      b_hh of the n gate (must stay inside r * (...))
    wout_ref : (Hp, Op)        head weights
    bout_ref : (1, Op)         head bias
    o_ref    : (Bp, Op)        output
    seq_scr  : (T, Bp, Hp) f32 current layer input / next layer input
    gi_scr   : (T, Bp, 3*Hp)   precomputed input-path gate pre-activations
    h_scr    : (Bp, Hp) f32    running hidden state
    """
    T, Bp, Hp = x_ref.shape

    seq_scr[...] = x_ref[...].astype(jnp.float32)

    for layer in range(num_layers):                 # static unroll over layers
        # ---- hoisted input-path matmul: one big (T*Bp, Hp) @ (Hp, 3*Hp) ----
        xin = seq_scr[...].reshape(T * Bp, Hp)
        gi = jnp.dot(xin, wih_ref[layer], preferred_element_type=jnp.float32)
        gi = gi + bcomb_ref[layer]                  # r/z biases fully folded here
        gi_scr[...] = gi.reshape(T, Bp, 3 * Hp)

        # ---- recurrent loop: only the serial h @ W_hh work stays inside ----
        h_scr[...] = jnp.zeros((Bp, Hp), jnp.float32)
        w_hh = whh_ref[layer]                       # (Hp, 3*Hp), loaded once per layer
        b_hn = bhhn_ref[layer]                      # (1, Hp), hoisted out of the loop
        last_layer = layer == num_layers - 1

        def step(t, carry, *, w_hh=w_hh, b_hn=b_hn, last_layer=last_layer):
            h = h_scr[...]
            gh = jnp.dot(h, w_hh, preferred_element_type=jnp.float32)
            g = gi_scr[t]                                           # (Bp, 3*Hp)
            rz = jax.nn.sigmoid(g[:, :2 * Hp] + gh[:, :2 * Hp])     # fused r|z sigmoid
            r = rz[:, :Hp]
            z = rz[:, Hp:2 * Hp]
            n = jnp.tanh(g[:, 2 * Hp:] + r * (gh[:, 2 * Hp:] + b_hn))
            h_new = (1.0 - z) * n + z * h
            h_scr[...] = h_new
            if not last_layer:          # top layer's per-step output is never consumed
                seq_scr[t] = h_new
            return carry

        lax.fori_loop(0, T, step, 0, unroll=True)

    # ---- linear head on the final hidden state ----
    o_ref[...] = (
        jnp.dot(h_scr[...], wout_ref[...], preferred_element_type=jnp.float32)
        + bout_ref[...]
    ).astype(o_ref.dtype)


# -----------------------------------------------------------------------------
# Host wrappers
# -----------------------------------------------------------------------------
def pack_params(params, input_size, hidden_size, num_layers, horizon):
    """Pad / stack logical params into the lane-aligned kernel layout."""
    H = hidden_size
    Hp = _round_up(max(H, 1), LANE)
    Op = _round_up(max(horizon, 1), LANE)

    def pad_gate_mat(w, in_dim):
        # (in_dim, 3H) -> (Hp, 3*Hp): each gate gets its own 128-aligned slab
        out = jnp.zeros((Hp, 3 * Hp), jnp.float32)
        for g in range(3):
            out = out.at[:in_dim, g * Hp:g * Hp + H].set(w[:, g * H:(g + 1) * H])
        return out

    def pad_gate_vec(b):
        out = jnp.zeros((1, 3 * Hp), jnp.float32)
        for g in range(3):
            out = out.at[:, g * Hp:g * Hp + H].set(b[:, g * H:(g + 1) * H])
        return out

    wih, whh, bcomb, bhhn = [], [], [], []
    for li, layer in enumerate(params["gru_layers"]):
        in_dim = input_size if li == 0 else H
        wih.append(pad_gate_mat(layer["w_ih"], in_dim))
        whh.append(pad_gate_mat(layer["w_hh"], H))
        # fold b_hh into the r/z biases; n keeps only b_ih (b_hh_n applied in-loop)
        b_ih, b_hh = layer["b_ih"], layer["b_hh"]
        bc = jnp.concatenate(
            [b_ih[:, :2 * H] + b_hh[:, :2 * H], b_ih[:, 2 * H:]], axis=1)
        bcomb.append(pad_gate_vec(bc))
        bn = jnp.zeros((1, Hp), jnp.float32).at[:, :H].set(b_hh[:, 2 * H:])
        bhhn.append(bn)

    w_out = jnp.zeros((Hp, Op), jnp.float32).at[:H, :horizon].set(params["w_out"])
    b_out = jnp.zeros((1, Op), jnp.float32).at[:, :horizon].set(params["b_out"])

    return {
        "w_ih": jnp.stack(wih),       # (L, Hp, 3*Hp)
        "w_hh": jnp.stack(whh),       # (L, Hp, 3*Hp)
        "b_comb": jnp.stack(bcomb),   # (L, 1, 3*Hp)
        "b_hh_n": jnp.stack(bhhn),    # (L, 1, Hp)
        "w_out": w_out,               # (Hp, Op)
        "b_out": b_out,               # (1, Op)
    }


def rnn_forward(x_bti, packed, *, horizon):
    """Full forward: (batch, lookback, input_size) -> (batch, horizon)."""
    B, T, I = x_bti.shape
    L, Hp, _ = packed["w_ih"].shape
    Op = packed["w_out"].shape[1]
    Bp = _round_up(max(B, 1), SUBLANE)

    # (B, T, I) -> (T, Bp, Hp): time-major, batch padded to sublanes, feat to lanes
    x = jnp.transpose(x_bti, (1, 0, 2)).astype(jnp.float32)
    x = jnp.pad(x, ((0, 0), (0, Bp - B), (0, Hp - I)))

    kernel = functools.partial(_fused_gru_head_kernel, num_layers=L)
    vmem = pl.BlockSpec(memory_space=pltpu.MemorySpace.VMEM)

    out = pl.pallas_call(
        kernel,
        out_shape=jax.ShapeDtypeStruct((Bp, Op), jnp.float32),
        in_specs=[vmem] * 7,
        out_specs=vmem,
        scratch_shapes=[
            pltpu.VMEM((T, Bp, Hp), jnp.float32),       # layer input sequence
            pltpu.VMEM((T, Bp, 3 * Hp), jnp.float32),   # hoisted input-path gates
            pltpu.VMEM((Bp, Hp), jnp.float32),          # running hidden state
        ],
        # NOTE: for large H / lookback, tile over time with a grid (axis marked
        # "arbitrary") and set vmem_limit_bytes — unnecessary at these sizes.
    )(x, packed["w_ih"], packed["w_hh"], packed["b_comb"], packed["b_hh_n"],
      packed["w_out"], packed["b_out"])

    return out[:B, :horizon]


# -----------------------------------------------------------------------------
# Deterministic parameter init (PyTorch-style uniform(-1/sqrt(H), 1/sqrt(H)))
# -----------------------------------------------------------------------------
def init_params(key, input_size, hidden_size, num_layers, horizon):
    bound = 1.0 / jnp.sqrt(hidden_size)
    layers = []
    for layer_idx in range(num_layers):
        in_dim = input_size if layer_idx == 0 else hidden_size
        key, k1, k2, k3, k4 = jax.random.split(key, 5)
        layers.append({
            # stored transposed relative to PyTorch; gate order [r, z, n]
            "w_ih": jax.random.uniform(k1, (in_dim, 3 * hidden_size),
                                       jnp.float32, -bound, bound),
            "w_hh": jax.random.uniform(k2, (hidden_size, 3 * hidden_size),
                                       jnp.float32, -bound, bound),
            "b_ih": jax.random.uniform(k3, (1, 3 * hidden_size),
                                       jnp.float32, -bound, bound),
            "b_hh": jax.random.uniform(k4, (1, 3 * hidden_size),
                                       jnp.float32, -bound, bound),
        })
    key, k5, k6 = jax.random.split(key, 3)
    w_out = jax.random.uniform(k5, (hidden_size, horizon), jnp.float32, -bound, bound)
    b_out = jax.random.uniform(k6, (1, horizon), jnp.float32, -bound, bound)
    return {"gru_layers": layers, "w_out": w_out, "b_out": b_out}


# -----------------------------------------------------------------------------
# Pure-JAX reference (PyTorch nn.GRU semantics) for a correctness spot-check
# -----------------------------------------------------------------------------
def gru_reference(x_bti, params):
    seq = jnp.transpose(x_bti, (1, 0, 2)).astype(jnp.float32)   # (T, B, I)
    B = x_bti.shape[0]
    h = None
    for layer in params["gru_layers"]:
        H = layer["w_hh"].shape[0]
        w_ih, w_hh = layer["w_ih"], layer["w_hh"]
        b_ih, b_hh = layer["b_ih"], layer["b_hh"]

        def step(h, x_t, w_ih=w_ih, w_hh=w_hh, b_ih=b_ih, b_hh=b_hh, H=H):
            gi = x_t @ w_ih + b_ih
            gh = h @ w_hh + b_hh
            r = jax.nn.sigmoid(gi[:, :H] + gh[:, :H])
            z = jax.nn.sigmoid(gi[:, H:2 * H] + gh[:, H:2 * H])
            n = jnp.tanh(gi[:, 2 * H:] + r * gh[:, 2 * H:])
            h_new = (1.0 - z) * n + z * h
            return h_new, h_new

        h0 = jnp.zeros((B, H), jnp.float32)
        h, seq = lax.scan(step, h0, seq)
    return h @ params["w_out"] + params["b_out"]


if __name__ == "__main__":
    # module hyper-params (small, consistent with the abstract base)
    input_size, hidden_size, num_layers = 4, 32, 2
    dropout_rate, horizon, lookback = 0.1, 3, 8
    batch = 2

    key = jax.random.PRNGKey(0)
    key, kx = jax.random.split(key)
    x = jax.random.normal(kx, (batch, lookback, input_size), jnp.float32)

    params = init_params(key, input_size, hidden_size, num_layers, horizon)
    packed = pack_params(params, input_size, hidden_size, num_layers, horizon)

    out = rnn_forward(x, packed, horizon=horizon)
    out = jax.block_until_ready(out)

    assert out.shape == (batch, horizon)
    assert bool(jnp.all(jnp.isfinite(out)))

    ref = gru_reference(x, params)
    err = float(jnp.max(jnp.abs(out - ref)))
    assert err < 5e-2, f"max |kernel - reference| = {err}"

    print("KERNEL_OK")
</pallas_src>

<mosaic_0001>
module attributes {stable_mosaic.version = 11 : i64} {
  func.func @_fused_gru_head_kernel(%arg0: memref<8x8x128xf32, #tpu.memory_space<vmem>>, %arg1: memref<2x128x384xf32, #tpu.memory_space<vmem>>, %arg2: memref<2x128x384xf32, #tpu.memory_space<vmem>>, %arg3: memref<2x1x384xf32, #tpu.memory_space<vmem>>, %arg4: memref<2x1x128xf32, #tpu.memory_space<vmem>>, %arg5: memref<128x128xf32, #tpu.memory_space<vmem>>, %arg6: memref<1x128xf32, #tpu.memory_space<vmem>>, %arg7: memref<8x128xf32, #tpu.memory_space<vmem>>, %arg8: memref<8x8x128xf32, #tpu.memory_space<vmem>>, %arg9: memref<8x8x384xf32, #tpu.memory_space<vmem>>, %arg10: memref<8x128xf32, #tpu.memory_space<vmem>>) attributes {dimension_semantics = [], scalar_prefetch = 0 : i64, scratch_operands = 3 : i64, tpu.core_type = #tpu.core_type<tc>} {
    %c0 = arith.constant 0 : index
    %c0_0 = arith.constant 0 : index
    %c0_1 = arith.constant 0 : index
    %0 = vector.load %arg0[%c0, %c0_0, %c0_1] : memref<8x8x128xf32, #tpu.memory_space<vmem>>, vector<8x8x128xf32>
    %c0_2 = arith.constant 0 : index
    %c0_3 = arith.constant 0 : index
    %c0_4 = arith.constant 0 : index
    %1 = vector.load %arg8[%c0_2, %c0_3, %c0_4] : memref<8x8x128xf32, #tpu.memory_space<vmem>>, vector<8x8x128xf32>
    tpu.vector_store %arg8[%c0_2, %c0_3, %c0_4], %0 {strides = array<i32>} : memref<8x8x128xf32, #tpu.memory_space<vmem>>, vector<8x8x128xf32>,
    %c0_5 = arith.constant 0 : index
    %c0_6 = arith.constant 0 : index
    %c0_7 = arith.constant 0 : index
    %2 = vector.load %arg8[%c0_5, %c0_6, %c0_7] : memref<8x8x128xf32, #tpu.memory_space<vmem>>, vector<8x8x128xf32>
    %3 = vector.shape_cast %2 : vector<8x8x128xf32> to vector<64x128xf32>
    %c0_8 = arith.constant 0 : index
    %c0_9 = arith.constant 0 : index
    %c0_10 = arith.constant 0 : index
    %4 = vector.load %arg1[%c0_8, %c0_9, %c0_10] : memref<2x128x384xf32, #tpu.memory_space<vmem>>, vector<1x128x384xf32>
    %5 = vector.shape_cast %4 : vector<1x128x384xf32> to vector<128x384xf32>
    %cst = arith.constant dense<0.000000e+00> : vector<64x384xf32>
    %6 = tpu.matmul %3, %5, %cst {dimension_numbers = #tpu.dot_dimension_numbers<[1], [0], [0], [1], [0, 0, 1, 1], [], []>} : vector<64x128xf32>, vector<128x384xf32>, vector<64x384xf32> -> vector<64x384xf32>
    %c0_11 = arith.constant 0 : index
    %c0_12 = arith.constant 0 : index
    %c0_13 = arith.constant 0 : index
    %7 = vector.load %arg3[%c0_11, %c0_12, %c0_13] : memref<2x1x384xf32, #tpu.memory_space<vmem>>, vector<1x1x384xf32>
    %8 = vector.shape_cast %7 : vector<1x1x384xf32> to vector<1x384xf32>
    %9 = vector.broadcast %8 : vector<1x384xf32> to vector<64x384xf32>
    %10 = arith.addf %6, %9 : vector<64x384xf32>
    %11 = vector.shape_cast %10 : vector<64x384xf32> to vector<8x8x384xf32>
    %c0_14 = arith.constant 0 : index
    %c0_15 = arith.constant 0 : index
    %c0_16 = arith.constant 0 : index
    %12 = vector.load %arg9[%c0_14, %c0_15, %c0_16] : memref<8x8x384xf32, #tpu.memory_space<vmem>>, vector<8x8x384xf32>
    tpu.vector_store %arg9[%c0_14, %c0_15, %c0_16], %11 {strides = array<i32>} : memref<8x8x384xf32, #tpu.memory_space<vmem>>, vector<8x8x384xf32>,
    %cst_17 = arith.constant 0.000000e+00 : f32
    %13 = vector.broadcast %cst_17 : f32 to vector<8x128xf32>
    %c0_18 = arith.constant 0 : index
    %c0_19 = arith.constant 0 : index
    %14 = vector.load %arg10[%c0_18, %c0_19] : memref<8x128xf32, #tpu.memory_space<vmem>>, vector<8x128xf32>
    tpu.vector_store %arg10[%c0_18, %c0_19], %13 {strides = array<i32>} : memref<8x128xf32, #tpu.memory_space<vmem>>, vector<8x128xf32>,
    %c0_20 = arith.constant 0 : index
    %c0_21 = arith.constant 0 : index
    %c0_22 = arith.constant 0 : index
    %15 = vector.load %arg2[%c0_20, %c0_21, %c0_22] : memref<2x128x384xf32, #tpu.memory_space<vmem>>, vector<1x128x384xf32>
    %16 = vector.shape_cast %15 : vector<1x128x384xf32> to vector<128x384xf32>
    %c0_23 = arith.constant 0 : index
    %c0_24 = arith.constant 0 : index
    %c0_25 = arith.constant 0 : index
    %17 = vector.load %arg4[%c0_23, %c0_24, %c0_25] : memref<2x1x128xf32, #tpu.memory_space<vmem>>, vector<1x1x128xf32>
    %18 = vector.shape_cast %17 : vector<1x1x128xf32> to vector<1x128xf32>
    %c0_i32 = arith.constant 0 : i32
    %c0_26 = arith.constant 0 : index
    %c0_27 = arith.constant 0 : index
    %19 = vector.load %arg10[%c0_26, %c0_27] : memref<8x128xf32, #tpu.memory_space<vmem>>, vector<8x128xf32>
    %cst_28 = arith.constant dense<0.000000e+00> : vector<8x384xf32>
    %20 = tpu.matmul %19, %16, %cst_28 {dimension_numbers = #tpu.dot_dimension_numbers<[1], [0], [0], [1], [0, 0, 1, 1], [], []>} : vector<8x128xf32>, vector<128x384xf32>, vector<8x384xf32> -> vector<8x384xf32>
    %21 = arith.index_cast %c0_i32 : i32 to index
    %c0_29 = arith.constant 0 : index
    %c0_30 = arith.constant 0 : index
    %22 = vector.load %arg9[%21, %c0_29, %c0_30] : memref<8x8x384xf32, #tpu.memory_space<vmem>>, vector<1x8x384xf32>
    %23 = vector.shape_cast %22 : vector<1x8x384xf32> to vector<8x384xf32>
    %24 = vector.extract_strided_slice %23 {offsets = [0, 0], sizes = [8, 256], strides = [1, 1]} : vector<8x384xf32> to vector<8x256xf32>
    %25 = vector.extract_strided_slice %20 {offsets = [0, 0], sizes = [8, 256], strides = [1, 1]} : vector<8x384xf32> to vector<8x256xf32>
    %26 = arith.addf %24, %25 : vector<8x256xf32>
    %27 = arith.negf %26 : vector<8x256xf32>
    %28 = math.exp %27 : vector<8x256xf32>
    %cst_31 = arith.constant 1.000000e+00 : f32
    %29 = vector.broadcast %cst_31 : f32 to vector<8x256xf32>
    %30 = arith.addf %29, %28 : vector<8x256xf32>
    %31 = arith.divf %29, %30 : vector<8x256xf32>
    %32 = vector.extract_strided_slice %31 {offsets = [0, 0], sizes = [8, 128], strides = [1, 1]} : vector<8x256xf32> to vector<8x128xf32>
    %33 = vector.extract_strided_slice %31 {offsets = [0, 128], sizes = [8, 128], strides = [1, 1]} : vector<8x256xf32> to vector<8x128xf32>
    %34 = vector.extract_strided_slice %23 {offsets = [0, 256], sizes = [8, 128], strides = [1, 1]} : vector<8x384xf32> to vector<8x128xf32>
    %35 = vector.extract_strided_slice %20 {offsets = [0, 256], sizes = [8, 128], strides = [1, 1]} : vector<8x384xf32> to vector<8x128xf32>
    %36 = vector.broadcast %18 : vector<1x128xf32> to vector<8x128xf32>
    %37 = arith.addf %35, %36 : vector<8x128xf32>
    %38 = arith.mulf %32, %37 : vector<8x128xf32>
    %39 = arith.addf %34, %38 : vector<8x128xf32>
    %40 = math.tanh %39 : vector<8x128xf32>
    %cst_32 = arith.constant 1.000000e+00 : f32
    %41 = vector.broadcast %cst_32 : f32 to vector<8x128xf32>
    %42 = arith.subf %41, %33 : vector<8x128xf32>
    %43 = arith.mulf %42, %40 : vector<8x128xf32>
    %44 = arith.mulf %33, %19 : vector<8x128xf32>
    %45 = arith.addf %43, %44 : vector<8x128xf32>
    %c0_33 = arith.constant 0 : index
    %c0_34 = arith.constant 0 : index
    %46 = vector.load %arg10[%c0_33, %c0_34] : memref<8x128xf32, #tpu.memory_space<vmem>>, vector<8x128xf32>
    tpu.vector_store %arg10[%c0_33, %c0_34], %45 {strides = array<i32>} : memref<8x128xf32, #tpu.memory_space<vmem>>, vector<8x128xf32>,
    %47 = arith.index_cast %c0_i32 : i32 to index
    %c0_35 = arith.constant 0 : index
    %c0_36 = arith.constant 0 : index
    %48 = vector.load %arg8[%47, %c0_35, %c0_36] : memref<8x8x128xf32, #tpu.memory_space<vmem>>, vector<1x8x128xf32>
    %49 = vector.shape_cast %48 : vector<1x8x128xf32> to vector<8x128xf32>
    %50 = vector.shape_cast %45 : vector<8x128xf32> to vector<1x8x128xf32>
    tpu.vector_store %arg8[%47, %c0_35, %c0_36], %50 {strides = array<i32>} : memref<8x8x128xf32, #tpu.memory_space<vmem>>, vector<1x8x128xf32>,
    %c1_i32 = arith.constant 1 : i32
    %c0_37 = arith.constant 0 : index
    %c0_38 = arith.constant 0 : index
    %51 = vector.load %arg10[%c0_37, %c0_38] : memref<8x128xf32, #tpu.memory_space<vmem>>, vector<8x128xf32>
    %cst_39 = arith.constant dense<0.000000e+00> : vector<8x384xf32>
    %52 = tpu.matmul %51, %16, %cst_39 {dimension_numbers = #tpu.dot_dimension_numbers<[1], [0], [0], [1], [0, 0, 1, 1], [], []>} : vector<8x128xf32>, vector<128x384xf32>, vector<8x384xf32> -> vector<8x384xf32>
    %53 = arith.index_cast %c1_i32 : i32 to index
    %c0_40 = arith.constant 0 : index
    %c0_41 = arith.constant 0 : index
    %54 = vector.load %arg9[%53, %c0_40, %c0_41] : memref<8x8x384xf32, #tpu.memory_space<vmem>>, vector<1x8x384xf32>
    %55 = vector.shape_cast %54 : vector<1x8x384xf32> to vector<8x384xf32>
    %56 = vector.extract_strided_slice %55 {offsets = [0, 0], sizes = [8, 256], strides = [1, 1]} : vector<8x384xf32> to vector<8x256xf32>
    %57 = vector.extract_strided_slice %52 {offsets = [0, 0], sizes = [8, 256], strides = [1, 1]} : vector<8x384xf32> to vector<8x256xf32>
    %58 = arith.addf %56, %57 : vector<8x256xf32>
    %59 = arith.negf %58 : vector<8x256xf32>
    %60 = math.exp %59 : vector<8x256xf32>
    %cst_42 = arith.constant 1.000000e+00 : f32
    %61 = vector.broadcast %cst_42 : f32 to vector<8x256xf32>
    %62 = arith.addf %61, %60 : vector<8x256xf32>
    %63 = arith.divf %61, %62 : vector<8x256xf32>
    %64 = vector.extract_strided_slice %63 {offsets = [0, 0], sizes = [8, 128], strides = [1, 1]} : vector<8x256xf32> to vector<8x128xf32>
    %65 = vector.extract_strided_slice %63 {offsets = [0, 128], sizes = [8, 128], strides = [1, 1]} : vector<8x256xf32> to vector<8x128xf32>
    %66 = vector.extract_strided_slice %55 {offsets = [0, 256], sizes = [8, 128], strides = [1, 1]} : vector<8x384xf32> to vector<8x128xf32>
    %67 = vector.extract_strided_slice %52 {offsets = [0, 256], sizes = [8, 128], strides = [1, 1]} : vector<8x384xf32> to vector<8x128xf32>
    %68 = vector.broadcast %18 : vector<1x128xf32> to vector<8x128xf32>
    %69 = arith.addf %67, %68 : vector<8x128xf32>
    %70 = arith.mulf %64, %69 : vector<8x128xf32>
    %71 = arith.addf %66, %70 : vector<8x128xf32>
    %72 = math.tanh %71 : vector<8x128xf32>
    %cst_43 = arith.constant 1.000000e+00 : f32
    %73 = vector.broadcast %cst_43 : f32 to vector<8x128xf32>
    %74 = arith.subf %73, %65 : vector<8x128xf32>
    %75 = arith.mulf %74, %72 : vector<8x128xf32>
    %76 = arith.mulf %65, %51 : vector<8x128xf32>
    %77 = arith.addf %75, %76 : vector<8x128xf32>
    %c0_44 = arith.constant 0 : index
    %c0_45 = arith.constant 0 : index
    %78 = vector.load %arg10[%c0_44, %c0_45] : memref<8x128xf32, #tpu.memory_space<vmem>>, vector<8x128xf32>
    tpu.vector_store %arg10[%c0_44, %c0_45], %77 {strides = array<i32>} : memref<8x128xf32, #tpu.memory_space<vmem>>, vector<8x128xf32>,
    %79 = arith.index_cast %c1_i32 : i32 to index
    %c0_46 = arith.constant 0 : index
    %c0_47 = arith.constant 0 : index
    %80 = vector.load %arg8[%79, %c0_46, %c0_47] : memref<8x8x128xf32, #tpu.memory_space<vmem>>, vector<1x8x128xf32>
    %81 = vector.shape_cast %80 : vector<1x8x128xf32> to vector<8x128xf32>
    %82 = vector.shape_cast %77 : vector<8x128xf32> to vector<1x8x128xf32>
    tpu.vector_store %arg8[%79, %c0_46, %c0_47], %82 {strides = array<i32>} : memref<8x8x128xf32, #tpu.memory_space<vmem>>, vector<1x8x128xf32>,
    %c2_i32 = arith.constant 2 : i32
    %c0_48 = arith.constant 0 : index
    %c0_49 = arith.constant 0 : index
    %83 = vector.load %arg10[%c0_48, %c0_49] : memref<8x128xf32, #tpu.memory_space<vmem>>, vector<8x128xf32>
    %cst_50 = arith.constant dense<0.000000e+00> : vector<8x384xf32>
    %84 = tpu.matmul %83, %16, %cst_50 {dimension_numbers = #tpu.dot_dimension_numbers<[1], [0], [0], [1], [0, 0, 1, 1], [], []>} : vector<8x128xf32>, vector<128x384xf32>, vector<8x384xf32> -> vector<8x384xf32>
    %85 = arith.index_cast %c2_i32 : i32 to index
    %c0_51 = arith.constant 0 : index
    %c0_52 = arith.constant 0 : index
    %86 = vector.load %arg9[%85, %c0_51, %c0_52] : memref<8x8x384xf32, #tpu.memory_space<vmem>>, vector<1x8x384xf32>
    %87 = vector.shape_cast %86 : vector<1x8x384xf32> to vector<8x384xf32>
    %88 = vector.extract_strided_slice %87 {offsets = [0, 0], sizes = [8, 256], strides = [1, 1]} : vector<8x384xf32> to vector<8x256xf32>
    %89 = vector.extract_strided_slice %84 {offsets = [0, 0], sizes = [8, 256], strides = [1, 1]} : vector<8x384xf32> to vector<8x256xf32>
    %90 = arith.addf %88, %89 : vector<8x256xf32>
    %91 = arith.negf %90 : vector<8x256xf32>
    %92 = math.exp %91 : vector<8x256xf32>
    %cst_53 = arith.constant 1.000000e+00 : f32
    %93 = vector.broadcast %cst_53 : f32 to vector<8x256xf32>
    %94 = arith.addf %93, %92 : vector<8x256xf32>
    %95 = arith.divf %93, %94 : vector<8x256xf32>
    %96 = vector.extract_strided_slice %95 {offsets = [0, 0], sizes = [8, 128], strides = [1, 1]} : vector<8x256xf32> to vector<8x128xf32>
    %97 = vector.extract_strided_slice %95 {offsets = [0, 128], sizes = [8, 128], strides = [1, 1]} : vector<8x256xf32> to vector<8x128xf32>
    %98 = vector.extract_strided_slice %87 {offsets = [0, 256], sizes = [8, 128], strides = [1, 1]} : vector<8x384xf32> to vector<8x128xf32>
    %99 = vector.extract_strided_slice %84 {offsets = [0, 256], sizes = [8, 128], strides = [1, 1]} : vector<8x384xf32> to vector<8x128xf32>
    %100 = vector.broadcast %18 : vector<1x128xf32> to vector<8x128xf32>
    %101 = arith.addf %99, %100 : vector<8x128xf32>
    %102 = arith.mulf %96, %101 : vector<8x128xf32>
    %103 = arith.addf %98, %102 : vector<8x128xf32>
    %104 = math.tanh %103 : vector<8x128xf32>
    %cst_54 = arith.constant 1.000000e+00 : f32
    %105 = vector.broadcast %cst_54 : f32 to vector<8x128xf32>
    %106 = arith.subf %105, %97 : vector<8x128xf32>
    %107 = arith.mulf %106, %104 : vector<8x128xf32>
    %108 = arith.mulf %97, %83 : vector<8x128xf32>
    %109 = arith.addf %107, %108 : vector<8x128xf32>
    %c0_55 = arith.constant 0 : index
    %c0_56 = arith.constant 0 : index
    %110 = vector.load %arg10[%c0_55, %c0_56] : memref<8x128xf32, #tpu.memory_space<vmem>>, vector<8x128xf32>
    tpu.vector_store %arg10[%c0_55, %c0_56], %109 {strides = array<i32>} : memref<8x128xf32, #tpu.memory_space<vmem>>, vector<8x128xf32>,
    %111 = arith.index_cast %c2_i32 : i32 to index
    %c0_57 = arith.constant 0 : index
    %c0_58 = arith.constant 0 : index
    %112 = vector.load %arg8[%111, %c0_57, %c0_58] : memref<8x8x128xf32, #tpu.memory_space<vmem>>, vector<1x8x128xf32>
    %113 = vector.shape_cast %112 : vector<1x8x128xf32> to vector<8x128xf32>
    %114 = vector.shape_cast %109 : vector<8x128xf32> to vector<1x8x128xf32>
    tpu.vector_store %arg8[%111, %c0_57, %c0_58], %114 {strides = array<i32>} : memref<8x8x128xf32, #tpu.memory_space<vmem>>, vector<1x8x128xf32>,
    %c3_i32 = arith.constant 3 : i32
    %c0_59 = arith.constant 0 : index
    %c0_60 = arith.constant 0 : index
    %115 = vector.load %arg10[%c0_59, %c0_60] : memref<8x128xf32, #tpu.memory_space<vmem>>, vector<8x128xf32>
    %cst_61 = arith.constant dense<0.000000e+00> : vector<8x384xf32>
    %116 = tpu.matmul %115, %16, %cst_61 {dimension_numbers = #tpu.dot_dimension_numbers<[1], [0], [0], [1], [0, 0, 1, 1], [], []>} : vector<8x128xf32>, vector<128x384xf32>, vector<8x384xf32> -> vector<8x384xf32>
    %117 = arith.index_cast %c3_i32 : i32 to index
    %c0_62 = arith.constant 0 : index
    %c0_63 = arith.constant 0 : index
    %118 = vector.load %arg9[%117, %c0_62, %c0_63] : memref<8x8x384xf32, #tpu.memory_space<vmem>>, vector<1x8x384xf32>
    %119 = vector.shape_cast %118 : vector<1x8x384xf32> to vector<8x384xf32>
    %120 = vector.extract_strided_slice %119 {offsets = [0, 0], sizes = [8, 256], strides = [1, 1]} : vector<8x384xf32> to vector<8x256xf32>
    %121 = vector.extract_strided_slice %116 {offsets = [0, 0], sizes = [8, 256], strides = [1, 1]} : vector<8x384xf32> to vector<8x256xf32>
    %122 = arith.addf %120, %121 : vector<8x256xf32>
    %123 = arith.negf %122 : vector<8x256xf32>
    %124 = math.exp %123 : vector<8x256xf32>
    %cst_64 = arith.constant 1.000000e+00 : f32
    %125 = vector.broadcast %cst_64 : f32 to vector<8x256xf32>
    %126 = arith.addf %125, %124 : vector<8x256xf32>
    %127 = arith.divf %125, %126 : vector<8x256xf32>
    %128 = vector.extract_strided_slice %127 {offsets = [0, 0], sizes = [8, 128], strides = [1, 1]} : vector<8x256xf32> to vector<8x128xf32>
    %129 = vector.extract_strided_slice %127 {offsets = [0, 128], sizes = [8, 128], strides = [1, 1]} : vector<8x256xf32> to vector<8x128xf32>
    %130 = vector.extract_strided_slice %119 {offsets = [0, 256], sizes = [8, 128], strides = [1, 1]} : vector<8x384xf32> to vector<8x128xf32>
    %131 = vector.extract_strided_slice %116 {offsets = [0, 256], sizes = [8, 128], strides = [1, 1]} : vector<8x384xf32> to vector<8x128xf32>
    %132 = vector.broadcast %18 : vector<1x128xf32> to vector<8x128xf32>
    %133 = arith.addf %131, %132 : vector<8x128xf32>
    %134 = arith.mulf %128, %133 : vector<8x128xf32>
    %135 = arith.addf %130, %134 : vector<8x128xf32>
    %136 = math.tanh %135 : vector<8x128xf32>
    %cst_65 = arith.constant 1.000000e+00 : f32
    %137 = vector.broadcast %cst_65 : f32 to vector<8x128xf32>
    %138 = arith.subf %137, %129 : vector<8x128xf32>
    %139 = arith.mulf %138, %136 : vector<8x128xf32>
    %140 = arith.mulf %129, %115 : vector<8x128xf32>
    %141 = arith.addf %139, %140 : vector<8x128xf32>
    %c0_66 = arith.constant 0 : index
    %c0_67 = arith.constant 0 : index
    %142 = vector.load %arg10[%c0_66, %c0_67] : memref<8x128xf32, #tpu.memory_space<vmem>>, vector<8x128xf32>
    tpu.vector_store %arg10[%c0_66, %c0_67], %141 {strides = array<i32>} : memref<8x128xf32, #tpu.memory_space<vmem>>, vector<8x128xf32>,
    %143 = arith.index_cast %c3_i32 : i32 to index
    %c0_68 = arith.constant 0 : index
    %c0_69 = arith.constant 0 : index
    %144 = vector.load %arg8[%143, %c0_68, %c0_69] : memref<8x8x128xf32, #tpu.memory_space<vmem>>, vector<1x8x128xf32>
    %145 = vector.shape_cast %144 : vector<1x8x128xf32> to vector<8x128xf32>
    %146 = vector.shape_cast %141 : vector<8x128xf32> to vector<1x8x128xf32>
    tpu.vector_store %arg8[%143, %c0_68, %c0_69], %146 {strides = array<i32>} : memref<8x8x128xf32, #tpu.memory_space<vmem>>, vector<1x8x128xf32>,
    %c4_i32 = arith.constant 4 : i32
    %c0_70 = arith.constant 0 : index
    %c0_71 = arith.constant 0 : index
    %147 = vector.load %arg10[%c0_70, %c0_71] : memref<8x128xf32, #tpu.memory_space<vmem>>, vector<8x128xf32>
    %cst_72 = arith.constant dense<0.000000e+00> : vector<8x384xf32>
    %148 = tpu.matmul %147, %16, %cst_72 {dimension_numbers = #tpu.dot_dimension_numbers<[1], [0], [0], [1], [0, 0, 1, 1], [], []>} : vector<8x128xf32>, vector<128x384xf32>, vector<8x384xf32> -> vector<8x384xf32>
    %149 = arith.index_cast %c4_i32 : i32 to index
    %c0_73 = arith.constant 0 : index
    %c0_74 = arith.constant 0 : index
    %150 = vector.load %arg9[%149, %c0_73, %c0_74] : memref<8x8x384xf32, #tpu.memory_space<vmem>>, vector<1x8x384xf32>
    %151 = vector.shape_cast %150 : vector<1x8x384xf32> to vector<8x384xf32>
    %152 = vector.extract_strided_slice %151 {offsets = [0, 0], sizes = [8, 256], strides = [1, 1]} : vector<8x384xf32> to vector<8x256xf32>
    %153 = vector.extract_strided_slice %148 {offsets = [0, 0], sizes = [8, 256], strides = [1, 1]} : vector<8x384xf32> to vector<8x256xf32>
    %154 = arith.addf %152, %153 : vector<8x256xf32>
    %155 = arith.negf %154 : vector<8x256xf32>
    %156 = math.exp %155 : vector<8x256xf32>
    %cst_75 = arith.constant 1.000000e+00 : f32
    %157 = vector.broadcast %cst_75 : f32 to vector<8x256xf32>
    %158 = arith.addf %157, %156 : vector<8x256xf32>
    %159 = arith.divf %157, %158 : vector<8x256xf32>
    %160 = vector.extract_strided_slice %159 {offsets = [0, 0], sizes = [8, 128], strides = [1, 1]} : vector<8x256xf32> to vector<8x128xf32>
    %161 = vector.extract_strided_slice %159 {offsets = [0, 128], sizes = [8, 128], strides = [1, 1]} : vector<8x256xf32> to vector<8x128xf32>
    %162 = vector.extract_strided_slice %151 {offsets = [0, 256], sizes = [8, 128], strides = [1, 1]} : vector<8x384xf32> to vector<8x128xf32>
    %163 = vector.extract_strided_slice %148 {offsets = [0, 256], sizes = [8, 128], strides = [1, 1]} : vector<8x384xf32> to vector<8x128xf32>
    %164 = vector.broadcast %18 : vector<1x128xf32> to vector<8x128xf32>
    %165 = arith.addf %163, %164 : vector<8x128xf32>
    %166 = arith.mulf %160, %165 : vector<8x128xf32>
    %167 = arith.addf %162, %166 : vector<8x128xf32>
    %168 = math.tanh %167 : vector<8x128xf32>
    %cst_76 = arith.constant 1.000000e+00 : f32
    %169 = vector.broadcast %cst_76 : f32 to vector<8x128xf32>
    %170 = arith.subf %169, %161 : vector<8x128xf32>
    %171 = arith.mulf %170, %168 : vector<8x128xf32>
    %172 = arith.mulf %161, %147 : vector<8x128xf32>
    %173 = arith.addf %171, %172 : vector<8x128xf32>
    %c0_77 = arith.constant 0 : index
    %c0_78 = arith.constant 0 : index
    %174 = vector.load %arg10[%c0_77, %c0_78] : memref<8x128xf32, #tpu.memory_space<vmem>>, vector<8x128xf32>
    tpu.vector_store %arg10[%c0_77, %c0_78], %173 {strides = array<i32>} : memref<8x128xf32, #tpu.memory_space<vmem>>, vector<8x128xf32>,
    %175 = arith.index_cast %c4_i32 : i32 to index
    %c0_79 = arith.constant 0 : index
    %c0_80 = arith.constant 0 : index
    %176 = vector.load %arg8[%175, %c0_79, %c0_80] : memref<8x8x128xf32, #tpu.memory_space<vmem>>, vector<1x8x128xf32>
    %177 = vector.shape_cast %176 : vector<1x8x128xf32> to vector<8x128xf32>
    %178 = vector.shape_cast %173 : vector<8x128xf32> to vector<1x8x128xf32>
    tpu.vector_store %arg8[%175, %c0_79, %c0_80], %178 {strides = array<i32>} : memref<8x8x128xf32, #tpu.memory_space<vmem>>, vector<1x8x128xf32>,
    %c5_i32 = arith.constant 5 : i32
    %c0_81 = arith.constant 0 : index
    %c0_82 = arith.constant 0 : index
    %179 = vector.load %arg10[%c0_81, %c0_82] : memref<8x128xf32, #tpu.memory_space<vmem>>, vector<8x128xf32>
    %cst_83 = arith.constant dense<0.000000e+00> : vector<8x384xf32>
    %180 = tpu.matmul %179, %16, %cst_83 {dimension_numbers = #tpu.dot_dimension_numbers<[1], [0], [0], [1], [0, 0, 1, 1], [], []>} : vector<8x128xf32>, vector<128x384xf32>, vector<8x384xf32> -> vector<8x384xf32>
    %181 = arith.index_cast %c5_i32 : i32 to index
    %c0_84 = arith.constant 0 : index
    %c0_85 = arith.constant 0 : index
    %182 = vector.load %arg9[%181, %c0_84, %c0_85] : memref<8x8x384xf32, #tpu.memory_space<vmem>>, vector<1x8x384xf32>
    %183 = vector.shape_cast %182 : vector<1x8x384xf32> to vector<8x384xf32>
    %184 = vector.extract_strided_slice %183 {offsets = [0, 0], sizes = [8, 256], strides = [1, 1]} : vector<8x384xf32> to vector<8x256xf32>
    %185 = vector.extract_strided_slice %180 {offsets = [0, 0], sizes = [8, 256], strides = [1, 1]} : vector<8x384xf32> to vector<8x256xf32>
    %186 = arith.addf %184, %185 : vector<8x256xf32>
    %187 = arith.negf %186 : vector<8x256xf32>
    %188 = math.exp %187 : vector<8x256xf32>
    %cst_86 = arith.constant 1.000000e+00 : f32
    %189 = vector.broadcast %cst_86 : f32 to vector<8x256xf32>
    %190 = arith.addf %189, %188 : vector<8x256xf32>
    %191 = arith.divf %189, %190 : vector<8x256xf32>
    %192 = vector.extract_strided_slice %191 {offsets = [0, 0], sizes = [8, 128], strides = [1, 1]} : vector<8x256xf32> to vector<8x128xf32>
    %193 = vector.extract_strided_slice %191 {offsets = [0, 128], sizes = [8, 128], strides = [1, 1]} : vector<8x256xf32> to vector<8x128xf32>
    %194 = vector.extract_strided_slice %183 {offsets = [0, 256], sizes = [8, 128], strides = [1, 1]} : vector<8x384xf32> to vector<8x128xf32>
    %195 = vector.extract_strided_slice %180 {offsets = [0, 256], sizes = [8, 128], strides = [1, 1]} : vector<8x384xf32> to vector<8x128xf32>
    %196 = vector.broadcast %18 : vector<1x128xf32> to vector<8x128xf32>
    %197 = arith.addf %195, %196 : vector<8x128xf32>
    %198 = arith.mulf %192, %197 : vector<8x128xf32>
    %199 = arith.addf %194, %198 : vector<8x128xf32>
    %200 = math.tanh %199 : vector<8x128xf32>
    %cst_87 = arith.constant 1.000000e+00 : f32
    %201 = vector.broadcast %cst_87 : f32 to vector<8x128xf32>
    %202 = arith.subf %201, %193 : vector<8x128xf32>
    %203 = arith.mulf %202, %200 : vector<8x128xf32>
    %204 = arith.mulf %193, %179 : vector<8x128xf32>
    %205 = arith.addf %203, %204 : vector<8x128xf32>
    %c0_88 = arith.constant 0 : index
    %c0_89 = arith.constant 0 : index
    %206 = vector.load %arg10[%c0_88, %c0_89] : memref<8x128xf32, #tpu.memory_space<vmem>>, vector<8x128xf32>
    tpu.vector_store %arg10[%c0_88, %c0_89], %205 {strides = array<i32>} : memref<8x128xf32, #tpu.memory_space<vmem>>, vector<8x128xf32>,
    %207 = arith.index_cast %c5_i32 : i32 to index
    %c0_90 = arith.constant 0 : index
    %c0_91 = arith.constant 0 : index
    %208 = vector.load %arg8[%207, %c0_90, %c0_91] : memref<8x8x128xf32, #tpu.memory_space<vmem>>, vector<1x8x128xf32>
    %209 = vector.shape_cast %208 : vector<1x8x128xf32> to vector<8x128xf32>
    %210 = vector.shape_cast %205 : vector<8x128xf32> to vector<1x8x128xf32>
    tpu.vector_store %arg8[%207, %c0_90, %c0_91], %210 {strides = array<i32>} : memref<8x8x128xf32, #tpu.memory_space<vmem>>, vector<1x8x128xf32>,
    %c6_i32 = arith.constant 6 : i32
    %c0_92 = arith.constant 0 : index
    %c0_93 = arith.constant 0 : index
    %211 = vector.load %arg10[%c0_92, %c0_93] : memref<8x128xf32, #tpu.memory_space<vmem>>, vector<8x128xf32>
    %cst_94 = arith.constant dense<0.000000e+00> : vector<8x384xf32>
    %212 = tpu.matmul %211, %16, %cst_94 {dimension_numbers = #tpu.dot_dimension_numbers<[1], [0], [0], [1], [0, 0, 1, 1], [], []>} : vector<8x128xf32>, vector<128x384xf32>, vector<8x384xf32> -> vector<8x384xf32>
    %213 = arith.index_cast %c6_i32 : i32 to index
    %c0_95 = arith.constant 0 : index
    %c0_96 = arith.constant 0 : index
    %214 = vector.load %arg9[%213, %c0_95, %c0_96] : memref<8x8x384xf32, #tpu.memory_space<vmem>>, vector<1x8x384xf32>
    %215 = vector.shape_cast %214 : vector<1x8x384xf32> to vector<8x384xf32>
    %216 = vector.extract_strided_slice %215 {offsets = [0, 0], sizes = [8, 256], strides = [1, 1]} : vector<8x384xf32> to vector<8x256xf32>
    %217 = vector.extract_strided_slice %212 {offsets = [0, 0], sizes = [8, 256], strides = [1, 1]} : vector<8x384xf32> to vector<8x256xf32>
    %218 = arith.addf %216, %217 : vector<8x256xf32>
    %219 = arith.negf %218 : vector<8x256xf32>
    %220 = math.exp %219 : vector<8x256xf32>
    %cst_97 = arith.constant 1.000000e+00 : f32
    %221 = vector.broadcast %cst_97 : f32 to vector<8x256xf32>
    %222 = arith.addf %221, %220 : vector<8x256xf32>
    %223 = arith.divf %221, %222 : vector<8x256xf32>
    %224 = vector.extract_strided_slice %223 {offsets = [0, 0], sizes = [8, 128], strides = [1, 1]} : vector<8x256xf32> to vector<8x128xf32>
    %225 = vector.extract_strided_slice %223 {offsets = [0, 128], sizes = [8, 128], strides = [1, 1]} : vector<8x256xf32> to vector<8x128xf32>
    %226 = vector.extract_strided_slice %215 {offsets = [0, 256], sizes = [8, 128], strides = [1, 1]} : vector<8x384xf32> to vector<8x128xf32>
    %227 = vector.extract_strided_slice %212 {offsets = [0, 256], sizes = [8, 128], strides = [1, 1]} : vector<8x384xf32> to vector<8x128xf32>
    %228 = vector.broadcast %18 : vector<1x128xf32> to vector<8x128xf32>
    %229 = arith.addf %227, %228 : vector<8x128xf32>
    %230 = arith.mulf %224, %229 : vector<8x128xf32>
    %231 = arith.addf %226, %230 : vector<8x128xf32>
    %232 = math.tanh %231 : vector<8x128xf32>
    %cst_98 = arith.constant 1.000000e+00 : f32
    %233 = vector.broadcast %cst_98 : f32 to vector<8x128xf32>
    %234 = arith.subf %233, %225 : vector<8x128xf32>
    %235 = arith.mulf %234, %232 : vector<8x128xf32>
    %236 = arith.mulf %225, %211 : vector<8x128xf32>
    %237 = arith.addf %235, %236 : vector<8x128xf32>
    %c0_99 = arith.constant 0 : index
    %c0_100 = arith.constant 0 : index
    %238 = vector.load %arg10[%c0_99, %c0_100] : memref<8x128xf32, #tpu.memory_space<vmem>>, vector<8x128xf32>
    tpu.vector_store %arg10[%c0_99, %c0_100], %237 {strides = array<i32>} : memref<8x128xf32, #tpu.memory_space<vmem>>, vector<8x128xf32>,
    %239 = arith.index_cast %c6_i32 : i32 to index
    %c0_101 = arith.constant 0 : index
    %c0_102 = arith.constant 0 : index
    %240 = vector.load %arg8[%239, %c0_101, %c0_102] : memref<8x8x128xf32, #tpu.memory_space<vmem>>, vector<1x8x128xf32>
    %241 = vector.shape_cast %240 : vector<1x8x128xf32> to vector<8x128xf32>
    %242 = vector.shape_cast %237 : vector<8x128xf32> to vector<1x8x128xf32>
    tpu.vector_store %arg8[%239, %c0_101, %c0_102], %242 {strides = array<i32>} : memref<8x8x128xf32, #tpu.memory_space<vmem>>, vector<1x8x128xf32>,
    %c7_i32 = arith.constant 7 : i32
    %c0_103 = arith.constant 0 : index
    %c0_104 = arith.constant 0 : index
    %243 = vector.load %arg10[%c0_103, %c0_104] : memref<8x128xf32, #tpu.memory_space<vmem>>, vector<8x128xf32>
    %cst_105 = arith.constant dense<0.000000e+00> : vector<8x384xf32>
    %244 = tpu.matmul %243, %16, %cst_105 {dimension_numbers = #tpu.dot_dimension_numbers<[1], [0], [0], [1], [0, 0, 1, 1], [], []>} : vector<8x128xf32>, vector<128x384xf32>, vector<8x384xf32> -> vector<8x384xf32>
    %245 = arith.index_cast %c7_i32 : i32 to index
    %c0_106 = arith.constant 0 : index
    %c0_107 = arith.constant 0 : index
    %246 = vector.load %arg9[%245, %c0_106, %c0_107] : memref<8x8x384xf32, #tpu.memory_space<vmem>>, vector<1x8x384xf32>
    %247 = vector.shape_cast %246 : vector<1x8x384xf32> to vector<8x384xf32>
    %248 = vector.extract_strided_slice %247 {offsets = [0, 0], sizes = [8, 256], strides = [1, 1]} : vector<8x384xf32> to vector<8x256xf32>
    %249 = vector.extract_strided_slice %244 {offsets = [0, 0], sizes = [8, 256], strides = [1, 1]} : vector<8x384xf32> to vector<8x256xf32>
    %250 = arith.addf %248, %249 : vector<8x256xf32>
    %251 = arith.negf %250 : vector<8x256xf32>
    %252 = math.exp %251 : vector<8x256xf32>
    %cst_108 = arith.constant 1.000000e+00 : f32
    %253 = vector.broadcast %cst_108 : f32 to vector<8x256xf32>
    %254 = arith.addf %253, %252 : vector<8x256xf32>
    %255 = arith.divf %253, %254 : vector<8x256xf32>
    %256 = vector.extract_strided_slice %255 {offsets = [0, 0], sizes = [8, 128], strides = [1, 1]} : vector<8x256xf32> to vector<8x128xf32>
    %257 = vector.extract_strided_slice %255 {offsets = [0, 128], sizes = [8, 128], strides = [1, 1]} : vector<8x256xf32> to vector<8x128xf32>
    %258 = vector.extract_strided_slice %247 {offsets = [0, 256], sizes = [8, 128], strides = [1, 1]} : vector<8x384xf32> to vector<8x128xf32>
    %259 = vector.extract_strided_slice %244 {offsets = [0, 256], sizes = [8, 128], strides = [1, 1]} : vector<8x384xf32> to vector<8x128xf32>
    %260 = vector.broadcast %18 : vector<1x128xf32> to vector<8x128xf32>
    %261 = arith.addf %259, %260 : vector<8x128xf32>
    %262 = arith.mulf %256, %261 : vector<8x128xf32>
    %263 = arith.addf %258, %262 : vector<8x128xf32>
    %264 = math.tanh %263 : vector<8x128xf32>
    %cst_109 = arith.constant 1.000000e+00 : f32
    %265 = vector.broadcast %cst_109 : f32 to vector<8x128xf32>
    %266 = arith.subf %265, %257 : vector<8x128xf32>
    %267 = arith.mulf %266, %264 : vector<8x128xf32>
    %268 = arith.mulf %257, %243 : vector<8x128xf32>
    %269 = arith.addf %267, %268 : vector<8x128xf32>
    %c0_110 = arith.constant 0 : index
    %c0_111 = arith.constant 0 : index
    %270 = vector.load %arg10[%c0_110, %c0_111] : memref<8x128xf32, #tpu.memory_space<vmem>>, vector<8x128xf32>
    tpu.vector_store %arg10[%c0_110, %c0_111], %269 {strides = array<i32>} : memref<8x128xf32, #tpu.memory_space<vmem>>, vector<8x128xf32>,
    %271 = arith.index_cast %c7_i32 : i32 to index
    %c0_112 = arith.constant 0 : index
    %c0_113 = arith.constant 0 : index
    %272 = vector.load %arg8[%271, %c0_112, %c0_113] : memref<8x8x128xf32, #tpu.memory_space<vmem>>, vector<1x8x128xf32>
    %273 = vector.shape_cast %272 : vector<1x8x128xf32> to vector<8x128xf32>
    %274 = vector.shape_cast %269 : vector<8x128xf32> to vector<1x8x128xf32>
    tpu.vector_store %arg8[%271, %c0_112, %c0_113], %274 {strides = array<i32>} : memref<8x8x128xf32, #tpu.memory_space<vmem>>, vector<1x8x128xf32>,
    %c8_i32 = arith.constant 8 : i32
    %c0_114 = arith.constant 0 : index
    %c0_115 = arith.constant 0 : index
    %c0_116 = arith.constant 0 : index
    %275 = vector.load %arg8[%c0_114, %c0_115, %c0_116] : memref<8x8x128xf32, #tpu.memory_space<vmem>>, vector<8x8x128xf32>
    %276 = vector.shape_cast %275 : vector<8x8x128xf32> to vector<64x128xf32>
    %c1 = arith.constant 1 : index
    %c0_117 = arith.constant 0 : index
    %c0_118 = arith.constant 0 : index
    %277 = vector.load %arg1[%c1, %c0_117, %c0_118] : memref<2x128x384xf32, #tpu.memory_space<vmem>>, vector<1x128x384xf32>
    %278 = vector.shape_cast %277 : vector<1x128x384xf32> to vector<128x384xf32>
    %cst_119 = arith.constant dense<0.000000e+00> : vector<64x384xf32>
    %279 = tpu.matmul %276, %278, %cst_119 {dimension_numbers = #tpu.dot_dimension_numbers<[1], [0], [0], [1], [0, 0, 1, 1], [], []>} : vector<64x128xf32>, vector<128x384xf32>, vector<64x384xf32> -> vector<64x384xf32>
    %c1_120 = arith.constant 1 : index
    %c0_121 = arith.constant 0 : index
    %c0_122 = arith.constant 0 : index
    %280 = vector.load %arg3[%c1_120, %c0_121, %c0_122] : memref<2x1x384xf32, #tpu.memory_space<vmem>>, vector<1x1x384xf32>
    %281 = vector.shape_cast %280 : vector<1x1x384xf32> to vector<1x384xf32>
    %282 = vector.broadcast %281 : vector<1x384xf32> to vector<64x384xf32>
    %283 = arith.addf %279, %282 : vector<64x384xf32>
    %284 = vector.shape_cast %283 : vector<64x384xf32> to vector<8x8x384xf32>
    %c0_123 = arith.constant 0 : index
    %c0_124 = arith.constant 0 : index
    %c0_125 = arith.constant 0 : index
    %285 = vector.load %arg9[%c0_123, %c0_124, %c0_125] : memref<8x8x384xf32, #tpu.memory_space<vmem>>, vector<8x8x384xf32>
    tpu.vector_store %arg9[%c0_123, %c0_124, %c0_125], %284 {strides = array<i32>} : memref<8x8x384xf32, #tpu.memory_space<vmem>>, vector<8x8x384xf32>,
    %cst_126 = arith.constant 0.000000e+00 : f32
    %286 = vector.broadcast %cst_126 : f32 to vector<8x128xf32>
    %c0_127 = arith.constant 0 : index
    %c0_128 = arith.constant 0 : index
    %287 = vector.load %arg10[%c0_127, %c0_128] : memref<8x128xf32, #tpu.memory_space<vmem>>, vector<8x128xf32>
    tpu.vector_store %arg10[%c0_127, %c0_128], %286 {strides = array<i32>} : memref<8x128xf32, #tpu.memory_space<vmem>>, vector<8x128xf32>,
    %c1_129 = arith.constant 1 : index
    %c0_130 = arith.constant 0 : index
    %c0_131 = arith.constant 0 : index
    %288 = vector.load %arg2[%c1_129, %c0_130, %c0_131] : memref<2x128x384xf32, #tpu.memory_space<vmem>>, vector<1x128x384xf32>
    %289 = vector.shape_cast %288 : vector<1x128x384xf32> to vector<128x384xf32>
    %c1_132 = arith.constant 1 : index
    %c0_133 = arith.constant 0 : index
    %c0_134 = arith.constant 0 : index
    %290 = vector.load %arg4[%c1_132, %c0_133, %c0_134] : memref<2x1x128xf32, #tpu.memory_space<vmem>>, vector<1x1x128xf32>
    %291 = vector.shape_cast %290 : vector<1x1x128xf32> to vector<1x128xf32>
    %c0_i32_135 = arith.constant 0 : i32
    %c0_136 = arith.constant 0 : index
    %c0_137 = arith.constant 0 : index
    %292 = vector.load %arg10[%c0_136, %c0_137] : memref<8x128xf32, #tpu.memory_space<vmem>>, vector<8x128xf32>
    %cst_138 = arith.constant dense<0.000000e+00> : vector<8x384xf32>
    %293 = tpu.matmul %292, %289, %cst_138 {dimension_numbers = #tpu.dot_dimension_numbers<[1], [0], [0], [1], [0, 0, 1, 1], [], []>} : vector<8x128xf32>, vector<128x384xf32>, vector<8x384xf32> -> vector<8x384xf32>
    %294 = arith.index_cast %c0_i32_135 : i32 to index
    %c0_139 = arith.constant 0 : index
    %c0_140 = arith.constant 0 : index
    %295 = vector.load %arg9[%294, %c0_139, %c0_140] : memref<8x8x384xf32, #tpu.memory_space<vmem>>, vector<1x8x384xf32>
    %296 = vector.shape_cast %295 : vector<1x8x384xf32> to vector<8x384xf32>
    %297 = vector.extract_strided_slice %296 {offsets = [0, 0], sizes = [8, 256], strides = [1, 1]} : vector<8x384xf32> to vector<8x256xf32>
    %298 = vector.extract_strided_slice %293 {offsets = [0, 0], sizes = [8, 256], strides = [1, 1]} : vector<8x384xf32> to vector<8x256xf32>
    %299 = arith.addf %297, %298 : vector<8x256xf32>
    %300 = arith.negf %299 : vector<8x256xf32>
    %301 = math.exp %300 : vector<8x256xf32>
    %cst_141 = arith.constant 1.000000e+00 : f32
    %302 = vector.broadcast %cst_141 : f32 to vector<8x256xf32>
    %303 = arith.addf %302, %301 : vector<8x256xf32>
    %304 = arith.divf %302, %303 : vector<8x256xf32>
    %305 = vector.extract_strided_slice %304 {offsets = [0, 0], sizes = [8, 128], strides = [1, 1]} : vector<8x256xf32> to vector<8x128xf32>
    %306 = vector.extract_strided_slice %304 {offsets = [0, 128], sizes = [8, 128], strides = [1, 1]} : vector<8x256xf32> to vector<8x128xf32>
    %307 = vector.extract_strided_slice %296 {offsets = [0, 256], sizes = [8, 128], strides = [1, 1]} : vector<8x384xf32> to vector<8x128xf32>
    %308 = vector.extract_strided_slice %293 {offsets = [0, 256], sizes = [8, 128], strides = [1, 1]} : vector<8x384xf32> to vector<8x128xf32>
    %309 = vector.broadcast %291 : vector<1x128xf32> to vector<8x128xf32>
    %310 = arith.addf %308, %309 : vector<8x128xf32>
    %311 = arith.mulf %305, %310 : vector<8x128xf32>
    %312 = arith.addf %307, %311 : vector<8x128xf32>
    %313 = math.tanh %312 : vector<8x128xf32>
    %cst_142 = arith.constant 1.000000e+00 : f32
    %314 = vector.broadcast %cst_142 : f32 to vector<8x128xf32>
    %315 = arith.subf %314, %306 : vector<8x128xf32>
    %316 = arith.mulf %315, %313 : vector<8x128xf32>
    %317 = arith.mulf %306, %292 : vector<8x128xf32>
    %318 = arith.addf %316, %317 : vector<8x128xf32>
    %c0_143 = arith.constant 0 : index
    %c0_144 = arith.constant 0 : index
    %319 = vector.load %arg10[%c0_143, %c0_144] : memref<8x128xf32, #tpu.memory_space<vmem>>, vector<8x128xf32>
    tpu.vector_store %arg10[%c0_143, %c0_144], %318 {strides = array<i32>} : memref<8x128xf32, #tpu.memory_space<vmem>>, vector<8x128xf32>,
    %c1_i32_145 = arith.constant 1 : i32
    %c0_146 = arith.constant 0 : index
    %c0_147 = arith.constant 0 : index
    %320 = vector.load %arg10[%c0_146, %c0_147] : memref<8x128xf32, #tpu.memory_space<vmem>>, vector<8x128xf32>
    %cst_148 = arith.constant dense<0.000000e+00> : vector<8x384xf32>
    %321 = tpu.matmul %320, %289, %cst_148 {dimension_numbers = #tpu.dot_dimension_numbers<[1], [0], [0], [1], [0, 0, 1, 1], [], []>} : vector<8x128xf32>, vector<128x384xf32>, vector<8x384xf32> -> vector<8x384xf32>
    %322 = arith.index_cast %c1_i32_145 : i32 to index
    %c0_149 = arith.constant 0 : index
    %c0_150 = arith.constant 0 : index
    %323 = vector.load %arg9[%322, %c0_149, %c0_150] : memref<8x8x384xf32, #tpu.memory_space<vmem>>, vector<1x8x384xf32>
    %324 = vector.shape_cast %323 : vector<1x8x384xf32> to vector<8x384xf32>
    %325 = vector.extract_strided_slice %324 {offsets = [0, 0], sizes = [8, 256], strides = [1, 1]} : vector<8x384xf32> to vector<8x256xf32>
    %326 = vector.extract_strided_slice %321 {offsets = [0, 0], sizes = [8, 256], strides = [1, 1]} : vector<8x384xf32> to vector<8x256xf32>
    %327 = arith.addf %325, %326 : vector<8x256xf32>
    %328 = arith.negf %327 : vector<8x256xf32>
    %329 = math.exp %328 : vector<8x256xf32>
    %cst_151 = arith.constant 1.000000e+00 : f32
    %330 = vector.broadcast %cst_151 : f32 to vector<8x256xf32>
    %331 = arith.addf %330, %329 : vector<8x256xf32>
    %332 = arith.divf %330, %331 : vector<8x256xf32>
    %333 = vector.extract_strided_slice %332 {offsets = [0, 0], sizes = [8, 128], strides = [1, 1]} : vector<8x256xf32> to vector<8x128xf32>
    %334 = vector.extract_strided_slice %332 {offsets = [0, 128], sizes = [8, 128], strides = [1, 1]} : vector<8x256xf32> to vector<8x128xf32>
    %335 = vector.extract_strided_slice %324 {offsets = [0, 256], sizes = [8, 128], strides = [1, 1]} : vector<8x384xf32> to vector<8x128xf32>
    %336 = vector.extract_strided_slice %321 {offsets = [0, 256], sizes = [8, 128], strides = [1, 1]} : vector<8x384xf32> to vector<8x128xf32>
    %337 = vector.broadcast %291 : vector<1x128xf32> to vector<8x128xf32>
    %338 = arith.addf %336, %337 : vector<8x128xf32>
    %339 = arith.mulf %333, %338 : vector<8x128xf32>
    %340 = arith.addf %335, %339 : vector<8x128xf32>
    %341 = math.tanh %340 : vector<8x128xf32>
    %cst_152 = arith.constant 1.000000e+00 : f32
    %342 = vector.broadcast %cst_152 : f32 to vector<8x128xf32>
    %343 = arith.subf %342, %334 : vector<8x128xf32>
    %344 = arith.mulf %343, %341 : vector<8x128xf32>
    %345 = arith.mulf %334, %320 : vector<8x128xf32>
    %346 = arith.addf %344, %345 : vector<8x128xf32>
    %c0_153 = arith.constant 0 : index
    %c0_154 = arith.constant 0 : index
    %347 = vector.load %arg10[%c0_153, %c0_154] : memref<8x128xf32, #tpu.memory_space<vmem>>, vector<8x128xf32>
    tpu.vector_store %arg10[%c0_153, %c0_154], %346 {strides = array<i32>} : memref<8x128xf32, #tpu.memory_space<vmem>>, vector<8x128xf32>,
    %c2_i32_155 = arith.constant 2 : i32
    %c0_156 = arith.constant 0 : index
    %c0_157 = arith.constant 0 : index
    %348 = vector.load %arg10[%c0_156, %c0_157] : memref<8x128xf32, #tpu.memory_space<vmem>>, vector<8x128xf32>
    %cst_158 = arith.constant dense<0.000000e+00> : vector<8x384xf32>
    %349 = tpu.matmul %348, %289, %cst_158 {dimension_numbers = #tpu.dot_dimension_numbers<[1], [0], [0], [1], [0, 0, 1, 1], [], []>} : vector<8x128xf32>, vector<128x384xf32>, vector<8x384xf32> -> vector<8x384xf32>
    %350 = arith.index_cast %c2_i32_155 : i32 to index
    %c0_159 = arith.constant 0 : index
    %c0_160 = arith.constant 0 : index
    %351 = vector.load %arg9[%350, %c0_159, %c0_160] : memref<8x8x384xf32, #tpu.memory_space<vmem>>, vector<1x8x384xf32>
    %352 = vector.shape_cast %351 : vector<1x8x384xf32> to vector<8x384xf32>
    %353 = vector.extract_strided_slice %352 {offsets = [0, 0], sizes = [8, 256], strides = [1, 1]} : vector<8x384xf32> to vector<8x256xf32>
    %354 = vector.extract_strided_slice %349 {offsets = [0, 0], sizes = [8, 256], strides = [1, 1]} : vector<8x384xf32> to vector<8x256xf32>
    %355 = arith.addf %353, %354 : vector<8x256xf32>
    %356 = arith.negf %355 : vector<8x256xf32>
    %357 = math.exp %356 : vector<8x256xf32>
    %cst_161 = arith.constant 1.000000e+00 : f32
    %358 = vector.broadcast %cst_161 : f32 to vector<8x256xf32>
    %359 = arith.addf %358, %357 : vector<8x256xf32>
    %360 = arith.divf %358, %359 : vector<8x256xf32>
    %361 = vector.extract_strided_slice %360 {offsets = [0, 0], sizes = [8, 128], strides = [1, 1]} : vector<8x256xf32> to vector<8x128xf32>
    %362 = vector.extract_strided_slice %360 {offsets = [0, 128], sizes = [8, 128], strides = [1, 1]} : vector<8x256xf32> to vector<8x128xf32>
    %363 = vector.extract_strided_slice %352 {offsets = [0, 256], sizes = [8, 128], strides = [1, 1]} : vector<8x384xf32> to vector<8x128xf32>
    %364 = vector.extract_strided_slice %349 {offsets = [0, 256], sizes = [8, 128], strides = [1, 1]} : vector<8x384xf32> to vector<8x128xf32>
    %365 = vector.broadcast %291 : vector<1x128xf32> to vector<8x128xf32>
    %366 = arith.addf %364, %365 : vector<8x128xf32>
    %367 = arith.mulf %361, %366 : vector<8x128xf32>
    %368 = arith.addf %363, %367 : vector<8x128xf32>
    %369 = math.tanh %368 : vector<8x128xf32>
    %cst_162 = arith.constant 1.000000e+00 : f32
    %370 = vector.broadcast %cst_162 : f32 to vector<8x128xf32>
    %371 = arith.subf %370, %362 : vector<8x128xf32>
    %372 = arith.mulf %371, %369 : vector<8x128xf32>
    %373 = arith.mulf %362, %348 : vector<8x128xf32>
    %374 = arith.addf %372, %373 : vector<8x128xf32>
    %c0_163 = arith.constant 0 : index
    %c0_164 = arith.constant 0 : index
    %375 = vector.load %arg10[%c0_163, %c0_164] : memref<8x128xf32, #tpu.memory_space<vmem>>, vector<8x128xf32>
    tpu.vector_store %arg10[%c0_163, %c0_164], %374 {strides = array<i32>} : memref<8x128xf32, #tpu.memory_space<vmem>>, vector<8x128xf32>,
    %c3_i32_165 = arith.constant 3 : i32
    %c0_166 = arith.constant 0 : index
    %c0_167 = arith.constant 0 : index
    %376 = vector.load %arg10[%c0_166, %c0_167] : memref<8x128xf32, #tpu.memory_space<vmem>>, vector<8x128xf32>
    %cst_168 = arith.constant dense<0.000000e+00> : vector<8x384xf32>
    %377 = tpu.matmul %376, %289, %cst_168 {dimension_numbers = #tpu.dot_dimension_numbers<[1], [0], [0], [1], [0, 0, 1, 1], [], []>} : vector<8x128xf32>, vector<128x384xf32>, vector<8x384xf32> -> vector<8x384xf32>
    %378 = arith.index_cast %c3_i32_165 : i32 to index
    %c0_169 = arith.constant 0 : index
    %c0_170 = arith.constant 0 : index
    %379 = vector.load %arg9[%378, %c0_169, %c0_170] : memref<8x8x384xf32, #tpu.memory_space<vmem>>, vector<1x8x384xf32>
    %380 = vector.shape_cast %379 : vector<1x8x384xf32> to vector<8x384xf32>
    %381 = vector.extract_strided_slice %380 {offsets = [0, 0], sizes = [8, 256], strides = [1, 1]} : vector<8x384xf32> to vector<8x256xf32>
    %382 = vector.extract_strided_slice %377 {offsets = [0, 0], sizes = [8, 256], strides = [1, 1]} : vector<8x384xf32> to vector<8x256xf32>
    %383 = arith.addf %381, %382 : vector<8x256xf32>
    %384 = arith.negf %383 : vector<8x256xf32>
    %385 = math.exp %384 : vector<8x256xf32>
    %cst_171 = arith.constant 1.000000e+00 : f32
    %386 = vector.broadcast %cst_171 : f32 to vector<8x256xf32>
    %387 = arith.addf %386, %385 : vector<8x256xf32>
    %388 = arith.divf %386, %387 : vector<8x256xf32>
    %389 = vector.extract_strided_slice %388 {offsets = [0, 0], sizes = [8, 128], strides = [1, 1]} : vector<8x256xf32> to vector<8x128xf32>
    %390 = vector.extract_strided_slice %388 {offsets = [0, 128], sizes = [8, 128], strides = [1, 1]} : vector<8x256xf32> to vector<8x128xf32>
    %391 = vector.extract_strided_slice %380 {offsets = [0, 256], sizes = [8, 128], strides = [1, 1]} : vector<8x384xf32> to vector<8x128xf32>
    %392 = vector.extract_strided_slice %377 {offsets = [0, 256], sizes = [8, 128], strides = [1, 1]} : vector<8x384xf32> to vector<8x128xf32>
    %393 = vector.broadcast %291 : vector<1x128xf32> to vector<8x128xf32>
    %394 = arith.addf %392, %393 : vector<8x128xf32>
    %395 = arith.mulf %389, %394 : vector<8x128xf32>
    %396 = arith.addf %391, %395 : vector<8x128xf32>
    %397 = math.tanh %396 : vector<8x128xf32>
    %cst_172 = arith.constant 1.000000e+00 : f32
    %398 = vector.broadcast %cst_172 : f32 to vector<8x128xf32>
    %399 = arith.subf %398, %390 : vector<8x128xf32>
    %400 = arith.mulf %399, %397 : vector<8x128xf32>
    %401 = arith.mulf %390, %376 : vector<8x128xf32>
    %402 = arith.addf %400, %401 : vector<8x128xf32>
    %c0_173 = arith.constant 0 : index
    %c0_174 = arith.constant 0 : index
    %403 = vector.load %arg10[%c0_173, %c0_174] : memref<8x128xf32, #tpu.memory_space<vmem>>, vector<8x128xf32>
    tpu.vector_store %arg10[%c0_173, %c0_174], %402 {strides = array<i32>} : memref<8x128xf32, #tpu.memory_space<vmem>>, vector<8x128xf32>,
    %c4_i32_175 = arith.constant 4 : i32
    %c0_176 = arith.constant 0 : index
    %c0_177 = arith.constant 0 : index
    %404 = vector.load %arg10[%c0_176, %c0_177] : memref<8x128xf32, #tpu.memory_space<vmem>>, vector<8x128xf32>
    %cst_178 = arith.constant dense<0.000000e+00> : vector<8x384xf32>
    %405 = tpu.matmul %404, %289, %cst_178 {dimension_numbers = #tpu.dot_dimension_numbers<[1], [0], [0], [1], [0, 0, 1, 1], [], []>} : vector<8x128xf32>, vector<128x384xf32>, vector<8x384xf32> -> vector<8x384xf32>
    %406 = arith.index_cast %c4_i32_175 : i32 to index
    %c0_179 = arith.constant 0 : index
    %c0_180 = arith.constant 0 : index
    %407 = vector.load %arg9[%406, %c0_179, %c0_180] : memref<8x8x384xf32, #tpu.memory_space<vmem>>, vector<1x8x384xf32>
    %408 = vector.shape_cast %407 : vector<1x8x384xf32> to vector<8x384xf32>
    %409 = vector.extract_strided_slice %408 {offsets = [0, 0], sizes = [8, 256], strides = [1, 1]} : vector<8x384xf32> to vector<8x256xf32>
    %410 = vector.extract_strided_slice %405 {offsets = [0, 0], sizes = [8, 256], strides = [1, 1]} : vector<8x384xf32> to vector<8x256xf32>
    %411 = arith.addf %409, %410 : vector<8x256xf32>
    %412 = arith.negf %411 : vector<8x256xf32>
    %413 = math.exp %412 : vector<8x256xf32>
    %cst_181 = arith.constant 1.000000e+00 : f32
    %414 = vector.broadcast %cst_181 : f32 to vector<8x256xf32>
    %415 = arith.addf %414, %413 : vector<8x256xf32>
    %416 = arith.divf %414, %415 : vector<8x256xf32>
    %417 = vector.extract_strided_slice %416 {offsets = [0, 0], sizes = [8, 128], strides = [1, 1]} : vector<8x256xf32> to vector<8x128xf32>
    %418 = vector.extract_strided_slice %416 {offsets = [0, 128], sizes = [8, 128], strides = [1, 1]} : vector<8x256xf32> to vector<8x128xf32>
    %419 = vector.extract_strided_slice %408 {offsets = [0, 256], sizes = [8, 128], strides = [1, 1]} : vector<8x384xf32> to vector<8x128xf32>
    %420 = vector.extract_strided_slice %405 {offsets = [0, 256], sizes = [8, 128], strides = [1, 1]} : vector<8x384xf32> to vector<8x128xf32>
    %421 = vector.broadcast %291 : vector<1x128xf32> to vector<8x128xf32>
    %422 = arith.addf %420, %421 : vector<8x128xf32>
    %423 = arith.mulf %417, %422 : vector<8x128xf32>
    %424 = arith.addf %419, %423 : vector<8x128xf32>
    %425 = math.tanh %424 : vector<8x128xf32>
    %cst_182 = arith.constant 1.000000e+00 : f32
    %426 = vector.broadcast %cst_182 : f32 to vector<8x128xf32>
    %427 = arith.subf %426, %418 : vector<8x128xf32>
    %428 = arith.mulf %427, %425 : vector<8x128xf32>
    %429 = arith.mulf %418, %404 : vector<8x128xf32>
    %430 = arith.addf %428, %429 : vector<8x128xf32>
    %c0_183 = arith.constant 0 : index
    %c0_184 = arith.constant 0 : index
    %431 = vector.load %arg10[%c0_183, %c0_184] : memref<8x128xf32, #tpu.memory_space<vmem>>, vector<8x128xf32>
    tpu.vector_store %arg10[%c0_183, %c0_184], %430 {strides = array<i32>} : memref<8x128xf32, #tpu.memory_space<vmem>>, vector<8x128xf32>,
    %c5_i32_185 = arith.constant 5 : i32
    %c0_186 = arith.constant 0 : index
    %c0_187 = arith.constant 0 : index
    %432 = vector.load %arg10[%c0_186, %c0_187] : memref<8x128xf32, #tpu.memory_space<vmem>>, vector<8x128xf32>
    %cst_188 = arith.constant dense<0.000000e+00> : vector<8x384xf32>
    %433 = tpu.matmul %432, %289, %cst_188 {dimension_numbers = #tpu.dot_dimension_numbers<[1], [0], [0], [1], [0, 0, 1, 1], [], []>} : vector<8x128xf32>, vector<128x384xf32>, vector<8x384xf32> -> vector<8x384xf32>
    %434 = arith.index_cast %c5_i32_185 : i32 to index
    %c0_189 = arith.constant 0 : index
    %c0_190 = arith.constant 0 : index
    %435 = vector.load %arg9[%434, %c0_189, %c0_190] : memref<8x8x384xf32, #tpu.memory_space<vmem>>, vector<1x8x384xf32>
    %436 = vector.shape_cast %435 : vector<1x8x384xf32> to vector<8x384xf32>
    %437 = vector.extract_strided_slice %436 {offsets = [0, 0], sizes = [8, 256], strides = [1, 1]} : vector<8x384xf32> to vector<8x256xf32>
    %438 = vector.extract_strided_slice %433 {offsets = [0, 0], sizes = [8, 256], strides = [1, 1]} : vector<8x384xf32> to vector<8x256xf32>
    %439 = arith.addf %437, %438 : vector<8x256xf32>
    %440 = arith.negf %439 : vector<8x256xf32>
    %441 = math.exp %440 : vector<8x256xf32>
    %cst_191 = arith.constant 1.000000e+00 : f32
    %442 = vector.broadcast %cst_191 : f32 to vector<8x256xf32>
    %443 = arith.addf %442, %441 : vector<8x256xf32>
    %444 = arith.divf %442, %443 : vector<8x256xf32>
    %445 = vector.extract_strided_slice %444 {offsets = [0, 0], sizes = [8, 128], strides = [1, 1]} : vector<8x256xf32> to vector<8x128xf32>
    %446 = vector.extract_strided_slice %444 {offsets = [0, 128], sizes = [8, 128], strides = [1, 1]} : vector<8x256xf32> to vector<8x128xf32>
    %447 = vector.extract_strided_slice %436 {offsets = [0, 256], sizes = [8, 128], strides = [1, 1]} : vector<8x384xf32> to vector<8x128xf32>
    %448 = vector.extract_strided_slice %433 {offsets = [0, 256], sizes = [8, 128], strides = [1, 1]} : vector<8x384xf32> to vector<8x128xf32>
    %449 = vector.broadcast %291 : vector<1x128xf32> to vector<8x128xf32>
    %450 = arith.addf %448, %449 : vector<8x128xf32>
    %451 = arith.mulf %445, %450 : vector<8x128xf32>
    %452 = arith.addf %447, %451 : vector<8x128xf32>
    %453 = math.tanh %452 : vector<8x128xf32>
    %cst_192 = arith.constant 1.000000e+00 : f32
    %454 = vector.broadcast %cst_192 : f32 to vector<8x128xf32>
    %455 = arith.subf %454, %446 : vector<8x128xf32>
    %456 = arith.mulf %455, %453 : vector<8x128xf32>
    %457 = arith.mulf %446, %432 : vector<8x128xf32>
    %458 = arith.addf %456, %457 : vector<8x128xf32>
    %c0_193 = arith.constant 0 : index
    %c0_194 = arith.constant 0 : index
    %459 = vector.load %arg10[%c0_193, %c0_194] : memref<8x128xf32, #tpu.memory_space<vmem>>, vector<8x128xf32>
    tpu.vector_store %arg10[%c0_193, %c0_194], %458 {strides = array<i32>} : memref<8x128xf32, #tpu.memory_space<vmem>>, vector<8x128xf32>,
    %c6_i32_195 = arith.constant 6 : i32
    %c0_196 = arith.constant 0 : index
    %c0_197 = arith.constant 0 : index
    %460 = vector.load %arg10[%c0_196, %c0_197] : memref<8x128xf32, #tpu.memory_space<vmem>>, vector<8x128xf32>
    %cst_198 = arith.constant dense<0.000000e+00> : vector<8x384xf32>
    %461 = tpu.matmul %460, %289, %cst_198 {dimension_numbers = #tpu.dot_dimension_numbers<[1], [0], [0], [1], [0, 0, 1, 1], [], []>} : vector<8x128xf32>, vector<128x384xf32>, vector<8x384xf32> -> vector<8x384xf32>
    %462 = arith.index_cast %c6_i32_195 : i32 to index
    %c0_199 = arith.constant 0 : index
    %c0_200 = arith.constant 0 : index
    %463 = vector.load %arg9[%462, %c0_199, %c0_200] : memref<8x8x384xf32, #tpu.memory_space<vmem>>, vector<1x8x384xf32>
    %464 = vector.shape_cast %463 : vector<1x8x384xf32> to vector<8x384xf32>
    %465 = vector.extract_strided_slice %464 {offsets = [0, 0], sizes = [8, 256], strides = [1, 1]} : vector<8x384xf32> to vector<8x256xf32>
    %466 = vector.extract_strided_slice %461 {offsets = [0, 0], sizes = [8, 256], strides = [1, 1]} : vector<8x384xf32> to vector<8x256xf32>
    %467 = arith.addf %465, %466 : vector<8x256xf32>
    %468 = arith.negf %467 : vector<8x256xf32>
    %469 = math.exp %468 : vector<8x256xf32>
    %cst_201 = arith.constant 1.000000e+00 : f32
    %470 = vector.broadcast %cst_201 : f32 to vector<8x256xf32>
    %471 = arith.addf %470, %469 : vector<8x256xf32>
    %472 = arith.divf %470, %471 : vector<8x256xf32>
    %473 = vector.extract_strided_slice %472 {offsets = [0, 0], sizes = [8, 128], strides = [1, 1]} : vector<8x256xf32> to vector<8x128xf32>
    %474 = vector.extract_strided_slice %472 {offsets = [0, 128], sizes = [8, 128], strides = [1, 1]} : vector<8x256xf32> to vector<8x128xf32>
    %475 = vector.extract_strided_slice %464 {offsets = [0, 256], sizes = [8, 128], strides = [1, 1]} : vector<8x384xf32> to vector<8x128xf32>
    %476 = vector.extract_strided_slice %461 {offsets = [0, 256], sizes = [8, 128], strides = [1, 1]} : vector<8x384xf32> to vector<8x128xf32>
    %477 = vector.broadcast %291 : vector<1x128xf32> to vector<8x128xf32>
    %478 = arith.addf %476, %477 : vector<8x128xf32>
    %479 = arith.mulf %473, %478 : vector<8x128xf32>
    %480 = arith.addf %475, %479 : vector<8x128xf32>
    %481 = math.tanh %480 : vector<8x128xf32>
    %cst_202 = arith.constant 1.000000e+00 : f32
    %482 = vector.broadcast %cst_202 : f32 to vector<8x128xf32>
    %483 = arith.subf %482, %474 : vector<8x128xf32>
    %484 = arith.mulf %483, %481 : vector<8x128xf32>
    %485 = arith.mulf %474, %460 : vector<8x128xf32>
    %486 = arith.addf %484, %485 : vector<8x128xf32>
    %c0_203 = arith.constant 0 : index
    %c0_204 = arith.constant 0 : index
    %487 = vector.load %arg10[%c0_203, %c0_204] : memref<8x128xf32, #tpu.memory_space<vmem>>, vector<8x128xf32>
    tpu.vector_store %arg10[%c0_203, %c0_204], %486 {strides = array<i32>} : memref<8x128xf32, #tpu.memory_space<vmem>>, vector<8x128xf32>,
    %c7_i32_205 = arith.constant 7 : i32
    %c0_206 = arith.constant 0 : index
    %c0_207 = arith.constant 0 : index
    %488 = vector.load %arg10[%c0_206, %c0_207] : memref<8x128xf32, #tpu.memory_space<vmem>>, vector<8x128xf32>
    %cst_208 = arith.constant dense<0.000000e+00> : vector<8x384xf32>
    %489 = tpu.matmul %488, %289, %cst_208 {dimension_numbers = #tpu.dot_dimension_numbers<[1], [0], [0], [1], [0, 0, 1, 1], [], []>} : vector<8x128xf32>, vector<128x384xf32>, vector<8x384xf32> -> vector<8x384xf32>
    %490 = arith.index_cast %c7_i32_205 : i32 to index
    %c0_209 = arith.constant 0 : index
    %c0_210 = arith.constant 0 : index
    %491 = vector.load %arg9[%490, %c0_209, %c0_210] : memref<8x8x384xf32, #tpu.memory_space<vmem>>, vector<1x8x384xf32>
    %492 = vector.shape_cast %491 : vector<1x8x384xf32> to vector<8x384xf32>
    %493 = vector.extract_strided_slice %492 {offsets = [0, 0], sizes = [8, 256], strides = [1, 1]} : vector<8x384xf32> to vector<8x256xf32>
    %494 = vector.extract_strided_slice %489 {offsets = [0, 0], sizes = [8, 256], strides = [1, 1]} : vector<8x384xf32> to vector<8x256xf32>
    %495 = arith.addf %493, %494 : vector<8x256xf32>
    %496 = arith.negf %495 : vector<8x256xf32>
    %497 = math.exp %496 : vector<8x256xf32>
    %cst_211 = arith.constant 1.000000e+00 : f32
    %498 = vector.broadcast %cst_211 : f32 to vector<8x256xf32>
    %499 = arith.addf %498, %497 : vector<8x256xf32>
    %500 = arith.divf %498, %499 : vector<8x256xf32>
    %501 = vector.extract_strided_slice %500 {offsets = [0, 0], sizes = [8, 128], strides = [1, 1]} : vector<8x256xf32> to vector<8x128xf32>
    %502 = vector.extract_strided_slice %500 {offsets = [0, 128], sizes = [8, 128], strides = [1, 1]} : vector<8x256xf32> to vector<8x128xf32>
    %503 = vector.extract_strided_slice %492 {offsets = [0, 256], sizes = [8, 128], strides = [1, 1]} : vector<8x384xf32> to vector<8x128xf32>
    %504 = vector.extract_strided_slice %489 {offsets = [0, 256], sizes = [8, 128], strides = [1, 1]} : vector<8x384xf32> to vector<8x128xf32>
    %505 = vector.broadcast %291 : vector<1x128xf32> to vector<8x128xf32>
    %506 = arith.addf %504, %505 : vector<8x128xf32>
    %507 = arith.mulf %501, %506 : vector<8x128xf32>
    %508 = arith.addf %503, %507 : vector<8x128xf32>
    %509 = math.tanh %508 : vector<8x128xf32>
    %cst_212 = arith.constant 1.000000e+00 : f32
    %510 = vector.broadcast %cst_212 : f32 to vector<8x128xf32>
    %511 = arith.subf %510, %502 : vector<8x128xf32>
    %512 = arith.mulf %511, %509 : vector<8x128xf32>
    %513 = arith.mulf %502, %488 : vector<8x128xf32>
    %514 = arith.addf %512, %513 : vector<8x128xf32>
    %c0_213 = arith.constant 0 : index
    %c0_214 = arith.constant 0 : index
    %515 = vector.load %arg10[%c0_213, %c0_214] : memref<8x128xf32, #tpu.memory_space<vmem>>, vector<8x128xf32>
    tpu.vector_store %arg10[%c0_213, %c0_214], %514 {strides = array<i32>} : memref<8x128xf32, #tpu.memory_space<vmem>>, vector<8x128xf32>,
    %c8_i32_215 = arith.constant 8 : i32
    %c0_216 = arith.constant 0 : index
    %c0_217 = arith.constant 0 : index
    %516 = vector.load %arg10[%c0_216, %c0_217] : memref<8x128xf32, #tpu.memory_space<vmem>>, vector<8x128xf32>
    %c0_218 = arith.constant 0 : index
    %c0_219 = arith.constant 0 : index
    %517 = vector.load %arg5[%c0_218, %c0_219] : memref<128x128xf32, #tpu.memory_space<vmem>>, vector<128x128xf32>
    %cst_220 = arith.constant dense<0.000000e+00> : vector<8x128xf32>
    %518 = tpu.matmul %516, %517, %cst_220 {dimension_numbers = #tpu.dot_dimension_numbers<[1], [0], [0], [1], [0, 0, 1, 1], [], []>} : vector<8x128xf32>, vector<128x128xf32>, vector<8x128xf32> -> vector<8x128xf32>
    %c0_221 = arith.constant 0 : index
    %c0_222 = arith.constant 0 : index
    %519 = vector.load %arg6[%c0_221, %c0_222] : memref<1x128xf32, #tpu.memory_space<vmem>>, vector<1x128xf32>
    %520 = vector.broadcast %519 : vector<1x128xf32> to vector<8x128xf32>
    %521 = arith.addf %518, %520 : vector<8x128xf32>
    %c0_223 = arith.constant 0 : index
    %c0_224 = arith.constant 0 : index
    %522 = vector.load %arg7[%c0_223, %c0_224] : memref<8x128xf32, #tpu.memory_space<vmem>>, vector<8x128xf32>
    tpu.vector_store %arg7[%c0_223, %c0_224], %521 {strides = array<i32>} : memref<8x128xf32, #tpu.memory_space<vmem>>, vector<8x128xf32>,
    return
  }
}

</mosaic_0001>

<llo_original>
// kernel: tpu_custom_call.1
$region0: #{tpu_custom_call.1}
  #allocation0 [shape = 'u32[]', space=smem, size = 0x4, offset = 0x4, fixed_abs, tag = 'smem constant byte address 0x4 - core index']
  #allocation1 [shape = 'u32[72,128]{1,0:T(1,128)}', space=vmem, size = 0x9000, scoped, tag = 'internal scratch']
  #allocation2 [shape = 'f32[8,8,128]{2,1,0:T(8,128)}', space=vmem, size = 0x8000, scoped, tag = 'scratch operand']
  #allocation3 [shape = 'f32[8,8,384]{2,1,0:T(8,128)}', space=vmem, size = 0x18000, scoped, tag = 'scratch operand']
  #allocation4 [shape = 'f32[8,128]{1,0:T(8,128)}', space=vmem, size = 0x1000, scoped, tag = 'scratch operand']
  %s0 = inlined_call_operand.hbm [shape: f32[8,8,128], index: 0, kind: input, shape index: {}]
  %s1 = inlined_call_operand.hbm [shape: f32[2,128,384], index: 1, kind: input, shape index: {}]
  %s2 = inlined_call_operand.hbm [shape: f32[2,128,384], index: 2, kind: input, shape index: {}]
  %s3 = inlined_call_operand.hbm [shape: f32[2,1,384], index: 3, kind: input, shape index: {}]
  %s4 = inlined_call_operand.vmem [shape: f32[2,1,128], index: 4, kind: input, shape index: {}]
  %s5 = inlined_call_operand.hbm [shape: f32[128,128], index: 5, kind: input, shape index: {}]
  %s6 = inlined_call_operand.vmem [shape: f32[1,128], index: 6, kind: input, shape index: {}]
  %s7 = inlined_call_operand.hbm [shape: f32[8,128], index: 7, kind: output, shape index: {}]
  %s8 = sld [smem:[#allocation0]]
  $region58: #{tpu_custom_call.1} parent=0
    _
  %s10 = ssub.s32 1, %s8
  %s11 = scalar_select 0, %s10, %s8
  $region1: #{tpu_custom_call.1} parent=0
    #allocation5 [shape = 'u8[32768]{0}', space=vmem, size = 0x8000, scoped, tag = 'input window, operand 0, single buffered']
    #allocation6 [shape = 's32[1]{0}', space=sflag, size = 0x4, scoped, tag = 'scoped memory for tpu_custom_call.1']
    #allocation7 [shape = 's32[1]{0}', space=sflag, size = 0x4, scoped, tag = 'scoped memory for tpu_custom_call.1']
    #allocation8 [shape = 'u8[393216]{0}', space=vmem, size = 0x60000, scoped, tag = 'input window, operand 1, single buffered']
    #allocation9 [shape = 's32[1]{0}', space=sflag, size = 0x4, scoped, tag = 'scoped memory for tpu_custom_call.1']
    #allocation10 [shape = 'u8[393216]{0}', space=vmem, size = 0x60000, scoped, tag = 'input window, operand 2, single buffered']
    #allocation11 [shape = 'u8[3072]{0}', space=vmem, size = 0xc00, scoped, tag = 'input window, operand 3, single buffered']
    #allocation12 [shape = 's32[1]{0}', space=sflag, size = 0x4, scoped, tag = 'scoped memory for tpu_custom_call.1']
    #allocation13 [shape = 'u8[65536]{0}', space=vmem, size = 0x10000, scoped, tag = 'input window, operand 5, single buffered']
    #allocation14 [shape = 'u8[4096]{0}', space=vmem, size = 0x1000, scoped, tag = 'output window, operand 0, single buffered']
    %12 = vsyncpa [#allocation6], 0
    %13 = vsyncpa [#allocation9], 0
    %14 = vsyncpa [#allocation12], 0
    %15 = vsyncpa [#allocation7], 0
    // Predicated region
    $region2: #{tpu_custom_call.1} parent=1 // pred_check
      _
    $region3: #{tpu_custom_call.1} parent=1 // pred_check_branch
      %17 = sbr.rel (0) target = $region5
    $region4: #{tpu_custom_call.1} parent=1 // pred_region
      %19 = vsyncadd [#allocation6], 0
      %s20 = sshll.u32 %s0, 4
      %s21 = int_to_ptr.hbm [resolvable:$true] %s20
      %s22 = sshll.u32 [#allocation5], 4
      %s23 = int_to_ptr.vmem [resolvable:$true] %s22
      %28 = dma.hbm_to_vmem [thread:$0]  %s21, 1024, %s23, [#allocation6], 128, 128, 8
    $region5: #{tpu_custom_call.1} parent=1 // pred_fallthru
      _
    // Predicated region
    $region6: #{tpu_custom_call.1} parent=1 // pred_check
      _
    $region7: #{tpu_custom_call.1} parent=1 // pred_check_branch
      %30 = sbr.rel (0) target = $region9
    $region8: #{tpu_custom_call.1} parent=1 // pred_region
      %32 = vsyncadd [#allocation9], 0
      %s33 = sshll.u32 %s1, 4
      %s34 = int_to_ptr.hbm [resolvable:$true] %s33
      %s35 = sshll.u32 [#allocation8], 4
      %s36 = int_to_ptr.vmem [resolvable:$true] %s35
      %41 = dma.hbm_to_vmem [thread:$0]  %s34, 12288, %s36, [#allocation9], 384, 384, 24
    $region9: #{tpu_custom_call.1} parent=1 // pred_fallthru
      _
    // Predicated region
    $region10: #{tpu_custom_call.1} parent=1 // pred_check
      _
    $region11: #{tpu_custom_call.1} parent=1 // pred_check_branch
      %43 = sbr.rel (0) target = $region13
    $region12: #{tpu_custom_call.1} parent=1 // pred_region
      %45 = vsyncadd [#allocation9], 0
      %s46 = sshll.u32 %s2, 4
      %s47 = int_to_ptr.hbm [resolvable:$true] %s46
      %s48 = sshll.u32 [#allocation10], 4
      %s49 = int_to_ptr.vmem [resolvable:$true] %s48
      %54 = dma.hbm_to_vmem [thread:$0]  %s47, 12288, %s49, [#allocation9], 384, 384, 24
    $region13: #{tpu_custom_call.1} parent=1 // pred_fallthru
      _
    // Predicated region
    $region14: #{tpu_custom_call.1} parent=1 // pred_check
      _
    $region15: #{tpu_custom_call.1} parent=1 // pred_check_branch
      %56 = sbr.rel (0) target = $region17
    $region16: #{tpu_custom_call.1} parent=1 // pred_region
      %58 = vsyncadd [#allocation12], 0
      %s59 = sshll.u32 %s3, 4
      %s60 = int_to_ptr.hbm [resolvable:$true] %s59
      %s61 = sshll.u32 [#allocation11], 4
      %s62 = int_to_ptr.vmem [resolvable:$true] %s61
      %67 = dma.hbm_to_vmem [thread:$0]  %s60, 96, %s62, [#allocation12], 48, 48, 3
    $region17: #{tpu_custom_call.1} parent=1 // pred_fallthru
      _
    // Predicated region
    $region18: #{tpu_custom_call.1} parent=1 // pred_check
      _
    $region19: #{tpu_custom_call.1} parent=1 // pred_check_branch
      %69 = sbr.rel (0) target = $region21
    $region20: #{tpu_custom_call.1} parent=1 // pred_region
      _
    $region21: #{tpu_custom_call.1} parent=1 // pred_fallthru
      _
    // Predicated region
    $region22: #{tpu_custom_call.1} parent=1 // pred_check
      _
    $region23: #{tpu_custom_call.1} parent=1 // pred_check_branch
      %71 = sbr.rel (0) target = $region25
    $region24: #{tpu_custom_call.1} parent=1 // pred_region
      %73 = vsyncadd [#allocation12], 0
      %s74 = sshll.u32 %s5, 4
      %s75 = int_to_ptr.hbm [resolvable:$true] %s74
      %s76 = sshll.u32 [#allocation13], 4
      %s77 = int_to_ptr.vmem [resolvable:$true] %s76
      %82 = dma.hbm_to_vmem [thread:$0]  %s75, 2048, %s77, [#allocation12], 128, 128, 8
    $region25: #{tpu_custom_call.1} parent=1 // pred_fallthru
      _
    // Predicated region
    $region26: #{tpu_custom_call.1} parent=1 // pred_check
      _
    $region27: #{tpu_custom_call.1} parent=1 // pred_check_branch
      %84 = sbr.rel (0) target = $region29
    $region28: #{tpu_custom_call.1} parent=1 // pred_region
      _
    $region29: #{tpu_custom_call.1} parent=1 // pred_fallthru
      _
    // Predicated region
    $region30: #{tpu_custom_call.1} parent=1 // pred_check
      _
    $region31: #{tpu_custom_call.1} parent=1 // pred_check_branch
      %86 = sbr.rel (0) target = $region33
    $region32: #{tpu_custom_call.1} parent=1 // pred_region
      %88 = dma.done [#allocation6], 1024
    $region33: #{tpu_custom_call.1} parent=1 // pred_fallthru
      _
    // Predicated region
    $region34: #{tpu_custom_call.1} parent=1 // pred_check
      _
    $region35: #{tpu_custom_call.1} parent=1 // pred_check_branch
      %90 = sbr.rel (0) target = $region37
    $region36: #{tpu_custom_call.1} parent=1 // pred_region
      %92 = dma.done [#allocation9], 12288
    $region37: #{tpu_custom_call.1} parent=1 // pred_fallthru
      _
    // Predicated region
    $region38: #{tpu_custom_call.1} parent=1 // pred_check
      _
    $region39: #{tpu_custom_call.1} parent=1 // pred_check_branch
      %94 = sbr.rel (0) target = $region41
    $region40: #{tpu_custom_call.1} parent=1 // pred_region
      %96 = dma.done [#allocation9], 12288
    $region41: #{tpu_custom_call.1} parent=1 // pred_fallthru
      _
    // Predicated region
    $region42: #{tpu_custom_call.1} parent=1 // pred_check
      _
    $region43: #{tpu_custom_call.1} parent=1 // pred_check_branch
      %98 = sbr.rel (0) target = $region45
    $region44: #{tpu_custom_call.1} parent=1 // pred_region
      %100 = dma.done [#allocation12], 96
    $region45: #{tpu_custom_call.1} parent=1 // pred_fallthru
      _
    // Predicated region
    $region46: #{tpu_custom_call.1} parent=1 // pred_check
      _
    $region47: #{tpu_custom_call.1} parent=1 // pred_check_branch
      %102 = sbr.rel (0) target = $region49
    $region48: #{tpu_custom_call.1} parent=1 // pred_region
      %104 = dma.done [#allocation12], 2048
    $region49: #{tpu_custom_call.1} parent=1 // pred_fallthru
      _
    %v105 = vld [vmem:[#allocation5] sm:$0xff]
    %v106 = vld [vmem:[#allocation5 + $0x8] sm:$0xff]
    %v107 = vld [vmem:[#allocation5 + $0x10] sm:$0xff]
    %v108 = vld [vmem:[#allocation5 + $0x18] sm:$0xff]
    %v109 = vld [vmem:[#allocation5 + $0x20] sm:$0xff]
    %v110 = vld [vmem:[#allocation5 + $0x28] sm:$0xff]
    %v111 = vld [vmem:[#allocation5 + $0x30] sm:$0xff]
    %v112 = vld [vmem:[#allocation5 + $0x38] sm:$0xff]
    %113 = vst [vmem:[#allocation2] sm:$0xff] %v105
    %114 = vst [vmem:[#allocation2 + $0x8] sm:$0xff] %v106
    %115 = vst [vmem:[#allocation2 + $0x10] sm:$0xff] %v107
    %116 = vst [vmem:[#allocation2 + $0x18] sm:$0xff] %v108
    %117 = vst [vmem:[#allocation2 + $0x20] sm:$0xff] %v109
    %118 = vst [vmem:[#allocation2 + $0x28] sm:$0xff] %v110
    %119 = vst [vmem:[#allocation2 + $0x30] sm:$0xff] %v111
    %120 = vst [vmem:[#allocation2 + $0x38] sm:$0xff] %v112
    %v121 = vld [vmem:[#allocation2] sm:$0xff]
    %v122 = vld [vmem:[#allocation2 + $0x8] sm:$0xff]
    %v123 = vld [vmem:[#allocation2 + $0x10] sm:$0xff]
    %v124 = vld [vmem:[#allocation2 + $0x18] sm:$0xff]
    %v125 = vld [vmem:[#allocation2 + $0x20] sm:$0xff]
    %v126 = vld [vmem:[#allocation2 + $0x28] sm:$0xff]
    %v127 = vld [vmem:[#allocation2 + $0x30] sm:$0xff]
    %v128 = vld [vmem:[#allocation2 + $0x38] sm:$0xff]
    %v129 = vld [vmem:[#allocation8] sm:$0xff]
    %v130 = vld [vmem:[#allocation8 + $0x8] sm:$0xff]
    %v131 = vld [vmem:[#allocation8 + $0x10] sm:$0xff]
    %v132 = vld [vmem:[#allocation8 + $0x18] sm:$0xff]
    %v133 = vld [vmem:[#allocation8 + $0x20] sm:$0xff]
    %v134 = vld [vmem:[#allocation8 + $0x28] sm:$0xff]
    %v135 = vld [vmem:[#allocation8 + $0x30] sm:$0xff]
    %v136 = vld [vmem:[#allocation8 + $0x38] sm:$0xff]
    %v137 = vld [vmem:[#allocation8 + $0x40] sm:$0xff]
    %v138 = vld [vmem:[#allocation8 + $0x48] sm:$0xff]
    %v139 = vld [vmem:[#allocation8 + $0x50] sm:$0xff]
    %v140 = vld [vmem:[#allocation8 + $0x58] sm:$0xff]
    %v141 = vld [vmem:[#allocation8 + $0x60] sm:$0xff]
    %v142 = vld [vmem:[#allocation8 + $0x68] sm:$0xff]
    %v143 = vld [vmem:[#allocation8 + $0x70] sm:$0xff]
    %v144 = vld [vmem:[#allocation8 + $0x78] sm:$0xff]
    %v145 = vld [vmem:[#allocation8 + $0x80] sm:$0xff]
    %v146 = vld [vmem:[#allocation8 + $0x88] sm:$0xff]
    %v147 = vld [vmem:[#allocation8 + $0x90] sm:$0xff]
    %v148 = vld [vmem:[#allocation8 + $0x98] sm:$0xff]
    %v149 = vld [vmem:[#allocation8 + $0xa0] sm:$0xff]
    %v150 = vld [vmem:[#allocation8 + $0xa8] sm:$0xff]
    %v151 = vld [vmem:[#allocation8 + $0xb0] sm:$0xff]
    %v152 = vld [vmem:[#allocation8 + $0xb8] sm:$0xff]
    %v153 = vld [vmem:[#allocation8 + $0xc0] sm:$0xff]
    %v154 = vld [vmem:[#allocation8 + $0xc8] sm:$0xff]
    %v155 = vld [vmem:[#allocation8 + $0xd0] sm:$0xff]
    %v156 = vld [vmem:[#allocation8 + $0xd8] sm:$0xff]
    %v157 = vld [vmem:[#allocation8 + $0xe0] sm:$0xff]
    %v158 = vld [vmem:[#allocation8 + $0xe8] sm:$0xff]
    %v159 = vld [vmem:[#allocation8 + $0xf0] sm:$0xff]
    %v160 = vld [vmem:[#allocation8 + $0xf8] sm:$0xff]
    %v161 = vld [vmem:[#allocation8 + $0x100] sm:$0xff]
    %v162 = vld [vmem:[#allocation8 + $0x108] sm:$0xff]
    %v163 = vld [vmem:[#allocation8 + $0x110] sm:$0xff]
    %v164 = vld [vmem:[#allocation8 + $0x118] sm:$0xff]
    %v165 = vld [vmem:[#allocation8 + $0x120] sm:$0xff]
    %v166 = vld [vmem:[#allocation8 + $0x128] sm:$0xff]
    %v167 = vld [vmem:[#allocation8 + $0x130] sm:$0xff]
    %v168 = vld [vmem:[#allocation8 + $0x138] sm:$0xff]
    %v169 = vld [vmem:[#allocation8 + $0x140] sm:$0xff]
    %v170 = vld [vmem:[#allocation8 + $0x148] sm:$0xff]
    %v171 = vld [vmem:[#allocation8 + $0x150] sm:$0xff]
    %v172 = vld [vmem:[#allocation8 + $0x158] sm:$0xff]
    %v173 = vld [vmem:[#allocation8 + $0x160] sm:$0xff]
    %v174 = vld [vmem:[#allocation8 + $0x168] sm:$0xff]
    %v175 = vld [vmem:[#allocation8 + $0x170] sm:$0xff]
    %v176 = vld [vmem:[#allocation8 + $0x178] sm:$0xff]
    %v177 = vld [vmem:[#allocation11] sm:$0x7]
    %v179 = vperm.slane %v177, 0
    %v180 = vperm.slane %v177, 1
    %v181 = vperm.slane %v177, 2
    %185 = vmatpush.msra.mxu0 %v174
    %186 = vmatpush.msra.mxu0 %v171
    %187 = vmatpush.msra.mxu0 %v168
    %188 = vmatpush.msra.mxu0 %v165
    %189 = vmatpush.msra.mxu0 %v162
    %190 = vmatpush.msra.mxu0 %v159
    %191 = vmatpush.msra.mxu0 %v156
    %192 = vmatpush.msra.mxu0 %v153
    %193 = vmatpush.msra.mxu0 %v150
    %194 = vmatpush.msra.mxu0 %v147
    %195 = vmatpush.msra.mxu0 %v144
    %196 = vmatpush.msra.mxu0 %v141
    %197 = vmatpush.msra.mxu0 %v138
    %198 = vmatpush.msra.mxu0 %v135
    %199 = vmatpush.msra.mxu0 %v132
    %200 = vmatpush.msra.mxu0 %v129
    %201 = vmatmul.f32.gmra.mxu0 %v121
    %v202 = vpop.f32.mrf.mxu0
    %v203 = vadd.f32 %v179, %v202
    %204 = vmatmul.f32.gmra.mxu0 %v122
    %v205 = vpop.f32.mrf.mxu0
    %v206 = vadd.f32 %v179, %v205
    %207 = vmatmul.f32.gmra.mxu0 %v123
    %v208 = vpop.f32.mrf.mxu0
    %v209 = vadd.f32 %v179, %v208
    %210 = vmatmul.f32.gmra.mxu0 %v124
    %v211 = vpop.f32.mrf.mxu0
    %v212 = vadd.f32 %v179, %v211
    %213 = vmatmul.f32.gmra.mxu0 %v125
    %v214 = vpop.f32.mrf.mxu0
    %v215 = vadd.f32 %v179, %v214
    %216 = vmatmul.f32.gmra.mxu0 %v126
    %v217 = vpop.f32.mrf.mxu0
    %v218 = vadd.f32 %v179, %v217
    %219 = vmatmul.f32.gmra.mxu0 %v127
    %v220 = vpop.f32.mrf.mxu0
    %v221 = vadd.f32 %v179, %v220
    %222 = vmatmul.f32.gmra.mxu0 %v128
    %v223 = vpop.f32.mrf.mxu0
    %v224 = vadd.f32 %v179, %v223
    %225 = vdwg.mxu0
    %226 = vmatpush.msra.mxu0 %v175
    %227 = vmatpush.msra.mxu0 %v172
    %228 = vmatpush.msra.mxu0 %v169
    %229 = vmatpush.msra.mxu0 %v166
    %230 = vmatpush.msra.mxu0 %v163
    %231 = vmatpush.msra.mxu0 %v160
    %232 = vmatpush.msra.mxu0 %v157
    %233 = vmatpush.msra.mxu0 %v154
    %234 = vmatpush.msra.mxu0 %v151
    %235 = vmatpush.msra.mxu0 %v148
    %236 = vmatpush.msra.mxu0 %v145
    %237 = vmatpush.msra.mxu0 %v142
    %238 = vmatpush.msra.mxu0 %v139
    %239 = vmatpush.msra.mxu0 %v136
    %240 = vmatpush.msra.mxu0 %v133
    %241 = vmatpush.msra.mxu0 %v130
    %242 = vmatmul.f32.gmra.mxu0 %v121
    %v243 = vpop.f32.mrf.mxu0
    %v244 = vadd.f32 %v180, %v243
    %245 = vmatmul.f32.gmra.mxu0 %v122
    %v246 = vpop.f32.mrf.mxu0
    %v247 = vadd.f32 %v180, %v246
    %248 = vmatmul.f32.gmra.mxu0 %v123
    %v249 = vpop.f32.mrf.mxu0
    %v250 = vadd.f32 %v180, %v249
    %251 = vmatmul.f32.gmra.mxu0 %v124
    %v252 = vpop.f32.mrf.mxu0
    %v253 = vadd.f32 %v180, %v252
    %254 = vmatmul.f32.gmra.mxu0 %v125
    %v255 = vpop.f32.mrf.mxu0
    %v256 = vadd.f32 %v180, %v255
    %257 = vmatmul.f32.gmra.mxu0 %v126
    %v258 = vpop.f32.mrf.mxu0
    %v259 = vadd.f32 %v180, %v258
    %260 = vmatmul.f32.gmra.mxu0 %v127
    %v261 = vpop.f32.mrf.mxu0
    %v262 = vadd.f32 %v180, %v261
    %263 = vmatmul.f32.gmra.mxu0 %v128
    %v264 = vpop.f32.mrf.mxu0
    %v265 = vadd.f32 %v180, %v264
    %266 = vdwg.mxu0
    %267 = vmatpush.msra.mxu0 %v176
    %268 = vmatpush.msra.mxu0 %v173
    %269 = vmatpush.msra.mxu0 %v170
    %270 = vmatpush.msra.mxu0 %v167
    %271 = vmatpush.msra.mxu0 %v164
    %272 = vmatpush.msra.mxu0 %v161
    %273 = vmatpush.msra.mxu0 %v158
    %274 = vmatpush.msra.mxu0 %v155
    %275 = vmatpush.msra.mxu0 %v152
    %276 = vmatpush.msra.mxu0 %v149
    %277 = vmatpush.msra.mxu0 %v146
    %278 = vmatpush.msra.mxu0 %v143
    %279 = vmatpush.msra.mxu0 %v140
    %280 = vmatpush.msra.mxu0 %v137
    %281 = vmatpush.msra.mxu0 %v134
    %282 = vmatpush.msra.mxu0 %v131
    %283 = vmatmul.f32.gmra.mxu0 %v121
    %v284 = vpop.f32.mrf.mxu0
    %v285 = vadd.f32 %v181, %v284
    %286 = vmatmul.f32.gmra.mxu0 %v122
    %v287 = vpop.f32.mrf.mxu0
    %v288 = vadd.f32 %v181, %v287
    %289 = vmatmul.f32.gmra.mxu0 %v123
    %v290 = vpop.f32.mrf.mxu0
    %v291 = vadd.f32 %v181, %v290
    %292 = vmatmul.f32.gmra.mxu0 %v124
    %v293 = vpop.f32.mrf.mxu0
    %v294 = vadd.f32 %v181, %v293
    %295 = vmatmul.f32.gmra.mxu0 %v125
    %v296 = vpop.f32.mrf.mxu0
    %v297 = vadd.f32 %v181, %v296
    %298 = vmatmul.f32.gmra.mxu0 %v126
    %v299 = vpop.f32.mrf.mxu0
    %v300 = vadd.f32 %v181, %v299
    %301 = vmatmul.f32.gmra.mxu0 %v127
    %v302 = vpop.f32.mrf.mxu0
    %v303 = vadd.f32 %v181, %v302
    %304 = vmatmul.f32.gmra.mxu0 %v128
    %v305 = vpop.f32.mrf.mxu0
    %v306 = vadd.f32 %v181, %v305
    %307 = vdwg.mxu0
    %308 = vst [vmem:[#allocation3] sm:$0xff] %v203
    %309 = vst [vmem:[#allocation3 + $0x8] sm:$0xff] %v244
    %310 = vst [vmem:[#allocation3 + $0x10] sm:$0xff] %v285
    %311 = vst [vmem:[#allocation3 + $0x18] sm:$0xff] %v206
    %312 = vst [vmem:[#allocation3 + $0x20] sm:$0xff] %v247
    %313 = vst [vmem:[#allocation3 + $0x28] sm:$0xff] %v288
    %314 = vst [vmem:[#allocation3 + $0x30] sm:$0xff] %v209
    %315 = vst [vmem:[#allocation3 + $0x38] sm:$0xff] %v250
    %316 = vst [vmem:[#allocation3 + $0x40] sm:$0xff] %v291
    %317 = vst [vmem:[#allocation3 + $0x48] sm:$0xff] %v212
    %318 = vst [vmem:[#allocation3 + $0x50] sm:$0xff] %v253
    %319 = vst [vmem:[#allocation3 + $0x58] sm:$0xff] %v294
    %320 = vst [vmem:[#allocation3 + $0x60] sm:$0xff] %v215
    %321 = vst [vmem:[#allocation3 + $0x68] sm:$0xff] %v256
    %322 = vst [vmem:[#allocation3 + $0x70] sm:$0xff] %v297
    %323 = vst [vmem:[#allocation3 + $0x78] sm:$0xff] %v218
    %324 = vst [vmem:[#allocation3 + $0x80] sm:$0xff] %v259
    %325 = vst [vmem:[#allocation3 + $0x88] sm:$0xff] %v300
    %326 = vst [vmem:[#allocation3 + $0x90] sm:$0xff] %v221
    %327 = vst [vmem:[#allocation3 + $0x98] sm:$0xff] %v262
    %328 = vst [vmem:[#allocation3 + $0xa0] sm:$0xff] %v303
    %329 = vst [vmem:[#allocation3 + $0xa8] sm:$0xff] %v224
    %330 = vst [vmem:[#allocation3 + $0xb0] sm:$0xff] %v265
    %331 = vst [vmem:[#allocation3 + $0xb8] sm:$0xff] %v306
    %332 = vst [vmem:[#allocation4] sm:$0xff] 0.0
    %v333 = vld [vmem:[#allocation10] sm:$0xff]
    %v334 = vld [vmem:[#allocation10 + $0x8] sm:$0xff]
    %v335 = vld [vmem:[#allocation10 + $0x10] sm:$0xff]
    %v336 = vld [vmem:[#allocation10 + $0x18] sm:$0xff]
    %v337 = vld [vmem:[#allocation10 + $0x20] sm:$0xff]
    %v338 = vld [vmem:[#allocation10 + $0x28] sm:$0xff]
    %v339 = vld [vmem:[#allocation10 + $0x30] sm:$0xff]
    %v340 = vld [vmem:[#allocation10 + $0x38] sm:$0xff]
    %v341 = vld [vmem:[#allocation10 + $0x40] sm:$0xff]
    %v342 = vld [vmem:[#allocation10 + $0x48] sm:$0xff]
    %v343 = vld [vmem:[#allocation10 + $0x50] sm:$0xff]
    %v344 = vld [vmem:[#allocation10 + $0x58] sm:$0xff]
    %v345 = vld [vmem:[#allocation10 + $0x60] sm:$0xff]
    %v346 = vld [vmem:[#allocation10 + $0x68] sm:$0xff]
    %v347 = vld [vmem:[#allocation10 + $0x70] sm:$0xff]
    %v348 = vld [vmem:[#allocation10 + $0x78] sm:$0xff]
    %v349 = vld [vmem:[#allocation10 + $0x80] sm:$0xff]
    %v350 = vld [vmem:[#allocation10 + $0x88] sm:$0xff]
    %v351 = vld [vmem:[#allocation10 + $0x90] sm:$0xff]
    %v352 = vld [vmem:[#allocation10 + $0x98] sm:$0xff]
    %v353 = vld [vmem:[#allocation10 + $0xa0] sm:$0xff]
    %v354 = vld [vmem:[#allocation10 + $0xa8] sm:$0xff]
    %v355 = vld [vmem:[#allocation10 + $0xb0] sm:$0xff]
    %v356 = vld [vmem:[#allocation10 + $0xb8] sm:$0xff]
    %v357 = vld [vmem:[#allocation10 + $0xc0] sm:$0xff]
    %v358 = vld [vmem:[#allocation10 + $0xc8] sm:$0xff]
    %v359 = vld [vmem:[#allocation10 + $0xd0] sm:$0xff]
    %v360 = vld [vmem:[#allocation10 + $0xd8] sm:$0xff]
    %v361 = vld [vmem:[#allocation10 + $0xe0] sm:$0xff]
    %v362 = vld [vmem:[#allocation10 + $0xe8] sm:$0xff]
    %v363 = vld [vmem:[#allocation10 + $0xf0] sm:$0xff]
    %v364 = vld [vmem:[#allocation10 + $0xf8] sm:$0xff]
    %v365 = vld [vmem:[#allocation10 + $0x100] sm:$0xff]
    %v366 = vld [vmem:[#allocation10 + $0x108] sm:$0xff]
    %v367 = vld [vmem:[#allocation10 + $0x110] sm:$0xff]
    %v368 = vld [vmem:[#allocation10 + $0x118] sm:$0xff]
    %v369 = vld [vmem:[#allocation10 + $0x120] sm:$0xff]
    %v370 = vld [vmem:[#allocation10 + $0x128] sm:$0xff]
    %v371 = vld [vmem:[#allocation10 + $0x130] sm:$0xff]
    %v372 = vld [vmem:[#allocation10 + $0x138] sm:$0xff]
    %v373 = vld [vmem:[#allocation10 + $0x140] sm:$0xff]
    %v374 = vld [vmem:[#allocation10 + $0x148] sm:$0xff]
    %v375 = vld [vmem:[#allocation10 + $0x150] sm:$0xff]
    %v376 = vld [vmem:[#allocation10 + $0x158] sm:$0xff]
    %v377 = vld [vmem:[#allocation10 + $0x160] sm:$0xff]
    %v378 = vld [vmem:[#allocation10 + $0x168] sm:$0xff]
    %v379 = vld [vmem:[#allocation10 + $0x170] sm:$0xff]
    %v380 = vld [vmem:[#allocation10 + $0x178] sm:$0xff]
    %v381 = vld [vmem:[%s4] sm:$0x1]
    %v382 = vld [vmem:[#allocation4] sm:$0xff]
    %383 = vmatpush.msra.mxu0 %v378
    %384 = vmatpush.msra.mxu0 %v375
    %385 = vmatpush.msra.mxu0 %v372
    %386 = vmatpush.msra.mxu0 %v369
    %387 = vmatpush.msra.mxu0 %v366
    %388 = vmatpush.msra.mxu0 %v363
    %389 = vmatpush.msra.mxu0 %v360
    %390 = vmatpush.msra.mxu0 %v357
    %391 = vmatpush.msra.mxu0 %v354
    %392 = vmatpush.msra.mxu0 %v351
    %393 = vmatpush.msra.mxu0 %v348
    %394 = vmatpush.msra.mxu0 %v345
    %395 = vmatpush.msra.mxu0 %v342
    %396 = vmatpush.msra.mxu0 %v339
    %397 = vmatpush.msra.mxu0 %v336
    %398 = vmatpush.msra.mxu0 %v333
    %399 = vmatmul.f32.gmra.mxu0 %v382
    %v400 = vpop.f32.mrf.mxu0
    %v401 = vadd.f32 0.0, %v400
    %402 = vdwg.mxu0
    %403 = vmatpush.msra.mxu0 %v379
    %404 = vmatpush.msra.mxu0 %v376
    %405 = vmatpush.msra.mxu0 %v373
    %406 = vmatpush.msra.mxu0 %v370
    %407 = vmatpush.msra.mxu0 %v367
    %408 = vmatpush.msra.mxu0 %v364
    %409 = vmatpush.msra.mxu0 %v361
    %410 = vmatpush.msra.mxu0 %v358
    %411 = vmatpush.msra.mxu0 %v355
    %412 = vmatpush.msra.mxu0 %v352
    %413 = vmatpush.msra.mxu0 %v349
    %414 = vmatpush.msra.mxu0 %v346
    %415 = vmatpush.msra.mxu0 %v343
    %416 = vmatpush.msra.mxu0 %v340
    %417 = vmatpush.msra.mxu0 %v337
    %418 = vmatpush.msra.mxu0 %v334
    %419 = vmatmul.f32.gmra.mxu0 %v382
    %v420 = vpop.f32.mrf.mxu0
    %v421 = vadd.f32 0.0, %v420
    %422 = vdwg.mxu0
    %423 = vmatpush.msra.mxu0 %v380
    %424 = vmatpush.msra.mxu0 %v377
    %425 = vmatpush.msra.mxu0 %v374
    %426 = vmatpush.msra.mxu0 %v371
    %427 = vmatpush.msra.mxu0 %v368
    %428 = vmatpush.msra.mxu0 %v365
    %429 = vmatpush.msra.mxu0 %v362
    %430 = vmatpush.msra.mxu0 %v359
    %431 = vmatpush.msra.mxu0 %v356
    %432 = vmatpush.msra.mxu0 %v353
    %433 = vmatpush.msra.mxu0 %v350
    %434 = vmatpush.msra.mxu0 %v347
    %435 = vmatpush.msra.mxu0 %v344
    %436 = vmatpush.msra.mxu0 %v341
    %437 = vmatpush.msra.mxu0 %v338
    %438 = vmatpush.msra.mxu0 %v335
    %439 = vmatmul.f32.gmra.mxu0 %v382
    %v440 = vpop.f32.mrf.mxu0
    %v441 = vadd.f32 0.0, %v440
    %442 = vdwg.mxu0
    %v443 = vld [vmem:[#allocation3] sm:$0xff]
    %v444 = vld [vmem:[#allocation3 + $0x8] sm:$0xff]
    %v445 = vld [vmem:[#allocation3 + $0x10] sm:$0xff]
    %v446 = vadd.f32 %v443, %v401
    %v447 = vadd.f32 %v444, %v421
    %v448 = vxor.u32 %v446, 2147483648
    %v449 = vxor.u32 %v447, 2147483648
    %v450 = vmul.f32 %v448, 1.442695
    %v451 = vpow.pop %v450
    %v452 = vmul.f32 %v449, 1.442695
    %v453 = vpow.pop %v452
    %v454 = vadd.f32 %v451, 1.0
    %v455 = vadd.f32 %v453, 1.0
    %v456 = vrcp.pop %v454
    %v457 = vmul.f32 %v454, %v456
    %v458 = vsub.f32 1.0, %v457
    %v459 = vmul.f32 %v456, %v458
    %v460 = vadd.f32 %v456, %v459
    %vm461 = vweird.f32 %v454
    %vm462 = vweird.f32 %v456
    %vm463 = vmor %vm461, %vm462
    %v464 = vsel %vm463, %v456, %v460
    %v465 = vand.u32 2147483647, %v454
    %vm466 = vcmp.eq.f32.partialorder %v465, 8.507059e+37
    %v467 = vand.u32 %v454, 2147483648
    %v468 = vor.u32 1.1754944e-38, %v467
    %v469 = vsel %vm466, %v468, %v464
    %v470 = vmul.f32 1.0, %v469
    %v471 = vrcp.pop %v455
    %v472 = vmul.f32 %v455, %v471
    %v473 = vsub.f32 1.0, %v472
    %v474 = vmul.f32 %v471, %v473
    %v475 = vadd.f32 %v471, %v474
    %vm476 = vweird.f32 %v455
    %vm477 = vweird.f32 %v471
    %vm478 = vmor %vm476, %vm477
    %v479 = vsel %vm478, %v471, %v475
    %v480 = vand.u32 2147483647, %v455
    %vm481 = vcmp.eq.f32.partialorder %v480, 8.507059e+37
    %v482 = vand.u32 %v455, 2147483648
    %v483 = vor.u32 1.1754944e-38, %v482
    %v484 = vsel %vm481, %v483, %v479
    %v485 = vmul.f32 1.0, %v484
    %v487 = vperm.slane %v381, 0
    %v489 = vadd.f32 %v441, %v487
    %v490 = vmul.f32 %v470, %v489
    %v491 = vadd.f32 %v445, %v490
    %v492 = vtanh.pop %v491
    %v493 = vsub.f32 1.0, %v485
    %v494 = vmul.f32 %v493, %v492
    %v495 = vmul.f32 %v485, %v382
    %v496 = vadd.f32 %v494, %v495
    %497 = vst [vmem:[#allocation4] sm:$0xff] %v496
    %498 = vst [vmem:[#allocation2] sm:$0xff] %v496
    %v499 = vld [vmem:[#allocation4] sm:$0xff]
    %500 = vmatpush.msra.mxu0 %v378
    %501 = vmatpush.msra.mxu0 %v375
    %502 = vmatpush.msra.mxu0 %v372
    %503 = vmatpush.msra.mxu0 %v369
    %504 = vmatpush.msra.mxu0 %v366
    %505 = vmatpush.msra.mxu0 %v363
    %506 = vmatpush.msra.mxu0 %v360
    %507 = vmatpush.msra.mxu0 %v357
    %508 = vmatpush.msra.mxu0 %v354
    %509 = vmatpush.msra.mxu0 %v351
    %510 = vmatpush.msra.mxu0 %v348
    %511 = vmatpush.msra.mxu0 %v345
    %512 = vmatpush.msra.mxu0 %v342
    %513 = vmatpush.msra.mxu0 %v339
    %514 = vmatpush.msra.mxu0 %v336
    %515 = vmatpush.msra.mxu0 %v333
    %516 = vmatmul.f32.gmra.mxu0 %v499
    %v517 = vpop.f32.mrf.mxu0
    %v518 = vadd.f32 0.0, %v517
    %519 = vdwg.mxu0
    %520 = vmatpush.msra.mxu0 %v379
    %521 = vmatpush.msra.mxu0 %v376
    %522 = vmatpush.msra.mxu0 %v373
    %523 = vmatpush.msra.mxu0 %v370
    %524 = vmatpush.msra.mxu0 %v367
    %525 = vmatpush.msra.mxu0 %v364
    %526 = vmatpush.msra.mxu0 %v361
    %527 = vmatpush.msra.mxu0 %v358
    %528 = vmatpush.msra.mxu0 %v355
    %529 = vmatpush.msra.mxu0 %v352
    %530 = vmatpush.msra.mxu0 %v349
    %531 = vmatpush.msra.mxu0 %v346
    %532 = vmatpush.msra.mxu0 %v343
    %533 = vmatpush.msra.mxu0 %v340
    %534 = vmatpush.msra.mxu0 %v337
    %535 = vmatpush.msra.mxu0 %v334
    %536 = vmatmul.f32.gmra.mxu0 %v499
    %v537 = vpop.f32.mrf.mxu0
    %v538 = vadd.f32 0.0, %v537
    %539 = vdwg.mxu0
    %540 = vmatpush.msra.mxu0 %v380
    %541 = vmatpush.msra.mxu0 %v377
    %542 = vmatpush.msra.mxu0 %v374
    %543 = vmatpush.msra.mxu0 %v371
    %544 = vmatpush.msra.mxu0 %v368
    %545 = vmatpush.msra.mxu0 %v365
    %546 = vmatpush.msra.mxu0 %v362
    %547 = vmatpush.msra.mxu0 %v359
    %548 = vmatpush.msra.mxu0 %v356
    %549 = vmatpush.msra.mxu0 %v353
    %550 = vmatpush.msra.mxu0 %v350
    %551 = vmatpush.msra.mxu0 %v347
    %552 = vmatpush.msra.mxu0 %v344
    %553 = vmatpush.msra.mxu0 %v341
    %554 = vmatpush.msra.mxu0 %v338
    %555 = vmatpush.msra.mxu0 %v335
    %556 = vmatmul.f32.gmra.mxu0 %v499
    %v557 = vpop.f32.mrf.mxu0
    %v558 = vadd.f32 0.0, %v557
    %559 = vdwg.mxu0
    %s560 = scalar_lea.vmem [#allocation3], 24
    %v561 = vld [vmem:[%s560] sm:$0xff]
    %v562 = vld [vmem:[%s560 + $0x8] sm:$0xff]
    %v563 = vld [vmem:[%s560 + $0x10] sm:$0xff]
    %v564 = vadd.f32 %v561, %v518
    %v565 = vadd.f32 %v562, %v538
    %v566 = vxor.u32 %v564, 2147483648
    %v567 = vxor.u32 %v565, 2147483648
    %v568 = vmul.f32 %v566, 1.442695
    %v569 = vpow.pop %v568
    %v570 = vmul.f32 %v567, 1.442695
    %v571 = vpow.pop %v570
    %v572 = vadd.f32 %v569, 1.0
    %v573 = vadd.f32 %v571, 1.0
    %v574 = vrcp.pop %v572
    %v575 = vmul.f32 %v572, %v574
    %v576 = vsub.f32 1.0, %v575
    %v577 = vmul.f32 %v574, %v576
    %v578 = vadd.f32 %v574, %v577
    %vm579 = vweird.f32 %v572
    %vm580 = vweird.f32 %v574
    %vm581 = vmor %vm579, %vm580
    %v582 = vsel %vm581, %v574, %v578
    %v583 = vand.u32 2147483647, %v572
    %vm584 = vcmp.eq.f32.partialorder %v583, 8.507059e+37
    %v585 = vand.u32 %v572, 2147483648
    %v586 = vor.u32 1.1754944e-38, %v585
    %v587 = vsel %vm584, %v586, %v582
    %v588 = vmul.f32 1.0, %v587
    %v589 = vrcp.pop %v573
    %v590 = vmul.f32 %v573, %v589
    %v591 = vsub.f32 1.0, %v590
    %v592 = vmul.f32 %v589, %v591
    %v593 = vadd.f32 %v589, %v592
    %vm594 = vweird.f32 %v573
    %vm595 = vweird.f32 %v589
    %vm596 = vmor %vm594, %vm595
    %v597 = vsel %vm596, %v589, %v593
    %v598 = vand.u32 2147483647, %v573
    %vm599 = vcmp.eq.f32.partialorder %v598, 8.507059e+37
    %v600 = vand.u32 %v573, 2147483648
    %v601 = vor.u32 1.1754944e-38, %v600
    %v602 = vsel %vm599, %v601, %v597
    %v603 = vmul.f32 1.0, %v602
    %v604 = vadd.f32 %v558, %v487
    %v605 = vmul.f32 %v588, %v604
    %v606 = vadd.f32 %v563, %v605
    %v607 = vtanh.pop %v606
    %v608 = vsub.f32 1.0, %v603
    %v609 = vmul.f32 %v608, %v607
    %v610 = vmul.f32 %v603, %v499
    %v611 = vadd.f32 %v609, %v610
    %612 = vst [vmem:[#allocation4] sm:$0xff] %v611
    %s613 = scalar_lea.vmem [#allocation2], 8
    %614 = vst [vmem:[%s613] sm:$0xff] %v611
    %v615 = vld [vmem:[#allocation4] sm:$0xff]
    %616 = vmatpush.msra.mxu0 %v378
    %617 = vmatpush.msra.mxu0 %v375
    %618 = vmatpush.msra.mxu0 %v372
    %619 = vmatpush.msra.mxu0 %v369
    %620 = vmatpush.msra.mxu0 %v366
    %621 = vmatpush.msra.mxu0 %v363
    %622 = vmatpush.msra.mxu0 %v360
    %623 = vmatpush.msra.mxu0 %v357
    %624 = vmatpush.msra.mxu0 %v354
    %625 = vmatpush.msra.mxu0 %v351
    %626 = vmatpush.msra.mxu0 %v348
    %627 = vmatpush.msra.mxu0 %v345
    %628 = vmatpush.msra.mxu0 %v342
    %629 = vmatpush.msra.mxu0 %v339
    %630 = vmatpush.msra.mxu0 %v336
    %631 = vmatpush.msra.mxu0 %v333
    %632 = vmatmul.f32.gmra.mxu0 %v615
    %v633 = vpop.f32.mrf.mxu0
    %v634 = vadd.f32 0.0, %v633
    %635 = vdwg.mxu0
    %636 = vmatpush.msra.mxu0 %v379
    %637 = vmatpush.msra.mxu0 %v376
    %638 = vmatpush.msra.mxu0 %v373
    %639 = vmatpush.msra.mxu0 %v370
    %640 = vmatpush.msra.mxu0 %v367
    %641 = vmatpush.msra.mxu0 %v364
    %642 = vmatpush.msra.mxu0 %v361
    %643 = vmatpush.msra.mxu0 %v358
    %644 = vmatpush.msra.mxu0 %v355
    %645 = vmatpush.msra.mxu0 %v352
    %646 = vmatpush.msra.mxu0 %v349
    %647 = vmatpush.msra.mxu0 %v346
    %648 = vmatpush.msra.mxu0 %v343
    %649 = vmatpush.msra.mxu0 %v340
    %650 = vmatpush.msra.mxu0 %v337
    %651 = vmatpush.msra.mxu0 %v334
    %652 = vmatmul.f32.gmra.mxu0 %v615
    %v653 = vpop.f32.mrf.mxu0
    %v654 = vadd.f32 0.0, %v653
    %655 = vdwg.mxu0
    %656 = vmatpush.msra.mxu0 %v380
    %657 = vmatpush.msra.mxu0 %v377
    %658 = vmatpush.msra.mxu0 %v374
    %659 = vmatpush.msra.mxu0 %v371
    %660 = vmatpush.msra.mxu0 %v368
    %661 = vmatpush.msra.mxu0 %v365
    %662 = vmatpush.msra.mxu0 %v362
    %663 = vmatpush.msra.mxu0 %v359
    %664 = vmatpush.msra.mxu0 %v356
    %665 = vmatpush.msra.mxu0 %v353
    %666 = vmatpush.msra.mxu0 %v350
    %667 = vmatpush.msra.mxu0 %v347
    %668 = vmatpush.msra.mxu0 %v344
    %669 = vmatpush.msra.mxu0 %v341
    %670 = vmatpush.msra.mxu0 %v338
    %671 = vmatpush.msra.mxu0 %v335
    %672 = vmatmul.f32.gmra.mxu0 %v615
    %v673 = vpop.f32.mrf.mxu0
    %v674 = vadd.f32 0.0, %v673
    %675 = vdwg.mxu0
    %s676 = scalar_lea.vmem [#allocation3], 48
    %v677 = vld [vmem:[%s676] sm:$0xff]
    %v678 = vld [vmem:[%s676 + $0x8] sm:$0xff]
    %v679 = vld [vmem:[%s676 + $0x10] sm:$0xff]
    %v680 = vadd.f32 %v677, %v634
    %v681 = vadd.f32 %v678, %v654
    %v682 = vxor.u32 %v680, 2147483648
    %v683 = vxor.u32 %v681, 2147483648
    %v684 = vmul.f32 %v682, 1.442695
    %v685 = vpow.pop %v684
    %v686 = vmul.f32 %v683, 1.442695
    %v687 = vpow.pop %v686
    %v688 = vadd.f32 %v685, 1.0
    %v689 = vadd.f32 %v687, 1.0
    %v690 = vrcp.pop %v688
    %v691 = vmul.f32 %v688, %v690
    %v692 = vsub.f32 1.0, %v691
    %v693 = vmul.f32 %v690, %v692
    %v694 = vadd.f32 %v690, %v693
    %vm695 = vweird.f32 %v688
    %vm696 = vweird.f32 %v690
    %vm697 = vmor %vm695, %vm696
    %v698 = vsel %vm697, %v690, %v694
    %v699 = vand.u32 2147483647, %v688
    %vm700 = vcmp.eq.f32.partialorder %v699, 8.507059e+37
    %v701 = vand.u32 %v688, 2147483648
    %v702 = vor.u32 1.1754944e-38, %v701
    %v703 = vsel %vm700, %v702, %v698
    %v704 = vmul.f32 1.0, %v703
    %v705 = vrcp.pop %v689
    %v706 = vmul.f32 %v689, %v705
    %v707 = vsub.f32 1.0, %v706
    %v708 = vmul.f32 %v705, %v707
    %v709 = vadd.f32 %v705, %v708
    %vm710 = vweird.f32 %v689
    %vm711 = vweird.f32 %v705
    %vm712 = vmor %vm710, %vm711
    %v713 = vsel %vm712, %v705, %v709
    %v714 = vand.u32 2147483647, %v689
    %vm715 = vcmp.eq.f32.partialorder %v714, 8.507059e+37
    %v716 = vand.u32 %v689, 2147483648
    %v717 = vor.u32 1.1754944e-38, %v716
    %v718 = vsel %vm715, %v717, %v713
    %v719 = vmul.f32 1.0, %v718
    %v720 = vadd.f32 %v674, %v487
    %v721 = vmul.f32 %v704, %v720
    %v722 = vadd.f32 %v679, %v721
    %v723 = vtanh.pop %v722
    %v724 = vsub.f32 1.0, %v719
    %v725 = vmul.f32 %v724, %v723
    %v726 = vmul.f32 %v719, %v615
    %v727 = vadd.f32 %v725, %v726
    %728 = vst [vmem:[#allocation4] sm:$0xff] %v727
    %s729 = scalar_lea.vmem [#allocation2], 16
    %730 = vst [vmem:[%s729] sm:$0xff] %v727
    %v731 = vld [vmem:[#allocation4] sm:$0xff]
    %732 = vmatpush.msra.mxu0 %v378
    %733 = vmatpush.msra.mxu0 %v375
    %734 = vmatpush.msra.mxu0 %v372
    %735 = vmatpush.msra.mxu0 %v369
    %736 = vmatpush.msra.mxu0 %v366
    %737 = vmatpush.msra.mxu0 %v363
    %738 = vmatpush.msra.mxu0 %v360
    %739 = vmatpush.msra.mxu0 %v357
    %740 = vmatpush.msra.mxu0 %v354
    %741 = vmatpush.msra.mxu0 %v351
    %742 = vmatpush.msra.mxu0 %v348
    %743 = vmatpush.msra.mxu0 %v345
    %744 = vmatpush.msra.mxu0 %v342
    %745 = vmatpush.msra.mxu0 %v339
    %746 = vmatpush.msra.mxu0 %v336
    %747 = vmatpush.msra.mxu0 %v333
    %748 = vmatmul.f32.gmra.mxu0 %v731
    %v749 = vpop.f32.mrf.mxu0
    %v750 = vadd.f32 0.0, %v749
    %751 = vdwg.mxu0
    %752 = vmatpush.msra.mxu0 %v379
    %753 = vmatpush.msra.mxu0 %v376
    %754 = vmatpush.msra.mxu0 %v373
    %755 = vmatpush.msra.mxu0 %v370
    %756 = vmatpush.msra.mxu0 %v367
    %757 = vmatpush.msra.mxu0 %v364
    %758 = vmatpush.msra.mxu0 %v361
    %759 = vmatpush.msra.mxu0 %v358
    %760 = vmatpush.msra.mxu0 %v355
    %761 = vmatpush.msra.mxu0 %v352
    %762 = vmatpush.msra.mxu0 %v349
    %763 = vmatpush.msra.mxu0 %v346
    %764 = vmatpush.msra.mxu0 %v343
    %765 = vmatpush.msra.mxu0 %v340
    %766 = vmatpush.msra.mxu0 %v337
    %767 = vmatpush.msra.mxu0 %v334
    %768 = vmatmul.f32.gmra.mxu0 %v731
    %v769 = vpop.f32.mrf.mxu0
    %v770 = vadd.f32 0.0, %v769
    %771 = vdwg.mxu0
    %772 = vmatpush.msra.mxu0 %v380
    %773 = vmatpush.msra.mxu0 %v377
    %774 = vmatpush.msra.mxu0 %v374
    %775 = vmatpush.msra.mxu0 %v371
    %776 = vmatpush.msra.mxu0 %v368
    %777 = vmatpush.msra.mxu0 %v365
    %778 = vmatpush.msra.mxu0 %v362
    %779 = vmatpush.msra.mxu0 %v359
    %780 = vmatpush.msra.mxu0 %v356
    %781 = vmatpush.msra.mxu0 %v353
    %782 = vmatpush.msra.mxu0 %v350
    %783 = vmatpush.msra.mxu0 %v347
    %784 = vmatpush.msra.mxu0 %v344
    %785 = vmatpush.msra.mxu0 %v341
    %786 = vmatpush.msra.mxu0 %v338
    %787 = vmatpush.msra.mxu0 %v335
    %788 = vmatmul.f32.gmra.mxu0 %v731
    %v789 = vpop.f32.mrf.mxu0
    %v790 = vadd.f32 0.0, %v789
    %791 = vdwg.mxu0
    %s792 = scalar_lea.vmem [#allocation3], 72
    %v793 = vld [vmem:[%s792] sm:$0xff]
    %v794 = vld [vmem:[%s792 + $0x8] sm:$0xff]
    %v795 = vld [vmem:[%s792 + $0x10] sm:$0xff]
    %v796 = vadd.f32 %v793, %v750
    %v797 = vadd.f32 %v794, %v770
    %v798 = vxor.u32 %v796, 2147483648
    %v799 = vxor.u32 %v797, 2147483648
    %v800 = vmul.f32 %v798, 1.442695
    %v801 = vpow.pop %v800
    %v802 = vmul.f32 %v799, 1.442695
    %v803 = vpow.pop %v802
    %v804 = vadd.f32 %v801, 1.0
    %v805 = vadd.f32 %v803, 1.0
    %v806 = vrcp.pop %v804
    %v807 = vmul.f32 %v804, %v806
    %v808 = vsub.f32 1.0, %v807
    %v809 = vmul.f32 %v806, %v808
    %v810 = vadd.f32 %v806, %v809
    %vm811 = vweird.f32 %v804
    %vm812 = vweird.f32 %v806
    %vm813 = vmor %vm811, %vm812
    %v814 = vsel %vm813, %v806, %v810
    %v815 = vand.u32 2147483647, %v804
    %vm816 = vcmp.eq.f32.partialorder %v815, 8.507059e+37
    %v817 = vand.u32 %v804, 2147483648
    %v818 = vor.u32 1.1754944e-38, %v817
    %v819 = vsel %vm816, %v818, %v814
    %v820 = vmul.f32 1.0, %v819
    %v821 = vrcp.pop %v805
    %v822 = vmul.f32 %v805, %v821
    %v823 = vsub.f32 1.0, %v822
    %v824 = vmul.f32 %v821, %v823
    %v825 = vadd.f32 %v821, %v824
    %vm826 = vweird.f32 %v805
    %vm827 = vweird.f32 %v821
    %vm828 = vmor %vm826, %vm827
    %v829 = vsel %vm828, %v821, %v825
    %v830 = vand.u32 2147483647, %v805
    %vm831 = vcmp.eq.f32.partialorder %v830, 8.507059e+37
    %v832 = vand.u32 %v805, 2147483648
    %v833 = vor.u32 1.1754944e-38, %v832
    %v834 = vsel %vm831, %v833, %v829
    %v835 = vmul.f32 1.0, %v834
    %v836 = vadd.f32 %v790, %v487
    %v837 = vmul.f32 %v820, %v836
    %v838 = vadd.f32 %v795, %v837
    %v839 = vtanh.pop %v838
    %v840 = vsub.f32 1.0, %v835
    %v841 = vmul.f32 %v840, %v839
    %v842 = vmul.f32 %v835, %v731
    %v843 = vadd.f32 %v841, %v842
    %844 = vst [vmem:[#allocation4] sm:$0xff] %v843
    %s845 = scalar_lea.vmem [#allocation2], 24
    %846 = vst [vmem:[%s845] sm:$0xff] %v843
    %v847 = vld [vmem:[#allocation4] sm:$0xff]
    %848 = vmatpush.msra.mxu0 %v378
    %849 = vmatpush.msra.mxu0 %v375
    %850 = vmatpush.msra.mxu0 %v372
    %851 = vmatpush.msra.mxu0 %v369
    %852 = vmatpush.msra.mxu0 %v366
    %853 = vmatpush.msra.mxu0 %v363
    %854 = vmatpush.msra.mxu0 %v360
    %855 = vmatpush.msra.mxu0 %v357
    %856 = vmatpush.msra.mxu0 %v354
    %857 = vmatpush.msra.mxu0 %v351
    %858 = vmatpush.msra.mxu0 %v348
    %859 = vmatpush.msra.mxu0 %v345
    %860 = vmatpush.msra.mxu0 %v342
    %861 = vmatpush.msra.mxu0 %v339
    %862 = vmatpush.msra.mxu0 %v336
    %863 = vmatpush.msra.mxu0 %v333
    %864 = vmatmul.f32.gmra.mxu0 %v847
    %v865 = vpop.f32.mrf.mxu0
    %v866 = vadd.f32 0.0, %v865
    %867 = vdwg.mxu0
    %868 = vmatpush.msra.mxu0 %v379
    %869 = vmatpush.msra.mxu0 %v376
    %870 = vmatpush.msra.mxu0 %v373
    %871 = vmatpush.msra.mxu0 %v370
    %872 = vmatpush.msra.mxu0 %v367
    %873 = vmatpush.msra.mxu0 %v364
    %874 = vmatpush.msra.mxu0 %v361
    %875 = vmatpush.msra.mxu0 %v358
    %876 = vmatpush.msra.mxu0 %v355
    %877 = vmatpush.msra.mxu0 %v352
    %878 = vmatpush.msra.mxu0 %v349
    %879 = vmatpush.msra.mxu0 %v346
    %880 = vmatpush.msra.mxu0 %v343
    %881 = vmatpush.msra.mxu0 %v340
    %882 = vmatpush.msra.mxu0 %v337
    %883 = vmatpush.msra.mxu0 %v334
    %884 = vmatmul.f32.gmra.mxu0 %v847
    %v885 = vpop.f32.mrf.mxu0
    %v886 = vadd.f32 0.0, %v885
    %887 = vdwg.mxu0
    %888 = vmatpush.msra.mxu0 %v380
    %889 = vmatpush.msra.mxu0 %v377
    %890 = vmatpush.msra.mxu0 %v374
    %891 = vmatpush.msra.mxu0 %v371
    %892 = vmatpush.msra.mxu0 %v368
    %893 = vmatpush.msra.mxu0 %v365
    %894 = vmatpush.msra.mxu0 %v362
    %895 = vmatpush.msra.mxu0 %v359
    %896 = vmatpush.msra.mxu0 %v356
    %897 = vmatpush.msra.mxu0 %v353
    %898 = vmatpush.msra.mxu0 %v350
    %899 = vmatpush.msra.mxu0 %v347
    %900 = vmatpush.msra.mxu0 %v344
    %901 = vmatpush.msra.mxu0 %v341
    %902 = vmatpush.msra.mxu0 %v338
    %903 = vmatpush.msra.mxu0 %v335
    %904 = vmatmul.f32.gmra.mxu0 %v847
    %v905 = vpop.f32.mrf.mxu0
    %v906 = vadd.f32 0.0, %v905
    %907 = vdwg.mxu0
    %s908 = scalar_lea.vmem [#allocation3], 96
    %v909 = vld [vmem:[%s908] sm:$0xff]
    %v910 = vld [vmem:[%s908 + $0x8] sm:$0xff]
    %v911 = vld [vmem:[%s908 + $0x10] sm:$0xff]
    %v912 = vadd.f32 %v909, %v866
    %v913 = vadd.f32 %v910, %v886
    %v914 = vxor.u32 %v912, 2147483648
    %v915 = vxor.u32 %v913, 2147483648
    %v916 = vmul.f32 %v914, 1.442695
    %v917 = vpow.pop %v916
    %v918 = vmul.f32 %v915, 1.442695
    %v919 = vpow.pop %v918
    %v920 = vadd.f32 %v917, 1.0
    %v921 = vadd.f32 %v919, 1.0
    %v922 = vrcp.pop %v920
    %v923 = vmul.f32 %v920, %v922
    %v924 = vsub.f32 1.0, %v923
    %v925 = vmul.f32 %v922, %v924
    %v926 = vadd.f32 %v922, %v925
    %vm927 = vweird.f32 %v920
    %vm928 = vweird.f32 %v922
    %vm929 = vmor %vm927, %vm928
    %v930 = vsel %vm929, %v922, %v926
    %v931 = vand.u32 2147483647, %v920
    %vm932 = vcmp.eq.f32.partialorder %v931, 8.507059e+37
    %v933 = vand.u32 %v920, 2147483648
    %v934 = vor.u32 1.1754944e-38, %v933
    %v935 = vsel %vm932, %v934, %v930
    %v936 = vmul.f32 1.0, %v935
    %v937 = vrcp.pop %v921
    %v938 = vmul.f32 %v921, %v937
    %v939 = vsub.f32 1.0, %v938
    %v940 = vmul.f32 %v937, %v939
    %v941 = vadd.f32 %v937, %v940
    %vm942 = vweird.f32 %v921
    %vm943 = vweird.f32 %v937
    %vm944 = vmor %vm942, %vm943
    %v945 = vsel %vm944, %v937, %v941
    %v946 = vand.u32 2147483647, %v921
    %vm947 = vcmp.eq.f32.partialorder %v946, 8.507059e+37
    %v948 = vand.u32 %v921, 2147483648
    %v949 = vor.u32 1.1754944e-38, %v948
    %v950 = vsel %vm947, %v949, %v945
    %v951 = vmul.f32 1.0, %v950
    %v952 = vadd.f32 %v906, %v487
    %v953 = vmul.f32 %v936, %v952
    %v954 = vadd.f32 %v911, %v953
    %v955 = vtanh.pop %v954
    %v956 = vsub.f32 1.0, %v951
    %v957 = vmul.f32 %v956, %v955
    %v958 = vmul.f32 %v951, %v847
    %v959 = vadd.f32 %v957, %v958
    %960 = vst [vmem:[#allocation4] sm:$0xff] %v959
    %s961 = scalar_lea.vmem [#allocation2], 32
    %962 = vst [vmem:[%s961] sm:$0xff] %v959
    %v963 = vld [vmem:[#allocation4] sm:$0xff]
    %964 = vmatpush.msra.mxu0 %v378
    %965 = vmatpush.msra.mxu0 %v375
    %966 = vmatpush.msra.mxu0 %v372
    %967 = vmatpush.msra.mxu0 %v369
    %968 = vmatpush.msra.mxu0 %v366
    %969 = vmatpush.msra.mxu0 %v363
    %970 = vmatpush.msra.mxu0 %v360
    %971 = vmatpush.msra.mxu0 %v357
    %972 = vmatpush.msra.mxu0 %v354
    %973 = vmatpush.msra.mxu0 %v351
    %974 = vmatpush.msra.mxu0 %v348
    %975 = vmatpush.msra.mxu0 %v345
    %976 = vmatpush.msra.mxu0 %v342
    %977 = vmatpush.msra.mxu0 %v339
    %978 = vmatpush.msra.mxu0 %v336
    %979 = vmatpush.msra.mxu0 %v333
    %980 = vmatmul.f32.gmra.mxu0 %v963
    %v981 = vpop.f32.mrf.mxu0
    %v982 = vadd.f32 0.0, %v981
    %983 = vdwg.mxu0
    %984 = vmatpush.msra.mxu0 %v379
    %985 = vmatpush.msra.mxu0 %v376
    %986 = vmatpush.msra.mxu0 %v373
    %987 = vmatpush.msra.mxu0 %v370
    %988 = vmatpush.msra.mxu0 %v367
    %989 = vmatpush.msra.mxu0 %v364
    %990 = vmatpush.msra.mxu0 %v361
    %991 = vmatpush.msra.mxu0 %v358
    %992 = vmatpush.msra.mxu0 %v355
    %993 = vmatpush.msra.mxu0 %v352
    %994 = vmatpush.msra.mxu0 %v349
    %995 = vmatpush.msra.mxu0 %v346
    %996 = vmatpush.msra.mxu0 %v343
    %997 = vmatpush.msra.mxu0 %v340
    %998 = vmatpush.msra.mxu0 %v337
    %999 = vmatpush.msra.mxu0 %v334
    %1000 = vmatmul.f32.gmra.mxu0 %v963
    %v1001 = vpop.f32.mrf.mxu0
    %v1002 = vadd.f32 0.0, %v1001
    %1003 = vdwg.mxu0
    %1004 = vmatpush.msra.mxu0 %v380
    %1005 = vmatpush.msra.mxu0 %v377
    %1006 = vmatpush.msra.mxu0 %v374
    %1007 = vmatpush.msra.mxu0 %v371
    %1008 = vmatpush.msra.mxu0 %v368
    %1009 = vmatpush.msra.mxu0 %v365
    %1010 = vmatpush.msra.mxu0 %v362
    %1011 = vmatpush.msra.mxu0 %v359
    %1012 = vmatpush.msra.mxu0 %v356
    %1013 = vmatpush.msra.mxu0 %v353
    %1014 = vmatpush.msra.mxu0 %v350
    %1015 = vmatpush.msra.mxu0 %v347
    %1016 = vmatpush.msra.mxu0 %v344
    %1017 = vmatpush.msra.mxu0 %v341
    %1018 = vmatpush.msra.mxu0 %v338
    %1019 = vmatpush.msra.mxu0 %v335
    %1020 = vmatmul.f32.gmra.mxu0 %v963
    %v1021 = vpop.f32.mrf.mxu0
    %v1022 = vadd.f32 0.0, %v1021
    %1023 = vdwg.mxu0
    %s1024 = scalar_lea.vmem [#allocation3], 120
    %v1025 = vld [vmem:[%s1024] sm:$0xff]
    %v1026 = vld [vmem:[%s1024 + $0x8] sm:$0xff]
    %v1027 = vld [vmem:[%s1024 + $0x10] sm:$0xff]
    %v1028 = vadd.f32 %v1025, %v982
    %v1029 = vadd.f32 %v1026, %v1002
    %v1030 = vxor.u32 %v1028, 2147483648
    %v1031 = vxor.u32 %v1029, 2147483648
    %v1032 = vmul.f32 %v1030, 1.442695
    %v1033 = vpow.pop %v1032
    %v1034 = vmul.f32 %v1031, 1.442695
    %v1035 = vpow.pop %v1034
    %v1036 = vadd.f32 %v1033, 1.0
    %v1037 = vadd.f32 %v1035, 1.0
    %v1038 = vrcp.pop %v1036
    %v1039 = vmul.f32 %v1036, %v1038
    %v1040 = vsub.f32 1.0, %v1039
    %v1041 = vmul.f32 %v1038, %v1040
    %v1042 = vadd.f32 %v1038, %v1041
    %vm1043 = vweird.f32 %v1036
    %vm1044 = vweird.f32 %v1038
    %vm1045 = vmor %vm1043, %vm1044
    %v1046 = vsel %vm1045, %v1038, %v1042
    %v1047 = vand.u32 2147483647, %v1036
    %vm1048 = vcmp.eq.f32.partialorder %v1047, 8.507059e+37
    %v1049 = vand.u32 %v1036, 2147483648
    %v1050 = vor.u32 1.1754944e-38, %v1049
    %v1051 = vsel %vm1048, %v1050, %v1046
    %v1052 = vmul.f32 1.0, %v1051
    %v1053 = vrcp.pop %v1037
    %v1054 = vmul.f32 %v1037, %v1053
    %v1055 = vsub.f32 1.0, %v1054
    %v1056 = vmul.f32 %v1053, %v1055
    %v1057 = vadd.f32 %v1053, %v1056
    %vm1058 = vweird.f32 %v1037
    %vm1059 = vweird.f32 %v1053
    %vm1060 = vmor %vm1058, %vm1059
    %v1061 = vsel %vm1060, %v1053, %v1057
    %v1062 = vand.u32 2147483647, %v1037
    %vm1063 = vcmp.eq.f32.partialorder %v1062, 8.507059e+37
    %v1064 = vand.u32 %v1037, 2147483648
    %v1065 = vor.u32 1.1754944e-38, %v1064
    %v1066 = vsel %vm1063, %v1065, %v1061
    %v1067 = vmul.f32 1.0, %v1066
    %v1068 = vadd.f32 %v1022, %v487
    %v1069 = vmul.f32 %v1052, %v1068
    %v1070 = vadd.f32 %v1027, %v1069
    %v1071 = vtanh.pop %v1070
    %v1072 = vsub.f32 1.0, %v1067
    %v1073 = vmul.f32 %v1072, %v1071
    %v1074 = vmul.f32 %v1067, %v963
    %v1075 = vadd.f32 %v1073, %v1074
    %1076 = vst [vmem:[#allocation4] sm:$0xff] %v1075
    %s1077 = scalar_lea.vmem [#allocation2], 40
    %1078 = vst [vmem:[%s1077] sm:$0xff] %v1075
    %v1079 = vld [vmem:[#allocation4] sm:$0xff]
    %1080 = vmatpush.msra.mxu0 %v378
    %1081 = vmatpush.msra.mxu0 %v375
    %1082 = vmatpush.msra.mxu0 %v372
    %1083 = vmatpush.msra.mxu0 %v369
    %1084 = vmatpush.msra.mxu0 %v366
    %1085 = vmatpush.msra.mxu0 %v363
    %1086 = vmatpush.msra.mxu0 %v360
    %1087 = vmatpush.msra.mxu0 %v357
    %1088 = vmatpush.msra.mxu0 %v354
    %1089 = vmatpush.msra.mxu0 %v351
    %1090 = vmatpush.msra.mxu0 %v348
    %1091 = vmatpush.msra.mxu0 %v345
    %1092 = vmatpush.msra.mxu0 %v342
    %1093 = vmatpush.msra.mxu0 %v339
    %1094 = vmatpush.msra.mxu0 %v336
    %1095 = vmatpush.msra.mxu0 %v333
    %1096 = vmatmul.f32.gmra.mxu0 %v1079
    %v1097 = vpop.f32.mrf.mxu0
    %v1098 = vadd.f32 0.0, %v1097
    %1099 = vdwg.mxu0
    %1100 = vmatpush.msra.mxu0 %v379
    %1101 = vmatpush.msra.mxu0 %v376
    %1102 = vmatpush.msra.mxu0 %v373
    %1103 = vmatpush.msra.mxu0 %v370
    %1104 = vmatpush.msra.mxu0 %v367
    %1105 = vmatpush.msra.mxu0 %v364
    %1106 = vmatpush.msra.mxu0 %v361
    %1107 = vmatpush.msra.mxu0 %v358
    %1108 = vmatpush.msra.mxu0 %v355
    %1109 = vmatpush.msra.mxu0 %v352
    %1110 = vmatpush.msra.mxu0 %v349
    %1111 = vmatpush.msra.mxu0 %v346
    %1112 = vmatpush.msra.mxu0 %v343
    %1113 = vmatpush.msra.mxu0 %v340
    %1114 = vmatpush.msra.mxu0 %v337
    %1115 = vmatpush.msra.mxu0 %v334
    %1116 = vmatmul.f32.gmra.mxu0 %v1079
    %v1117 = vpop.f32.mrf.mxu0
    %v1118 = vadd.f32 0.0, %v1117
    %1119 = vdwg.mxu0
    %1120 = vmatpush.msra.mxu0 %v380
    %1121 = vmatpush.msra.mxu0 %v377
    %1122 = vmatpush.msra.mxu0 %v374
    %1123 = vmatpush.msra.mxu0 %v371
    %1124 = vmatpush.msra.mxu0 %v368
    %1125 = vmatpush.msra.mxu0 %v365
    %1126 = vmatpush.msra.mxu0 %v362
    %1127 = vmatpush.msra.mxu0 %v359
    %1128 = vmatpush.msra.mxu0 %v356
    %1129 = vmatpush.msra.mxu0 %v353
    %1130 = vmatpush.msra.mxu0 %v350
    %1131 = vmatpush.msra.mxu0 %v347
    %1132 = vmatpush.msra.mxu0 %v344
    %1133 = vmatpush.msra.mxu0 %v341
    %1134 = vmatpush.msra.mxu0 %v338
    %1135 = vmatpush.msra.mxu0 %v335
    %1136 = vmatmul.f32.gmra.mxu0 %v1079
    %v1137 = vpop.f32.mrf.mxu0
    %v1138 = vadd.f32 0.0, %v1137
    %1139 = vdwg.mxu0
    %s1140 = scalar_lea.vmem [#allocation3], 144
    %v1141 = vld [vmem:[%s1140] sm:$0xff]
    %v1142 = vld [vmem:[%s1140 + $0x8] sm:$0xff]
    %v1143 = vld [vmem:[%s1140 + $0x10] sm:$0xff]
    %v1144 = vadd.f32 %v1141, %v1098
    %v1145 = vadd.f32 %v1142, %v1118
    %v1146 = vxor.u32 %v1144, 2147483648
    %v1147 = vxor.u32 %v1145, 2147483648
    %v1148 = vmul.f32 %v1146, 1.442695
    %v1149 = vpow.pop %v1148
    %v1150 = vmul.f32 %v1147, 1.442695
    %v1151 = vpow.pop %v1150
    %v1152 = vadd.f32 %v1149, 1.0
    %v1153 = vadd.f32 %v1151, 1.0
    %v1154 = vrcp.pop %v1152
    %v1155 = vmul.f32 %v1152, %v1154
    %v1156 = vsub.f32 1.0, %v1155
    %v1157 = vmul.f32 %v1154, %v1156
    %v1158 = vadd.f32 %v1154, %v1157
    %vm1159 = vweird.f32 %v1152
    %vm1160 = vweird.f32 %v1154
    %vm1161 = vmor %vm1159, %vm1160
    %v1162 = vsel %vm1161, %v1154, %v1158
    %v1163 = vand.u32 2147483647, %v1152
    %vm1164 = vcmp.eq.f32.partialorder %v1163, 8.507059e+37
    %v1165 = vand.u32 %v1152, 2147483648
    %v1166 = vor.u32 1.1754944e-38, %v1165
    %v1167 = vsel %vm1164, %v1166, %v1162
    %v1168 = vmul.f32 1.0, %v1167
    %v1169 = vrcp.pop %v1153
    %v1170 = vmul.f32 %v1153, %v1169
    %v1171 = vsub.f32 1.0, %v1170
    %v1172 = vmul.f32 %v1169, %v1171
    %v1173 = vadd.f32 %v1169, %v1172
    %vm1174 = vweird.f32 %v1153
    %vm1175 = vweird.f32 %v1169
    %vm1176 = vmor %vm1174, %vm1175
    %v1177 = vsel %vm1176, %v1169, %v1173
    %v1178 = vand.u32 2147483647, %v1153
    %vm1179 = vcmp.eq.f32.partialorder %v1178, 8.507059e+37
    %v1180 = vand.u32 %v1153, 2147483648
    %v1181 = vor.u32 1.1754944e-38, %v1180
    %v1182 = vsel %vm1179, %v1181, %v1177
    %v1183 = vmul.f32 1.0, %v1182
    %v1184 = vadd.f32 %v1138, %v487
    %v1185 = vmul.f32 %v1168, %v1184
    %v1186 = vadd.f32 %v1143, %v1185
    %v1187 = vtanh.pop %v1186
    %v1188 = vsub.f32 1.0, %v1183
    %v1189 = vmul.f32 %v1188, %v1187
    %v1190 = vmul.f32 %v1183, %v1079
    %v1191 = vadd.f32 %v1189, %v1190
    %1192 = vst [vmem:[#allocation4] sm:$0xff] %v1191
    %s1193 = scalar_lea.vmem [#allocation2], 48
    %1194 = vst [vmem:[%s1193] sm:$0xff] %v1191
    %v1195 = vld [vmem:[#allocation4] sm:$0xff]
    %1196 = vmatpush.msra.mxu0 %v378
    %1197 = vmatpush.msra.mxu0 %v375
    %1198 = vmatpush.msra.mxu0 %v372
    %1199 = vmatpush.msra.mxu0 %v369
    %1200 = vmatpush.msra.mxu0 %v366
    %1201 = vmatpush.msra.mxu0 %v363
    %1202 = vmatpush.msra.mxu0 %v360
    %1203 = vmatpush.msra.mxu0 %v357
    %1204 = vmatpush.msra.mxu0 %v354
    %1205 = vmatpush.msra.mxu0 %v351
    %1206 = vmatpush.msra.mxu0 %v348
    %1207 = vmatpush.msra.mxu0 %v345
    %1208 = vmatpush.msra.mxu0 %v342
    %1209 = vmatpush.msra.mxu0 %v339
    %1210 = vmatpush.msra.mxu0 %v336
    %1211 = vmatpush.msra.mxu0 %v333
    %1212 = vmatmul.f32.gmra.mxu0 %v1195
    %v1213 = vpop.f32.mrf.mxu0
    %v1214 = vadd.f32 0.0, %v1213
    %1215 = vdwg.mxu0
    %1216 = vmatpush.msra.mxu0 %v379
    %1217 = vmatpush.msra.mxu0 %v376
    %1218 = vmatpush.msra.mxu0 %v373
    %1219 = vmatpush.msra.mxu0 %v370
    %1220 = vmatpush.msra.mxu0 %v367
    %1221 = vmatpush.msra.mxu0 %v364
    %1222 = vmatpush.msra.mxu0 %v361
    %1223 = vmatpush.msra.mxu0 %v358
    %1224 = vmatpush.msra.mxu0 %v355
    %1225 = vmatpush.msra.mxu0 %v352
    %1226 = vmatpush.msra.mxu0 %v349
    %1227 = vmatpush.msra.mxu0 %v346
    %1228 = vmatpush.msra.mxu0 %v343
    %1229 = vmatpush.msra.mxu0 %v340
    %1230 = vmatpush.msra.mxu0 %v337
    %1231 = vmatpush.msra.mxu0 %v334
    %1232 = vmatmul.f32.gmra.mxu0 %v1195
    %v1233 = vpop.f32.mrf.mxu0
    %v1234 = vadd.f32 0.0, %v1233
    %1235 = vdwg.mxu0
    %1236 = vmatpush.msra.mxu0 %v380
    %1237 = vmatpush.msra.mxu0 %v377
    %1238 = vmatpush.msra.mxu0 %v374
    %1239 = vmatpush.msra.mxu0 %v371
    %1240 = vmatpush.msra.mxu0 %v368
    %1241 = vmatpush.msra.mxu0 %v365
    %1242 = vmatpush.msra.mxu0 %v362
    %1243 = vmatpush.msra.mxu0 %v359
    %1244 = vmatpush.msra.mxu0 %v356
    %1245 = vmatpush.msra.mxu0 %v353
    %1246 = vmatpush.msra.mxu0 %v350
    %1247 = vmatpush.msra.mxu0 %v347
    %1248 = vmatpush.msra.mxu0 %v344
    %1249 = vmatpush.msra.mxu0 %v341
    %1250 = vmatpush.msra.mxu0 %v338
    %1251 = vmatpush.msra.mxu0 %v335
    %1252 = vmatmul.f32.gmra.mxu0 %v1195
    %v1253 = vpop.f32.mrf.mxu0
    %v1254 = vadd.f32 0.0, %v1253
    %1255 = vdwg.mxu0
    %s1256 = scalar_lea.vmem [#allocation3], 168
    %v1257 = vld [vmem:[%s1256] sm:$0xff]
    %v1258 = vld [vmem:[%s1256 + $0x8] sm:$0xff]
    %v1259 = vld [vmem:[%s1256 + $0x10] sm:$0xff]
    %v1260 = vadd.f32 %v1257, %v1214
    %v1261 = vadd.f32 %v1258, %v1234
    %v1262 = vxor.u32 %v1260, 2147483648
    %v1263 = vxor.u32 %v1261, 2147483648
    %v1264 = vmul.f32 %v1262, 1.442695
    %v1265 = vpow.pop %v1264
    %v1266 = vmul.f32 %v1263, 1.442695
    %v1267 = vpow.pop %v1266
    %v1268 = vadd.f32 %v1265, 1.0
    %v1269 = vadd.f32 %v1267, 1.0
    %v1270 = vrcp.pop %v1268
    %v1271 = vmul.f32 %v1268, %v1270
    %v1272 = vsub.f32 1.0, %v1271
    %v1273 = vmul.f32 %v1270, %v1272
    %v1274 = vadd.f32 %v1270, %v1273
    %vm1275 = vweird.f32 %v1268
    %vm1276 = vweird.f32 %v1270
    %vm1277 = vmor %vm1275, %vm1276
    %v1278 = vsel %vm1277, %v1270, %v1274
    %v1279 = vand.u32 2147483647, %v1268
    %vm1280 = vcmp.eq.f32.partialorder %v1279, 8.507059e+37
    %v1281 = vand.u32 %v1268, 2147483648
    %v1282 = vor.u32 1.1754944e-38, %v1281
    %v1283 = vsel %vm1280, %v1282, %v1278
    %v1284 = vmul.f32 1.0, %v1283
    %v1285 = vrcp.pop %v1269
    %v1286 = vmul.f32 %v1269, %v1285
    %v1287 = vsub.f32 1.0, %v1286
    %v1288 = vmul.f32 %v1285, %v1287
    %v1289 = vadd.f32 %v1285, %v1288
    %vm1290 = vweird.f32 %v1269
    %vm1291 = vweird.f32 %v1285
    %vm1292 = vmor %vm1290, %vm1291
    %v1293 = vsel %vm1292, %v1285, %v1289
    %v1294 = vand.u32 2147483647, %v1269
    %vm1295 = vcmp.eq.f32.partialorder %v1294, 8.507059e+37
    %v1296 = vand.u32 %v1269, 2147483648
    %v1297 = vor.u32 1.1754944e-38, %v1296
    %v1298 = vsel %vm1295, %v1297, %v1293
    %v1299 = vmul.f32 1.0, %v1298
    %v1300 = vadd.f32 %v1254, %v487
    %v1301 = vmul.f32 %v1284, %v1300
    %v1302 = vadd.f32 %v1259, %v1301
    %v1303 = vtanh.pop %v1302
    %v1304 = vsub.f32 1.0, %v1299
    %v1305 = vmul.f32 %v1304, %v1303
    %v1306 = vmul.f32 %v1299, %v1195
    %v1307 = vadd.f32 %v1305, %v1306
    %1308 = vst [vmem:[#allocation4] sm:$0xff] %v1307
    %s1309 = scalar_lea.vmem [#allocation2], 56
    %1310 = vst [vmem:[%s1309] sm:$0xff] %v1307
    %v1311 = vld [vmem:[#allocation2] sm:$0xff]
    %v1312 = vld [vmem:[#allocation2 + $0x8] sm:$0xff]
    %v1313 = vld [vmem:[#allocation2 + $0x10] sm:$0xff]
    %v1314 = vld [vmem:[#allocation2 + $0x18] sm:$0xff]
    %v1315 = vld [vmem:[#allocation2 + $0x20] sm:$0xff]
    %v1316 = vld [vmem:[#allocation2 + $0x28] sm:$0xff]
    %v1317 = vld [vmem:[#allocation2 + $0x30] sm:$0xff]
    %v1318 = vld [vmem:[#allocation2 + $0x38] sm:$0xff]
    %s1319 = scalar_lea.vmem [#allocation8], 384
    %v1320 = vld [vmem:[%s1319] sm:$0xff]
    %v1321 = vld [vmem:[%s1319 + $0x8] sm:$0xff]
    %v1322 = vld [vmem:[%s1319 + $0x10] sm:$0xff]
    %v1323 = vld [vmem:[%s1319 + $0x18] sm:$0xff]
    %v1324 = vld [vmem:[%s1319 + $0x20] sm:$0xff]
    %v1325 = vld [vmem:[%s1319 + $0x28] sm:$0xff]
    %v1326 = vld [vmem:[%s1319 + $0x30] sm:$0xff]
    %v1327 = vld [vmem:[%s1319 + $0x38] sm:$0xff]
    %v1328 = vld [vmem:[%s1319 + $0x40] sm:$0xff]
    %v1329 = vld [vmem:[%s1319 + $0x48] sm:$0xff]
    %v1330 = vld [vmem:[%s1319 + $0x50] sm:$0xff]
    %v1331 = vld [vmem:[%s1319 + $0x58] sm:$0xff]
    %v1332 = vld [vmem:[%s1319 + $0x60] sm:$0xff]
    %v1333 = vld [vmem:[%s1319 + $0x68] sm:$0xff]
    %v1334 = vld [vmem:[%s1319 + $0x70] sm:$0xff]
    %v1335 = vld [vmem:[%s1319 + $0x78] sm:$0xff]
    %v1336 = vld [vmem:[%s1319 + $0x80] sm:$0xff]
    %v1337 = vld [vmem:[%s1319 + $0x88] sm:$0xff]
    %v1338 = vld [vmem:[%s1319 + $0x90] sm:$0xff]
    %v1339 = vld [vmem:[%s1319 + $0x98] sm:$0xff]
    %v1340 = vld [vmem:[%s1319 + $0xa0] sm:$0xff]
    %v1341 = vld [vmem:[%s1319 + $0xa8] sm:$0xff]
    %v1342 = vld [vmem:[%s1319 + $0xb0] sm:$0xff]
    %v1343 = vld [vmem:[%s1319 + $0xb8] sm:$0xff]
    %v1344 = vld [vmem:[%s1319 + $0xc0] sm:$0xff]
    %v1345 = vld [vmem:[%s1319 + $0xc8] sm:$0xff]
    %v1346 = vld [vmem:[%s1319 + $0xd0] sm:$0xff]
    %v1347 = vld [vmem:[%s1319 + $0xd8] sm:$0xff]
    %v1348 = vld [vmem:[%s1319 + $0xe0] sm:$0xff]
    %v1349 = vld [vmem:[%s1319 + $0xe8] sm:$0xff]
    %v1350 = vld [vmem:[%s1319 + $0xf0] sm:$0xff]
    %v1351 = vld [vmem:[%s1319 + $0xf8] sm:$0xff]
    %v1352 = vld [vmem:[%s1319 + $0x100] sm:$0xff]
    %v1353 = vld [vmem:[%s1319 + $0x108] sm:$0xff]
    %v1354 = vld [vmem:[%s1319 + $0x110] sm:$0xff]
    %v1355 = vld [vmem:[%s1319 + $0x118] sm:$0xff]
    %v1356 = vld [vmem:[%s1319 + $0x120] sm:$0xff]
    %v1357 = vld [vmem:[%s1319 + $0x128] sm:$0xff]
    %v1358 = vld [vmem:[%s1319 + $0x130] sm:$0xff]
    %v1359 = vld [vmem:[%s1319 + $0x138] sm:$0xff]
    %v1360 = vld [vmem:[%s1319 + $0x140] sm:$0xff]
    %v1361 = vld [vmem:[%s1319 + $0x148] sm:$0xff]
    %v1362 = vld [vmem:[%s1319 + $0x150] sm:$0xff]
    %v1363 = vld [vmem:[%s1319 + $0x158] sm:$0xff]
    %v1364 = vld [vmem:[%s1319 + $0x160] sm:$0xff]
    %v1365 = vld [vmem:[%s1319 + $0x168] sm:$0xff]
    %v1366 = vld [vmem:[%s1319 + $0x170] sm:$0xff]
    %v1367 = vld [vmem:[%s1319 + $0x178] sm:$0xff]
    %s1368 = scalar_lea.vmem [#allocation11], 3
    %v1369 = vld [vmem:[%s1368] sm:$0x7]
    %v1371 = vperm.slane %v1369, 0
    %v1372 = vperm.slane %v1369, 1
    %v1373 = vperm.slane %v1369, 2
    %1377 = vmatpush.msra.mxu0 %v1365
    %1378 = vmatpush.msra.mxu0 %v1362
    %1379 = vmatpush.msra.mxu0 %v1359
    %1380 = vmatpush.msra.mxu0 %v1356
    %1381 = vmatpush.msra.mxu0 %v1353
    %1382 = vmatpush.msra.mxu0 %v1350
    %1383 = vmatpush.msra.mxu0 %v1347
    %1384 = vmatpush.msra.mxu0 %v1344
    %1385 = vmatpush.msra.mxu0 %v1341
    %1386 = vmatpush.msra.mxu0 %v1338
    %1387 = vmatpush.msra.mxu0 %v1335
    %1388 = vmatpush.msra.mxu0 %v1332
    %1389 = vmatpush.msra.mxu0 %v1329
    %1390 = vmatpush.msra.mxu0 %v1326
    %1391 = vmatpush.msra.mxu0 %v1323
    %1392 = vmatpush.msra.mxu0 %v1320
    %1393 = vmatmul.f32.gmra.mxu0 %v1311
    %v1394 = vpop.f32.mrf.mxu0
    %v1395 = vadd.f32 %v1371, %v1394
    %1396 = vmatmul.f32.gmra.mxu0 %v1312
    %v1397 = vpop.f32.mrf.mxu0
    %v1398 = vadd.f32 %v1371, %v1397
    %1399 = vmatmul.f32.gmra.mxu0 %v1313
    %v1400 = vpop.f32.mrf.mxu0
    %v1401 = vadd.f32 %v1371, %v1400
    %1402 = vmatmul.f32.gmra.mxu0 %v1314
    %v1403 = vpop.f32.mrf.mxu0
    %v1404 = vadd.f32 %v1371, %v1403
    %1405 = vmatmul.f32.gmra.mxu0 %v1315
    %v1406 = vpop.f32.mrf.mxu0
    %v1407 = vadd.f32 %v1371, %v1406
    %1408 = vmatmul.f32.gmra.mxu0 %v1316
    %v1409 = vpop.f32.mrf.mxu0
    %v1410 = vadd.f32 %v1371, %v1409
    %1411 = vmatmul.f32.gmra.mxu0 %v1317
    %v1412 = vpop.f32.mrf.mxu0
    %v1413 = vadd.f32 %v1371, %v1412
    %1414 = vmatmul.f32.gmra.mxu0 %v1318
    %v1415 = vpop.f32.mrf.mxu0
    %v1416 = vadd.f32 %v1371, %v1415
    %1417 = vdwg.mxu0
    %1418 = vmatpush.msra.mxu0 %v1366
    %1419 = vmatpush.msra.mxu0 %v1363
    %1420 = vmatpush.msra.mxu0 %v1360
    %1421 = vmatpush.msra.mxu0 %v1357
    %1422 = vmatpush.msra.mxu0 %v1354
    %1423 = vmatpush.msra.mxu0 %v1351
    %1424 = vmatpush.msra.mxu0 %v1348
    %1425 = vmatpush.msra.mxu0 %v1345
    %1426 = vmatpush.msra.mxu0 %v1342
    %1427 = vmatpush.msra.mxu0 %v1339
    %1428 = vmatpush.msra.mxu0 %v1336
    %1429 = vmatpush.msra.mxu0 %v1333
    %1430 = vmatpush.msra.mxu0 %v1330
    %1431 = vmatpush.msra.mxu0 %v1327
    %1432 = vmatpush.msra.mxu0 %v1324
    %1433 = vmatpush.msra.mxu0 %v1321
    %1434 = vmatmul.f32.gmra.mxu0 %v1311
    %v1435 = vpop.f32.mrf.mxu0
    %v1436 = vadd.f32 %v1372, %v1435
    %1437 = vmatmul.f32.gmra.mxu0 %v1312
    %v1438 = vpop.f32.mrf.mxu0
    %v1439 = vadd.f32 %v1372, %v1438
    %1440 = vmatmul.f32.gmra.mxu0 %v1313
    %v1441 = vpop.f32.mrf.mxu0
    %v1442 = vadd.f32 %v1372, %v1441
    %1443 = vmatmul.f32.gmra.mxu0 %v1314
    %v1444 = vpop.f32.mrf.mxu0
    %v1445 = vadd.f32 %v1372, %v1444
    %1446 = vmatmul.f32.gmra.mxu0 %v1315
    %v1447 = vpop.f32.mrf.mxu0
    %v1448 = vadd.f32 %v1372, %v1447
    %1449 = vmatmul.f32.gmra.mxu0 %v1316
    %v1450 = vpop.f32.mrf.mxu0
    %v1451 = vadd.f32 %v1372, %v1450
    %1452 = vmatmul.f32.gmra.mxu0 %v1317
    %v1453 = vpop.f32.mrf.mxu0
    %v1454 = vadd.f32 %v1372, %v1453
    %1455 = vmatmul.f32.gmra.mxu0 %v1318
    %v1456 = vpop.f32.mrf.mxu0
    %v1457 = vadd.f32 %v1372, %v1456
    %1458 = vdwg.mxu0
    %1459 = vmatpush.msra.mxu0 %v1367
    %1460 = vmatpush.msra.mxu0 %v1364
    %1461 = vmatpush.msra.mxu0 %v1361
    %1462 = vmatpush.msra.mxu0 %v1358
    %1463 = vmatpush.msra.mxu0 %v1355
    %1464 = vmatpush.msra.mxu0 %v1352
    %1465 = vmatpush.msra.mxu0 %v1349
    %1466 = vmatpush.msra.mxu0 %v1346
    %1467 = vmatpush.msra.mxu0 %v1343
    %1468 = vmatpush.msra.mxu0 %v1340
    %1469 = vmatpush.msra.mxu0 %v1337
    %1470 = vmatpush.msra.mxu0 %v1334
    %1471 = vmatpush.msra.mxu0 %v1331
    %1472 = vmatpush.msra.mxu0 %v1328
    %1473 = vmatpush.msra.mxu0 %v1325
    %1474 = vmatpush.msra.mxu0 %v1322
    %1475 = vmatmul.f32.gmra.mxu0 %v1311
    %v1476 = vpop.f32.mrf.mxu0
    %v1477 = vadd.f32 %v1373, %v1476
    %1478 = vmatmul.f32.gmra.mxu0 %v1312
    %v1479 = vpop.f32.mrf.mxu0
    %v1480 = vadd.f32 %v1373, %v1479
    %1481 = vmatmul.f32.gmra.mxu0 %v1313
    %v1482 = vpop.f32.mrf.mxu0
    %v1483 = vadd.f32 %v1373, %v1482
    %1484 = vmatmul.f32.gmra.mxu0 %v1314
    %v1485 = vpop.f32.mrf.mxu0
    %v1486 = vadd.f32 %v1373, %v1485
    %1487 = vmatmul.f32.gmra.mxu0 %v1315
    %v1488 = vpop.f32.mrf.mxu0
    %v1489 = vadd.f32 %v1373, %v1488
    %1490 = vmatmul.f32.gmra.mxu0 %v1316
    %v1491 = vpop.f32.mrf.mxu0
    %v1492 = vadd.f32 %v1373, %v1491
    %1493 = vmatmul.f32.gmra.mxu0 %v1317
    %v1494 = vpop.f32.mrf.mxu0
    %v1495 = vadd.f32 %v1373, %v1494
    %1496 = vmatmul.f32.gmra.mxu0 %v1318
    %v1497 = vpop.f32.mrf.mxu0
    %v1498 = vadd.f32 %v1373, %v1497
    %1499 = vdwg.mxu0
    %1500 = vst [vmem:[#allocation3] sm:$0xff] %v1395
    %1501 = vst [vmem:[#allocation3 + $0x8] sm:$0xff] %v1436
    %1502 = vst [vmem:[#allocation3 + $0x10] sm:$0xff] %v1477
    %1503 = vst [vmem:[#allocation3 + $0x18] sm:$0xff] %v1398
    %1504 = vst [vmem:[#allocation3 + $0x20] sm:$0xff] %v1439
    %1505 = vst [vmem:[#allocation3 + $0x28] sm:$0xff] %v1480
    %1506 = vst [vmem:[#allocation3 + $0x30] sm:$0xff] %v1401
    %1507 = vst [vmem:[#allocation3 + $0x38] sm:$0xff] %v1442
    %1508 = vst [vmem:[#allocation3 + $0x40] sm:$0xff] %v1483
    %1509 = vst [vmem:[#allocation3 + $0x48] sm:$0xff] %v1404
    %1510 = vst [vmem:[#allocation3 + $0x50] sm:$0xff] %v1445
    %1511 = vst [vmem:[#allocation3 + $0x58] sm:$0xff] %v1486
    %1512 = vst [vmem:[#allocation3 + $0x60] sm:$0xff] %v1407
    %1513 = vst [vmem:[#allocation3 + $0x68] sm:$0xff] %v1448
    %1514 = vst [vmem:[#allocation3 + $0x70] sm:$0xff] %v1489
    %1515 = vst [vmem:[#allocation3 + $0x78] sm:$0xff] %v1410
    %1516 = vst [vmem:[#allocation3 + $0x80] sm:$0xff] %v1451
    %1517 = vst [vmem:[#allocation3 + $0x88] sm:$0xff] %v1492
    %1518 = vst [vmem:[#allocation3 + $0x90] sm:$0xff] %v1413
    %1519 = vst [vmem:[#allocation3 + $0x98] sm:$0xff] %v1454
    %1520 = vst [vmem:[#allocation3 + $0xa0] sm:$0xff] %v1495
    %1521 = vst [vmem:[#allocation3 + $0xa8] sm:$0xff] %v1416
    %1522 = vst [vmem:[#allocation3 + $0xb0] sm:$0xff] %v1457
    %1523 = vst [vmem:[#allocation3 + $0xb8] sm:$0xff] %v1498
    %1524 = vst [vmem:[#allocation4] sm:$0xff] 0.0
    %s1525 = scalar_lea.vmem [#allocation10], 384
    %v1526 = vld [vmem:[%s1525] sm:$0xff]
    %v1527 = vld [vmem:[%s1525 + $0x8] sm:$0xff]
    %v1528 = vld [vmem:[%s1525 + $0x10] sm:$0xff]
    %v1529 = vld [vmem:[%s1525 + $0x18] sm:$0xff]
    %v1530 = vld [vmem:[%s1525 + $0x20] sm:$0xff]
    %v1531 = vld [vmem:[%s1525 + $0x28] sm:$0xff]
    %v1532 = vld [vmem:[%s1525 + $0x30] sm:$0xff]
    %v1533 = vld [vmem:[%s1525 + $0x38] sm:$0xff]
    %v1534 = vld [vmem:[%s1525 + $0x40] sm:$0xff]
    %v1535 = vld [vmem:[%s1525 + $0x48] sm:$0xff]
    %v1536 = vld [vmem:[%s1525 + $0x50] sm:$0xff]
    %v1537 = vld [vmem:[%s1525 + $0x58] sm:$0xff]
    %v1538 = vld [vmem:[%s1525 + $0x60] sm:$0xff]
    %v1539 = vld [vmem:[%s1525 + $0x68] sm:$0xff]
    %v1540 = vld [vmem:[%s1525 + $0x70] sm:$0xff]
    %v1541 = vld [vmem:[%s1525 + $0x78] sm:$0xff]
    %v1542 = vld [vmem:[%s1525 + $0x80] sm:$0xff]
    %v1543 = vld [vmem:[%s1525 + $0x88] sm:$0xff]
    %v1544 = vld [vmem:[%s1525 + $0x90] sm:$0xff]
    %v1545 = vld [vmem:[%s1525 + $0x98] sm:$0xff]
    %v1546 = vld [vmem:[%s1525 + $0xa0] sm:$0xff]
    %v1547 = vld [vmem:[%s1525 + $0xa8] sm:$0xff]
    %v1548 = vld [vmem:[%s1525 + $0xb0] sm:$0xff]
    %v1549 = vld [vmem:[%s1525 + $0xb8] sm:$0xff]
    %v1550 = vld [vmem:[%s1525 + $0xc0] sm:$0xff]
    %v1551 = vld [vmem:[%s1525 + $0xc8] sm:$0xff]
    %v1552 = vld [vmem:[%s1525 + $0xd0] sm:$0xff]
    %v1553 = vld [vmem:[%s1525 + $0xd8] sm:$0xff]
    %v1554 = vld [vmem:[%s1525 + $0xe0] sm:$0xff]
    %v1555 = vld [vmem:[%s1525 + $0xe8] sm:$0xff]
    %v1556 = vld [vmem:[%s1525 + $0xf0] sm:$0xff]
    %v1557 = vld [vmem:[%s1525 + $0xf8] sm:$0xff]
    %v1558 = vld [vmem:[%s1525 + $0x100] sm:$0xff]
    %v1559 = vld [vmem:[%s1525 + $0x108] sm:$0xff]
    %v1560 = vld [vmem:[%s1525 + $0x110] sm:$0xff]
    %v1561 = vld [vmem:[%s1525 + $0x118] sm:$0xff]
    %v1562 = vld [vmem:[%s1525 + $0x120] sm:$0xff]
    %v1563 = vld [vmem:[%s1525 + $0x128] sm:$0xff]
    %v1564 = vld [vmem:[%s1525 + $0x130] sm:$0xff]
    %v1565 = vld [vmem:[%s1525 + $0x138] sm:$0xff]
    %v1566 = vld [vmem:[%s1525 + $0x140] sm:$0xff]
    %v1567 = vld [vmem:[%s1525 + $0x148] sm:$0xff]
    %v1568 = vld [vmem:[%s1525 + $0x150] sm:$0xff]
    %v1569 = vld [vmem:[%s1525 + $0x158] sm:$0xff]
    %v1570 = vld [vmem:[%s1525 + $0x160] sm:$0xff]
    %v1571 = vld [vmem:[%s1525 + $0x168] sm:$0xff]
    %v1572 = vld [vmem:[%s1525 + $0x170] sm:$0xff]
    %v1573 = vld [vmem:[%s1525 + $0x178] sm:$0xff]
    %s1574 = scalar_lea.vmem %s4, 1
    %v1575 = vld [vmem:[%s1574] sm:$0x1]
    %v1576 = vld [vmem:[#allocation4] sm:$0xff]
    %1577 = vmatpush.msra.mxu0 %v1571
    %1578 = vmatpush.msra.mxu0 %v1568
    %1579 = vmatpush.msra.mxu0 %v1565
    %1580 = vmatpush.msra.mxu0 %v1562
    %1581 = vmatpush.msra.mxu0 %v1559
    %1582 = vmatpush.msra.mxu0 %v1556
    %1583 = vmatpush.msra.mxu0 %v1553
    %1584 = vmatpush.msra.mxu0 %v1550
    %1585 = vmatpush.msra.mxu0 %v1547
    %1586 = vmatpush.msra.mxu0 %v1544
    %1587 = vmatpush.msra.mxu0 %v1541
    %1588 = vmatpush.msra.mxu0 %v1538
    %1589 = vmatpush.msra.mxu0 %v1535
    %1590 = vmatpush.msra.mxu0 %v1532
    %1591 = vmatpush.msra.mxu0 %v1529
    %1592 = vmatpush.msra.mxu0 %v1526
    %1593 = vmatmul.f32.gmra.mxu0 %v1576
    %v1594 = vpop.f32.mrf.mxu0
    %v1595 = vadd.f32 0.0, %v1594
    %1596 = vdwg.mxu0
    %1597 = vmatpush.msra.mxu0 %v1572
    %1598 = vmatpush.msra.mxu0 %v1569
    %1599 = vmatpush.msra.mxu0 %v1566
    %1600 = vmatpush.msra.mxu0 %v1563
    %1601 = vmatpush.msra.mxu0 %v1560
    %1602 = vmatpush.msra.mxu0 %v1557
    %1603 = vmatpush.msra.mxu0 %v1554
    %1604 = vmatpush.msra.mxu0 %v1551
    %1605 = vmatpush.msra.mxu0 %v1548
    %1606 = vmatpush.msra.mxu0 %v1545
    %1607 = vmatpush.msra.mxu0 %v1542
    %1608 = vmatpush.msra.mxu0 %v1539
    %1609 = vmatpush.msra.mxu0 %v1536
    %1610 = vmatpush.msra.mxu0 %v1533
    %1611 = vmatpush.msra.mxu0 %v1530
    %1612 = vmatpush.msra.mxu0 %v1527
    %1613 = vmatmul.f32.gmra.mxu0 %v1576
    %v1614 = vpop.f32.mrf.mxu0
    %v1615 = vadd.f32 0.0, %v1614
    %1616 = vdwg.mxu0
    %1617 = vmatpush.msra.mxu0 %v1573
    %1618 = vmatpush.msra.mxu0 %v1570
    %1619 = vmatpush.msra.mxu0 %v1567
    %1620 = vmatpush.msra.mxu0 %v1564
    %1621 = vmatpush.msra.mxu0 %v1561
    %1622 = vmatpush.msra.mxu0 %v1558
    %1623 = vmatpush.msra.mxu0 %v1555
    %1624 = vmatpush.msra.mxu0 %v1552
    %1625 = vmatpush.msra.mxu0 %v1549
    %1626 = vmatpush.msra.mxu0 %v1546
    %1627 = vmatpush.msra.mxu0 %v1543
    %1628 = vmatpush.msra.mxu0 %v1540
    %1629 = vmatpush.msra.mxu0 %v1537
    %1630 = vmatpush.msra.mxu0 %v1534
    %1631 = vmatpush.msra.mxu0 %v1531
    %1632 = vmatpush.msra.mxu0 %v1528
    %1633 = vmatmul.f32.gmra.mxu0 %v1576
    %v1634 = vpop.f32.mrf.mxu0
    %v1635 = vadd.f32 0.0, %v1634
    %1636 = vdwg.mxu0
    %v1637 = vld [vmem:[#allocation3] sm:$0xff]
    %v1638 = vld [vmem:[#allocation3 + $0x8] sm:$0xff]
    %v1639 = vld [vmem:[#allocation3 + $0x10] sm:$0xff]
    %v1640 = vadd.f32 %v1637, %v1595
    %v1641 = vadd.f32 %v1638, %v1615
    %v1642 = vxor.u32 %v1640, 2147483648
    %v1643 = vxor.u32 %v1641, 2147483648
    %v1644 = vmul.f32 %v1642, 1.442695
    %v1645 = vpow.pop %v1644
    %v1646 = vmul.f32 %v1643, 1.442695
    %v1647 = vpow.pop %v1646
    %v1648 = vadd.f32 %v1645, 1.0
    %v1649 = vadd.f32 %v1647, 1.0
    %v1650 = vrcp.pop %v1648
    %v1651 = vmul.f32 %v1648, %v1650
    %v1652 = vsub.f32 1.0, %v1651
    %v1653 = vmul.f32 %v1650, %v1652
    %v1654 = vadd.f32 %v1650, %v1653
    %vm1655 = vweird.f32 %v1648
    %vm1656 = vweird.f32 %v1650
    %vm1657 = vmor %vm1655, %vm1656
    %v1658 = vsel %vm1657, %v1650, %v1654
    %v1659 = vand.u32 2147483647, %v1648
    %vm1660 = vcmp.eq.f32.partialorder %v1659, 8.507059e+37
    %v1661 = vand.u32 %v1648, 2147483648
    %v1662 = vor.u32 1.1754944e-38, %v1661
    %v1663 = vsel %vm1660, %v1662, %v1658
    %v1664 = vmul.f32 1.0, %v1663
    %v1665 = vrcp.pop %v1649
    %v1666 = vmul.f32 %v1649, %v1665
    %v1667 = vsub.f32 1.0, %v1666
    %v1668 = vmul.f32 %v1665, %v1667
    %v1669 = vadd.f32 %v1665, %v1668
    %vm1670 = vweird.f32 %v1649
    %vm1671 = vweird.f32 %v1665
    %vm1672 = vmor %vm1670, %vm1671
    %v1673 = vsel %vm1672, %v1665, %v1669
    %v1674 = vand.u32 2147483647, %v1649
    %vm1675 = vcmp.eq.f32.partialorder %v1674, 8.507059e+37
    %v1676 = vand.u32 %v1649, 2147483648
    %v1677 = vor.u32 1.1754944e-38, %v1676
    %v1678 = vsel %vm1675, %v1677, %v1673
    %v1679 = vmul.f32 1.0, %v1678
    %v1681 = vperm.slane %v1575, 0
    %v1683 = vadd.f32 %v1635, %v1681
    %v1684 = vmul.f32 %v1664, %v1683
    %v1685 = vadd.f32 %v1639, %v1684
    %v1686 = vtanh.pop %v1685
    %v1687 = vsub.f32 1.0, %v1679
    %v1688 = vmul.f32 %v1687, %v1686
    %v1689 = vmul.f32 %v1679, %v1576
    %v1690 = vadd.f32 %v1688, %v1689
    %1691 = vst [vmem:[#allocation4] sm:$0xff] %v1690
    %v1692 = vld [vmem:[#allocation4] sm:$0xff]
    %1693 = vmatpush.msra.mxu0 %v1571
    %1694 = vmatpush.msra.mxu0 %v1568
    %1695 = vmatpush.msra.mxu0 %v1565
    %1696 = vmatpush.msra.mxu0 %v1562
    %1697 = vmatpush.msra.mxu0 %v1559
    %1698 = vmatpush.msra.mxu0 %v1556
    %1699 = vmatpush.msra.mxu0 %v1553
    %1700 = vmatpush.msra.mxu0 %v1550
    %1701 = vmatpush.msra.mxu0 %v1547
    %1702 = vmatpush.msra.mxu0 %v1544
    %1703 = vmatpush.msra.mxu0 %v1541
    %1704 = vmatpush.msra.mxu0 %v1538
    %1705 = vmatpush.msra.mxu0 %v1535
    %1706 = vmatpush.msra.mxu0 %v1532
    %1707 = vmatpush.msra.mxu0 %v1529
    %1708 = vmatpush.msra.mxu0 %v1526
    %1709 = vmatmul.f32.gmra.mxu0 %v1692
    %v1710 = vpop.f32.mrf.mxu0
    %v1711 = vadd.f32 0.0, %v1710
    %1712 = vdwg.mxu0
    %1713 = vmatpush.msra.mxu0 %v1572
    %1714 = vmatpush.msra.mxu0 %v1569
    %1715 = vmatpush.msra.mxu0 %v1566
    %1716 = vmatpush.msra.mxu0 %v1563
    %1717 = vmatpush.msra.mxu0 %v1560
    %1718 = vmatpush.msra.mxu0 %v1557
    %1719 = vmatpush.msra.mxu0 %v1554
    %1720 = vmatpush.msra.mxu0 %v1551
    %1721 = vmatpush.msra.mxu0 %v1548
    %1722 = vmatpush.msra.mxu0 %v1545
    %1723 = vmatpush.msra.mxu0 %v1542
    %1724 = vmatpush.msra.mxu0 %v1539
    %1725 = vmatpush.msra.mxu0 %v1536
    %1726 = vmatpush.msra.mxu0 %v1533
    %1727 = vmatpush.msra.mxu0 %v1530
    %1728 = vmatpush.msra.mxu0 %v1527
    %1729 = vmatmul.f32.gmra.mxu0 %v1692
    %v1730 = vpop.f32.mrf.mxu0
    %v1731 = vadd.f32 0.0, %v1730
    %1732 = vdwg.mxu0
    %1733 = vmatpush.msra.mxu0 %v1573
    %1734 = vmatpush.msra.mxu0 %v1570
    %1735 = vmatpush.msra.mxu0 %v1567
    %1736 = vmatpush.msra.mxu0 %v1564
    %1737 = vmatpush.msra.mxu0 %v1561
    %1738 = vmatpush.msra.mxu0 %v1558
    %1739 = vmatpush.msra.mxu0 %v1555
    %1740 = vmatpush.msra.mxu0 %v1552
    %1741 = vmatpush.msra.mxu0 %v1549
    %1742 = vmatpush.msra.mxu0 %v1546
    %1743 = vmatpush.msra.mxu0 %v1543
    %1744 = vmatpush.msra.mxu0 %v1540
    %1745 = vmatpush.msra.mxu0 %v1537
    %1746 = vmatpush.msra.mxu0 %v1534
    %1747 = vmatpush.msra.mxu0 %v1531
    %1748 = vmatpush.msra.mxu0 %v1528
    %1749 = vmatmul.f32.gmra.mxu0 %v1692
    %v1750 = vpop.f32.mrf.mxu0
    %v1751 = vadd.f32 0.0, %v1750
    %1752 = vdwg.mxu0
    %v1753 = vld [vmem:[%s560] sm:$0xff]
    %v1754 = vld [vmem:[%s560 + $0x8] sm:$0xff]
    %v1755 = vld [vmem:[%s560 + $0x10] sm:$0xff]
    %v1756 = vadd.f32 %v1753, %v1711
    %v1757 = vadd.f32 %v1754, %v1731
    %v1758 = vxor.u32 %v1756, 2147483648
    %v1759 = vxor.u32 %v1757, 2147483648
    %v1760 = vmul.f32 %v1758, 1.442695
    %v1761 = vpow.pop %v1760
    %v1762 = vmul.f32 %v1759, 1.442695
    %v1763 = vpow.pop %v1762
    %v1764 = vadd.f32 %v1761, 1.0
    %v1765 = vadd.f32 %v1763, 1.0
    %v1766 = vrcp.pop %v1764
    %v1767 = vmul.f32 %v1764, %v1766
    %v1768 = vsub.f32 1.0, %v1767
    %v1769 = vmul.f32 %v1766, %v1768
    %v1770 = vadd.f32 %v1766, %v1769
    %vm1771 = vweird.f32 %v1764
    %vm1772 = vweird.f32 %v1766
    %vm1773 = vmor %vm1771, %vm1772
    %v1774 = vsel %vm1773, %v1766, %v1770
    %v1775 = vand.u32 2147483647, %v1764
    %vm1776 = vcmp.eq.f32.partialorder %v1775, 8.507059e+37
    %v1777 = vand.u32 %v1764, 2147483648
    %v1778 = vor.u32 1.1754944e-38, %v1777
    %v1779 = vsel %vm1776, %v1778, %v1774
    %v1780 = vmul.f32 1.0, %v1779
    %v1781 = vrcp.pop %v1765
    %v1782 = vmul.f32 %v1765, %v1781
    %v1783 = vsub.f32 1.0, %v1782
    %v1784 = vmul.f32 %v1781, %v1783
    %v1785 = vadd.f32 %v1781, %v1784
    %vm1786 = vweird.f32 %v1765
    %vm1787 = vweird.f32 %v1781
    %vm1788 = vmor %vm1786, %vm1787
    %v1789 = vsel %vm1788, %v1781, %v1785
    %v1790 = vand.u32 2147483647, %v1765
    %vm1791 = vcmp.eq.f32.partialorder %v1790, 8.507059e+37
    %v1792 = vand.u32 %v1765, 2147483648
    %v1793 = vor.u32 1.1754944e-38, %v1792
    %v1794 = vsel %vm1791, %v1793, %v1789
    %v1795 = vmul.f32 1.0, %v1794
    %v1796 = vadd.f32 %v1751, %v1681
    %v1797 = vmul.f32 %v1780, %v1796
    %v1798 = vadd.f32 %v1755, %v1797
    %v1799 = vtanh.pop %v1798
    %v1800 = vsub.f32 1.0, %v1795
    %v1801 = vmul.f32 %v1800, %v1799
    %v1802 = vmul.f32 %v1795, %v1692
    %v1803 = vadd.f32 %v1801, %v1802
    %1804 = vst [vmem:[#allocation4] sm:$0xff] %v1803
    %v1805 = vld [vmem:[#allocation4] sm:$0xff]
    %1806 = vmatpush.msra.mxu0 %v1571
    %1807 = vmatpush.msra.mxu0 %v1568
    %1808 = vmatpush.msra.mxu0 %v1565
    %1809 = vmatpush.msra.mxu0 %v1562
    %1810 = vmatpush.msra.mxu0 %v1559
    %1811 = vmatpush.msra.mxu0 %v1556
    %1812 = vmatpush.msra.mxu0 %v1553
    %1813 = vmatpush.msra.mxu0 %v1550
    %1814 = vmatpush.msra.mxu0 %v1547
    %1815 = vmatpush.msra.mxu0 %v1544
    %1816 = vmatpush.msra.mxu0 %v1541
    %1817 = vmatpush.msra.mxu0 %v1538
    %1818 = vmatpush.msra.mxu0 %v1535
    %1819 = vmatpush.msra.mxu0 %v1532
    %1820 = vmatpush.msra.mxu0 %v1529
    %1821 = vmatpush.msra.mxu0 %v1526
    %1822 = vmatmul.f32.gmra.mxu0 %v1805
    %v1823 = vpop.f32.mrf.mxu0
    %v1824 = vadd.f32 0.0, %v1823
    %1825 = vdwg.mxu0
    %1826 = vmatpush.msra.mxu0 %v1572
    %1827 = vmatpush.msra.mxu0 %v1569
    %1828 = vmatpush.msra.mxu0 %v1566
    %1829 = vmatpush.msra.mxu0 %v1563
    %1830 = vmatpush.msra.mxu0 %v1560
    %1831 = vmatpush.msra.mxu0 %v1557
    %1832 = vmatpush.msra.mxu0 %v1554
    %1833 = vmatpush.msra.mxu0 %v1551
    %1834 = vmatpush.msra.mxu0 %v1548
    %1835 = vmatpush.msra.mxu0 %v1545
    %1836 = vmatpush.msra.mxu0 %v1542
    %1837 = vmatpush.msra.mxu0 %v1539
    %1838 = vmatpush.msra.mxu0 %v1536
    %1839 = vmatpush.msra.mxu0 %v1533
    %1840 = vmatpush.msra.mxu0 %v1530
    %1841 = vmatpush.msra.mxu0 %v1527
    %1842 = vmatmul.f32.gmra.mxu0 %v1805
    %v1843 = vpop.f32.mrf.mxu0
    %v1844 = vadd.f32 0.0, %v1843
    %1845 = vdwg.mxu0
    %1846 = vmatpush.msra.mxu0 %v1573
    %1847 = vmatpush.msra.mxu0 %v1570
    %1848 = vmatpush.msra.mxu0 %v1567
    %1849 = vmatpush.msra.mxu0 %v1564
    %1850 = vmatpush.msra.mxu0 %v1561
    %1851 = vmatpush.msra.mxu0 %v1558
    %1852 = vmatpush.msra.mxu0 %v1555
    %1853 = vmatpush.msra.mxu0 %v1552
    %1854 = vmatpush.msra.mxu0 %v1549
    %1855 = vmatpush.msra.mxu0 %v1546
    %1856 = vmatpush.msra.mxu0 %v1543
    %1857 = vmatpush.msra.mxu0 %v1540
    %1858 = vmatpush.msra.mxu0 %v1537
    %1859 = vmatpush.msra.mxu0 %v1534
    %1860 = vmatpush.msra.mxu0 %v1531
    %1861 = vmatpush.msra.mxu0 %v1528
    %1862 = vmatmul.f32.gmra.mxu0 %v1805
    %v1863 = vpop.f32.mrf.mxu0
    %v1864 = vadd.f32 0.0, %v1863
    %1865 = vdwg.mxu0
    %v1866 = vld [vmem:[%s676] sm:$0xff]
    %v1867 = vld [vmem:[%s676 + $0x8] sm:$0xff]
    %v1868 = vld [vmem:[%s676 + $0x10] sm:$0xff]
    %v1869 = vadd.f32 %v1866, %v1824
    %v1870 = vadd.f32 %v1867, %v1844
    %v1871 = vxor.u32 %v1869, 2147483648
    %v1872 = vxor.u32 %v1870, 2147483648
    %v1873 = vmul.f32 %v1871, 1.442695
    %v1874 = vpow.pop %v1873
    %v1875 = vmul.f32 %v1872, 1.442695
    %v1876 = vpow.pop %v1875
    %v1877 = vadd.f32 %v1874, 1.0
    %v1878 = vadd.f32 %v1876, 1.0
    %v1879 = vrcp.pop %v1877
    %v1880 = vmul.f32 %v1877, %v1879
    %v1881 = vsub.f32 1.0, %v1880
    %v1882 = vmul.f32 %v1879, %v1881
    %v1883 = vadd.f32 %v1879, %v1882
    %vm1884 = vweird.f32 %v1877
    %vm1885 = vweird.f32 %v1879
    %vm1886 = vmor %vm1884, %vm1885
    %v1887 = vsel %vm1886, %v1879, %v1883
    %v1888 = vand.u32 2147483647, %v1877
    %vm1889 = vcmp.eq.f32.partialorder %v1888, 8.507059e+37
    %v1890 = vand.u32 %v1877, 2147483648
    %v1891 = vor.u32 1.1754944e-38, %v1890
    %v1892 = vsel %vm1889, %v1891, %v1887
    %v1893 = vmul.f32 1.0, %v1892
    %v1894 = vrcp.pop %v1878
    %v1895 = vmul.f32 %v1878, %v1894
    %v1896 = vsub.f32 1.0, %v1895
    %v1897 = vmul.f32 %v1894, %v1896
    %v1898 = vadd.f32 %v1894, %v1897
    %vm1899 = vweird.f32 %v1878
    %vm1900 = vweird.f32 %v1894
    %vm1901 = vmor %vm1899, %vm1900
    %v1902 = vsel %vm1901, %v1894, %v1898
    %v1903 = vand.u32 2147483647, %v1878
    %vm1904 = vcmp.eq.f32.partialorder %v1903, 8.507059e+37
    %v1905 = vand.u32 %v1878, 2147483648
    %v1906 = vor.u32 1.1754944e-38, %v1905
    %v1907 = vsel %vm1904, %v1906, %v1902
    %v1908 = vmul.f32 1.0, %v1907
    %v1909 = vadd.f32 %v1864, %v1681
    %v1910 = vmul.f32 %v1893, %v1909
    %v1911 = vadd.f32 %v1868, %v1910
    %v1912 = vtanh.pop %v1911
    %v1913 = vsub.f32 1.0, %v1908
    %v1914 = vmul.f32 %v1913, %v1912
    %v1915 = vmul.f32 %v1908, %v1805
    %v1916 = vadd.f32 %v1914, %v1915
    %1917 = vst [vmem:[#allocation4] sm:$0xff] %v1916
    %v1918 = vld [vmem:[#allocation4] sm:$0xff]
    %1919 = vmatpush.msra.mxu0 %v1571
    %1920 = vmatpush.msra.mxu0 %v1568
    %1921 = vmatpush.msra.mxu0 %v1565
    %1922 = vmatpush.msra.mxu0 %v1562
    %1923 = vmatpush.msra.mxu0 %v1559
    %1924 = vmatpush.msra.mxu0 %v1556
    %1925 = vmatpush.msra.mxu0 %v1553
    %1926 = vmatpush.msra.mxu0 %v1550
    %1927 = vmatpush.msra.mxu0 %v1547
    %1928 = vmatpush.msra.mxu0 %v1544
    %1929 = vmatpush.msra.mxu0 %v1541
    %1930 = vmatpush.msra.mxu0 %v1538
    %1931 = vmatpush.msra.mxu0 %v1535
    %1932 = vmatpush.msra.mxu0 %v1532
    %1933 = vmatpush.msra.mxu0 %v1529
    %1934 = vmatpush.msra.mxu0 %v1526
    %1935 = vmatmul.f32.gmra.mxu0 %v1918
    %v1936 = vpop.f32.mrf.mxu0
    %v1937 = vadd.f32 0.0, %v1936
    %1938 = vdwg.mxu0
    %1939 = vmatpush.msra.mxu0 %v1572
    %1940 = vmatpush.msra.mxu0 %v1569
    %1941 = vmatpush.msra.mxu0 %v1566
    %1942 = vmatpush.msra.mxu0 %v1563
    %1943 = vmatpush.msra.mxu0 %v1560
    %1944 = vmatpush.msra.mxu0 %v1557
    %1945 = vmatpush.msra.mxu0 %v1554
    %1946 = vmatpush.msra.mxu0 %v1551
    %1947 = vmatpush.msra.mxu0 %v1548
    %1948 = vmatpush.msra.mxu0 %v1545
    %1949 = vmatpush.msra.mxu0 %v1542
    %1950 = vmatpush.msra.mxu0 %v1539
    %1951 = vmatpush.msra.mxu0 %v1536
    %1952 = vmatpush.msra.mxu0 %v1533
    %1953 = vmatpush.msra.mxu0 %v1530
    %1954 = vmatpush.msra.mxu0 %v1527
    %1955 = vmatmul.f32.gmra.mxu0 %v1918
    %v1956 = vpop.f32.mrf.mxu0
    %v1957 = vadd.f32 0.0, %v1956
    %1958 = vdwg.mxu0
    %1959 = vmatpush.msra.mxu0 %v1573
    %1960 = vmatpush.msra.mxu0 %v1570
    %1961 = vmatpush.msra.mxu0 %v1567
    %1962 = vmatpush.msra.mxu0 %v1564
    %1963 = vmatpush.msra.mxu0 %v1561
    %1964 = vmatpush.msra.mxu0 %v1558
    %1965 = vmatpush.msra.mxu0 %v1555
    %1966 = vmatpush.msra.mxu0 %v1552
    %1967 = vmatpush.msra.mxu0 %v1549
    %1968 = vmatpush.msra.mxu0 %v1546
    %1969 = vmatpush.msra.mxu0 %v1543
    %1970 = vmatpush.msra.mxu0 %v1540
    %1971 = vmatpush.msra.mxu0 %v1537
    %1972 = vmatpush.msra.mxu0 %v1534
    %1973 = vmatpush.msra.mxu0 %v1531
    %1974 = vmatpush.msra.mxu0 %v1528
    %1975 = vmatmul.f32.gmra.mxu0 %v1918
    %v1976 = vpop.f32.mrf.mxu0
    %v1977 = vadd.f32 0.0, %v1976
    %1978 = vdwg.mxu0
    %v1979 = vld [vmem:[%s792] sm:$0xff]
    %v1980 = vld [vmem:[%s792 + $0x8] sm:$0xff]
    %v1981 = vld [vmem:[%s792 + $0x10] sm:$0xff]
    %v1982 = vadd.f32 %v1979, %v1937
    %v1983 = vadd.f32 %v1980, %v1957
    %v1984 = vxor.u32 %v1982, 2147483648
    %v1985 = vxor.u32 %v1983, 2147483648
    %v1986 = vmul.f32 %v1984, 1.442695
    %v1987 = vpow.pop %v1986
    %v1988 = vmul.f32 %v1985, 1.442695
    %v1989 = vpow.pop %v1988
    %v1990 = vadd.f32 %v1987, 1.0
    %v1991 = vadd.f32 %v1989, 1.0
    %v1992 = vrcp.pop %v1990
    %v1993 = vmul.f32 %v1990, %v1992
    %v1994 = vsub.f32 1.0, %v1993
    %v1995 = vmul.f32 %v1992, %v1994
    %v1996 = vadd.f32 %v1992, %v1995
    %vm1997 = vweird.f32 %v1990
    %vm1998 = vweird.f32 %v1992
    %vm1999 = vmor %vm1997, %vm1998
    %v2000 = vsel %vm1999, %v1992, %v1996
    %v2001 = vand.u32 2147483647, %v1990
    %vm2002 = vcmp.eq.f32.partialorder %v2001, 8.507059e+37
    %v2003 = vand.u32 %v1990, 2147483648
    %v2004 = vor.u32 1.1754944e-38, %v2003
    %v2005 = vsel %vm2002, %v2004, %v2000
    %v2006 = vmul.f32 1.0, %v2005
    %v2007 = vrcp.pop %v1991
    %v2008 = vmul.f32 %v1991, %v2007
    %v2009 = vsub.f32 1.0, %v2008
    %v2010 = vmul.f32 %v2007, %v2009
    %v2011 = vadd.f32 %v2007, %v2010
    %vm2012 = vweird.f32 %v1991
    %vm2013 = vweird.f32 %v2007
    %vm2014 = vmor %vm2012, %vm2013
    %v2015 = vsel %vm2014, %v2007, %v2011
    %v2016 = vand.u32 2147483647, %v1991
    %vm2017 = vcmp.eq.f32.partialorder %v2016, 8.507059e+37
    %v2018 = vand.u32 %v1991, 2147483648
    %v2019 = vor.u32 1.1754944e-38, %v2018
    %v2020 = vsel %vm2017, %v2019, %v2015
    %v2021 = vmul.f32 1.0, %v2020
    %v2022 = vadd.f32 %v1977, %v1681
    %v2023 = vmul.f32 %v2006, %v2022
    %v2024 = vadd.f32 %v1981, %v2023
    %v2025 = vtanh.pop %v2024
    %v2026 = vsub.f32 1.0, %v2021
    %v2027 = vmul.f32 %v2026, %v2025
    %v2028 = vmul.f32 %v2021, %v1918
    %v2029 = vadd.f32 %v2027, %v2028
    %2030 = vst [vmem:[#allocation4] sm:$0xff] %v2029
    %v2031 = vld [vmem:[#allocation4] sm:$0xff]
    %2032 = vmatpush.msra.mxu0 %v1571
    %2033 = vmatpush.msra.mxu0 %v1568
    %2034 = vmatpush.msra.mxu0 %v1565
    %2035 = vmatpush.msra.mxu0 %v1562
    %2036 = vmatpush.msra.mxu0 %v1559
    %2037 = vmatpush.msra.mxu0 %v1556
    %2038 = vmatpush.msra.mxu0 %v1553
    %2039 = vmatpush.msra.mxu0 %v1550
    %2040 = vmatpush.msra.mxu0 %v1547
    %2041 = vmatpush.msra.mxu0 %v1544
    %2042 = vmatpush.msra.mxu0 %v1541
    %2043 = vmatpush.msra.mxu0 %v1538
    %2044 = vmatpush.msra.mxu0 %v1535
    %2045 = vmatpush.msra.mxu0 %v1532
    %2046 = vmatpush.msra.mxu0 %v1529
    %2047 = vmatpush.msra.mxu0 %v1526
    %2048 = vmatmul.f32.gmra.mxu0 %v2031
    %v2049 = vpop.f32.mrf.mxu0
    %v2050 = vadd.f32 0.0, %v2049
    %2051 = vdwg.mxu0
    %2052 = vmatpush.msra.mxu0 %v1572
    %2053 = vmatpush.msra.mxu0 %v1569
    %2054 = vmatpush.msra.mxu0 %v1566
    %2055 = vmatpush.msra.mxu0 %v1563
    %2056 = vmatpush.msra.mxu0 %v1560
    %2057 = vmatpush.msra.mxu0 %v1557
    %2058 = vmatpush.msra.mxu0 %v1554
    %2059 = vmatpush.msra.mxu0 %v1551
    %2060 = vmatpush.msra.mxu0 %v1548
    %2061 = vmatpush.msra.mxu0 %v1545
    %2062 = vmatpush.msra.mxu0 %v1542
    %2063 = vmatpush.msra.mxu0 %v1539
    %2064 = vmatpush.msra.mxu0 %v1536
    %2065 = vmatpush.msra.mxu0 %v1533
    %2066 = vmatpush.msra.mxu0 %v1530
    %2067 = vmatpush.msra.mxu0 %v1527
    %2068 = vmatmul.f32.gmra.mxu0 %v2031
    %v2069 = vpop.f32.mrf.mxu0
    %v2070 = vadd.f32 0.0, %v2069
    %2071 = vdwg.mxu0
    %2072 = vmatpush.msra.mxu0 %v1573
    %2073 = vmatpush.msra.mxu0 %v1570
    %2074 = vmatpush.msra.mxu0 %v1567
    %2075 = vmatpush.msra.mxu0 %v1564
    %2076 = vmatpush.msra.mxu0 %v1561
    %2077 = vmatpush.msra.mxu0 %v1558
    %2078 = vmatpush.msra.mxu0 %v1555
    %2079 = vmatpush.msra.mxu0 %v1552
    %2080 = vmatpush.msra.mxu0 %v1549
    %2081 = vmatpush.msra.mxu0 %v1546
    %2082 = vmatpush.msra.mxu0 %v1543
    %2083 = vmatpush.msra.mxu0 %v1540
    %2084 = vmatpush.msra.mxu0 %v1537
    %2085 = vmatpush.msra.mxu0 %v1534
    %2086 = vmatpush.msra.mxu0 %v1531
    %2087 = vmatpush.msra.mxu0 %v1528
    %2088 = vmatmul.f32.gmra.mxu0 %v2031
    %v2089 = vpop.f32.mrf.mxu0
    %v2090 = vadd.f32 0.0, %v2089
    %2091 = vdwg.mxu0
    %v2092 = vld [vmem:[%s908] sm:$0xff]
    %v2093 = vld [vmem:[%s908 + $0x8] sm:$0xff]
    %v2094 = vld [vmem:[%s908 + $0x10] sm:$0xff]
    %v2095 = vadd.f32 %v2092, %v2050
    %v2096 = vadd.f32 %v2093, %v2070
    %v2097 = vxor.u32 %v2095, 2147483648
    %v2098 = vxor.u32 %v2096, 2147483648
    %v2099 = vmul.f32 %v2097, 1.442695
    %v2100 = vpow.pop %v2099
    %v2101 = vmul.f32 %v2098, 1.442695
    %v2102 = vpow.pop %v2101
    %v2103 = vadd.f32 %v2100, 1.0
    %v2104 = vadd.f32 %v2102, 1.0
    %v2105 = vrcp.pop %v2103
    %v2106 = vmul.f32 %v2103, %v2105
    %v2107 = vsub.f32 1.0, %v2106
    %v2108 = vmul.f32 %v2105, %v2107
    %v2109 = vadd.f32 %v2105, %v2108
    %vm2110 = vweird.f32 %v2103
    %vm2111 = vweird.f32 %v2105
    %vm2112 = vmor %vm2110, %vm2111
    %v2113 = vsel %vm2112, %v2105, %v2109
    %v2114 = vand.u32 2147483647, %v2103
    %vm2115 = vcmp.eq.f32.partialorder %v2114, 8.507059e+37
    %v2116 = vand.u32 %v2103, 2147483648
    %v2117 = vor.u32 1.1754944e-38, %v2116
    %v2118 = vsel %vm2115, %v2117, %v2113
    %v2119 = vmul.f32 1.0, %v2118
    %v2120 = vrcp.pop %v2104
    %v2121 = vmul.f32 %v2104, %v2120
    %v2122 = vsub.f32 1.0, %v2121
    %v2123 = vmul.f32 %v2120, %v2122
    %v2124 = vadd.f32 %v2120, %v2123
    %vm2125 = vweird.f32 %v2104
    %vm2126 = vweird.f32 %v2120
    %vm2127 = vmor %vm2125, %vm2126
    %v2128 = vsel %vm2127, %v2120, %v2124
    %v2129 = vand.u32 2147483647, %v2104
    %vm2130 = vcmp.eq.f32.partialorder %v2129, 8.507059e+37
    %v2131 = vand.u32 %v2104, 2147483648
    %v2132 = vor.u32 1.1754944e-38, %v2131
    %v2133 = vsel %vm2130, %v2132, %v2128
    %v2134 = vmul.f32 1.0, %v2133
    %v2135 = vadd.f32 %v2090, %v1681
    %v2136 = vmul.f32 %v2119, %v2135
    %v2137 = vadd.f32 %v2094, %v2136
    %v2138 = vtanh.pop %v2137
    %v2139 = vsub.f32 1.0, %v2134
    %v2140 = vmul.f32 %v2139, %v2138
    %v2141 = vmul.f32 %v2134, %v2031
    %v2142 = vadd.f32 %v2140, %v2141
    %2143 = vst [vmem:[#allocation4] sm:$0xff] %v2142
    %v2144 = vld [vmem:[#allocation4] sm:$0xff]
    %2145 = vmatpush.msra.mxu0 %v1571
    %2146 = vmatpush.msra.mxu0 %v1568
    %2147 = vmatpush.msra.mxu0 %v1565
    %2148 = vmatpush.msra.mxu0 %v1562
    %2149 = vmatpush.msra.mxu0 %v1559
    %2150 = vmatpush.msra.mxu0 %v1556
    %2151 = vmatpush.msra.mxu0 %v1553
    %2152 = vmatpush.msra.mxu0 %v1550
    %2153 = vmatpush.msra.mxu0 %v1547
    %2154 = vmatpush.msra.mxu0 %v1544
    %2155 = vmatpush.msra.mxu0 %v1541
    %2156 = vmatpush.msra.mxu0 %v1538
    %2157 = vmatpush.msra.mxu0 %v1535
    %2158 = vmatpush.msra.mxu0 %v1532
    %2159 = vmatpush.msra.mxu0 %v1529
    %2160 = vmatpush.msra.mxu0 %v1526
    %2161 = vmatmul.f32.gmra.mxu0 %v2144
    %v2162 = vpop.f32.mrf.mxu0
    %v2163 = vadd.f32 0.0, %v2162
    %2164 = vdwg.mxu0
    %2165 = vmatpush.msra.mxu0 %v1572
    %2166 = vmatpush.msra.mxu0 %v1569
    %2167 = vmatpush.msra.mxu0 %v1566
    %2168 = vmatpush.msra.mxu0 %v1563
    %2169 = vmatpush.msra.mxu0 %v1560
    %2170 = vmatpush.msra.mxu0 %v1557
    %2171 = vmatpush.msra.mxu0 %v1554
    %2172 = vmatpush.msra.mxu0 %v1551
    %2173 = vmatpush.msra.mxu0 %v1548
    %2174 = vmatpush.msra.mxu0 %v1545
    %2175 = vmatpush.msra.mxu0 %v1542
    %2176 = vmatpush.msra.mxu0 %v1539
    %2177 = vmatpush.msra.mxu0 %v1536
    %2178 = vmatpush.msra.mxu0 %v1533
    %2179 = vmatpush.msra.mxu0 %v1530
    %2180 = vmatpush.msra.mxu0 %v1527
    %2181 = vmatmul.f32.gmra.mxu0 %v2144
    %v2182 = vpop.f32.mrf.mxu0
    %v2183 = vadd.f32 0.0, %v2182
    %2184 = vdwg.mxu0
    %2185 = vmatpush.msra.mxu0 %v1573
    %2186 = vmatpush.msra.mxu0 %v1570
    %2187 = vmatpush.msra.mxu0 %v1567
    %2188 = vmatpush.msra.mxu0 %v1564
    %2189 = vmatpush.msra.mxu0 %v1561
    %2190 = vmatpush.msra.mxu0 %v1558
    %2191 = vmatpush.msra.mxu0 %v1555
    %2192 = vmatpush.msra.mxu0 %v1552
    %2193 = vmatpush.msra.mxu0 %v1549
    %2194 = vmatpush.msra.mxu0 %v1546
    %2195 = vmatpush.msra.mxu0 %v1543
    %2196 = vmatpush.msra.mxu0 %v1540
    %2197 = vmatpush.msra.mxu0 %v1537
    %2198 = vmatpush.msra.mxu0 %v1534
    %2199 = vmatpush.msra.mxu0 %v1531
    %2200 = vmatpush.msra.mxu0 %v1528
    %2201 = vmatmul.f32.gmra.mxu0 %v2144
    %v2202 = vpop.f32.mrf.mxu0
    %v2203 = vadd.f32 0.0, %v2202
    %2204 = vdwg.mxu0
    %v2205 = vld [vmem:[%s1024] sm:$0xff]
    %v2206 = vld [vmem:[%s1024 + $0x8] sm:$0xff]
    %v2207 = vld [vmem:[%s1024 + $0x10] sm:$0xff]
    %v2208 = vadd.f32 %v2205, %v2163
    %v2209 = vadd.f32 %v2206, %v2183
    %v2210 = vxor.u32 %v2208, 2147483648
    %v2211 = vxor.u32 %v2209, 2147483648
    %v2212 = vmul.f32 %v2210, 1.442695
    %v2213 = vpow.pop %v2212
    %v2214 = vmul.f32 %v2211, 1.442695
    %v2215 = vpow.pop %v2214
    %v2216 = vadd.f32 %v2213, 1.0
    %v2217 = vadd.f32 %v2215, 1.0
    %v2218 = vrcp.pop %v2216
    %v2219 = vmul.f32 %v2216, %v2218
    %v2220 = vsub.f32 1.0, %v2219
    %v2221 = vmul.f32 %v2218, %v2220
    %v2222 = vadd.f32 %v2218, %v2221
    %vm2223 = vweird.f32 %v2216
    %vm2224 = vweird.f32 %v2218
    %vm2225 = vmor %vm2223, %vm2224
    %v2226 = vsel %vm2225, %v2218, %v2222
    %v2227 = vand.u32 2147483647, %v2216
    %vm2228 = vcmp.eq.f32.partialorder %v2227, 8.507059e+37
    %v2229 = vand.u32 %v2216, 2147483648
    %v2230 = vor.u32 1.1754944e-38, %v2229
    %v2231 = vsel %vm2228, %v2230, %v2226
    %v2232 = vmul.f32 1.0, %v2231
    %v2233 = vrcp.pop %v2217
    %v2234 = vmul.f32 %v2217, %v2233
    %v2235 = vsub.f32 1.0, %v2234
    %v2236 = vmul.f32 %v2233, %v2235
    %v2237 = vadd.f32 %v2233, %v2236
    %vm2238 = vweird.f32 %v2217
    %vm2239 = vweird.f32 %v2233
    %vm2240 = vmor %vm2238, %vm2239
    %v2241 = vsel %vm2240, %v2233, %v2237
    %v2242 = vand.u32 2147483647, %v2217
    %vm2243 = vcmp.eq.f32.partialorder %v2242, 8.507059e+37
    %v2244 = vand.u32 %v2217, 2147483648
    %v2245 = vor.u32 1.1754944e-38, %v2244
    %v2246 = vsel %vm2243, %v2245, %v2241
    %v2247 = vmul.f32 1.0, %v2246
    %v2248 = vadd.f32 %v2203, %v1681
    %v2249 = vmul.f32 %v2232, %v2248
    %v2250 = vadd.f32 %v2207, %v2249
    %v2251 = vtanh.pop %v2250
    %v2252 = vsub.f32 1.0, %v2247
    %v2253 = vmul.f32 %v2252, %v2251
    %v2254 = vmul.f32 %v2247, %v2144
    %v2255 = vadd.f32 %v2253, %v2254
    %2256 = vst [vmem:[#allocation4] sm:$0xff] %v2255
    %v2257 = vld [vmem:[#allocation4] sm:$0xff]
    %2258 = vmatpush.msra.mxu0 %v1571
    %2259 = vmatpush.msra.mxu0 %v1568
    %2260 = vmatpush.msra.mxu0 %v1565
    %2261 = vmatpush.msra.mxu0 %v1562
    %2262 = vmatpush.msra.mxu0 %v1559
    %2263 = vmatpush.msra.mxu0 %v1556
    %2264 = vmatpush.msra.mxu0 %v1553
    %2265 = vmatpush.msra.mxu0 %v1550
    %2266 = vmatpush.msra.mxu0 %v1547
    %2267 = vmatpush.msra.mxu0 %v1544
    %2268 = vmatpush.msra.mxu0 %v1541
    %2269 = vmatpush.msra.mxu0 %v1538
    %2270 = vmatpush.msra.mxu0 %v1535
    %2271 = vmatpush.msra.mxu0 %v1532
    %2272 = vmatpush.msra.mxu0 %v1529
    %2273 = vmatpush.msra.mxu0 %v1526
    %2274 = vmatmul.f32.gmra.mxu0 %v2257
    %v2275 = vpop.f32.mrf.mxu0
    %v2276 = vadd.f32 0.0, %v2275
    %2277 = vdwg.mxu0
    %2278 = vmatpush.msra.mxu0 %v1572
    %2279 = vmatpush.msra.mxu0 %v1569
    %2280 = vmatpush.msra.mxu0 %v1566
    %2281 = vmatpush.msra.mxu0 %v1563
    %2282 = vmatpush.msra.mxu0 %v1560
    %2283 = vmatpush.msra.mxu0 %v1557
    %2284 = vmatpush.msra.mxu0 %v1554
    %2285 = vmatpush.msra.mxu0 %v1551
    %2286 = vmatpush.msra.mxu0 %v1548
    %2287 = vmatpush.msra.mxu0 %v1545
    %2288 = vmatpush.msra.mxu0 %v1542
    %2289 = vmatpush.msra.mxu0 %v1539
    %2290 = vmatpush.msra.mxu0 %v1536
    %2291 = vmatpush.msra.mxu0 %v1533
    %2292 = vmatpush.msra.mxu0 %v1530
    %2293 = vmatpush.msra.mxu0 %v1527
    %2294 = vmatmul.f32.gmra.mxu0 %v2257
    %v2295 = vpop.f32.mrf.mxu0
    %v2296 = vadd.f32 0.0, %v2295
    %2297 = vdwg.mxu0
    %2298 = vmatpush.msra.mxu0 %v1573
    %2299 = vmatpush.msra.mxu0 %v1570
    %2300 = vmatpush.msra.mxu0 %v1567
    %2301 = vmatpush.msra.mxu0 %v1564
    %2302 = vmatpush.msra.mxu0 %v1561
    %2303 = vmatpush.msra.mxu0 %v1558
    %2304 = vmatpush.msra.mxu0 %v1555
    %2305 = vmatpush.msra.mxu0 %v1552
    %2306 = vmatpush.msra.mxu0 %v1549
    %2307 = vmatpush.msra.mxu0 %v1546
    %2308 = vmatpush.msra.mxu0 %v1543
    %2309 = vmatpush.msra.mxu0 %v1540
    %2310 = vmatpush.msra.mxu0 %v1537
    %2311 = vmatpush.msra.mxu0 %v1534
    %2312 = vmatpush.msra.mxu0 %v1531
    %2313 = vmatpush.msra.mxu0 %v1528
    %2314 = vmatmul.f32.gmra.mxu0 %v2257
    %v2315 = vpop.f32.mrf.mxu0
    %v2316 = vadd.f32 0.0, %v2315
    %2317 = vdwg.mxu0
    %v2318 = vld [vmem:[%s1140] sm:$0xff]
    %v2319 = vld [vmem:[%s1140 + $0x8] sm:$0xff]
    %v2320 = vld [vmem:[%s1140 + $0x10] sm:$0xff]
    %v2321 = vadd.f32 %v2318, %v2276
    %v2322 = vadd.f32 %v2319, %v2296
    %v2323 = vxor.u32 %v2321, 2147483648
    %v2324 = vxor.u32 %v2322, 2147483648
    %v2325 = vmul.f32 %v2323, 1.442695
    %v2326 = vpow.pop %v2325
    %v2327 = vmul.f32 %v2324, 1.442695
    %v2328 = vpow.pop %v2327
    %v2329 = vadd.f32 %v2326, 1.0
    %v2330 = vadd.f32 %v2328, 1.0
    %v2331 = vrcp.pop %v2329
    %v2332 = vmul.f32 %v2329, %v2331
    %v2333 = vsub.f32 1.0, %v2332
    %v2334 = vmul.f32 %v2331, %v2333
    %v2335 = vadd.f32 %v2331, %v2334
    %vm2336 = vweird.f32 %v2329
    %vm2337 = vweird.f32 %v2331
    %vm2338 = vmor %vm2336, %vm2337
    %v2339 = vsel %vm2338, %v2331, %v2335
    %v2340 = vand.u32 2147483647, %v2329
    %vm2341 = vcmp.eq.f32.partialorder %v2340, 8.507059e+37
    %v2342 = vand.u32 %v2329, 2147483648
    %v2343 = vor.u32 1.1754944e-38, %v2342
    %v2344 = vsel %vm2341, %v2343, %v2339
    %v2345 = vmul.f32 1.0, %v2344
    %v2346 = vrcp.pop %v2330
    %v2347 = vmul.f32 %v2330, %v2346
    %v2348 = vsub.f32 1.0, %v2347
    %v2349 = vmul.f32 %v2346, %v2348
    %v2350 = vadd.f32 %v2346, %v2349
    %vm2351 = vweird.f32 %v2330
    %vm2352 = vweird.f32 %v2346
    %vm2353 = vmor %vm2351, %vm2352
    %v2354 = vsel %vm2353, %v2346, %v2350
    %v2355 = vand.u32 2147483647, %v2330
    %vm2356 = vcmp.eq.f32.partialorder %v2355, 8.507059e+37
    %v2357 = vand.u32 %v2330, 2147483648
    %v2358 = vor.u32 1.1754944e-38, %v2357
    %v2359 = vsel %vm2356, %v2358, %v2354
    %v2360 = vmul.f32 1.0, %v2359
    %v2361 = vadd.f32 %v2316, %v1681
    %v2362 = vmul.f32 %v2345, %v2361
    %v2363 = vadd.f32 %v2320, %v2362
    %v2364 = vtanh.pop %v2363
    %v2365 = vsub.f32 1.0, %v2360
    %v2366 = vmul.f32 %v2365, %v2364
    %v2367 = vmul.f32 %v2360, %v2257
    %v2368 = vadd.f32 %v2366, %v2367
    %2369 = vst [vmem:[#allocation4] sm:$0xff] %v2368
    %v2370 = vld [vmem:[#allocation4] sm:$0xff]
    %2371 = vmatpush.msra.mxu0 %v1571
    %2372 = vmatpush.msra.mxu0 %v1568
    %2373 = vmatpush.msra.mxu0 %v1565
    %2374 = vmatpush.msra.mxu0 %v1562
    %2375 = vmatpush.msra.mxu0 %v1559
    %2376 = vmatpush.msra.mxu0 %v1556
    %2377 = vmatpush.msra.mxu0 %v1553
    %2378 = vmatpush.msra.mxu0 %v1550
    %2379 = vmatpush.msra.mxu0 %v1547
    %2380 = vmatpush.msra.mxu0 %v1544
    %2381 = vmatpush.msra.mxu0 %v1541
    %2382 = vmatpush.msra.mxu0 %v1538
    %2383 = vmatpush.msra.mxu0 %v1535
    %2384 = vmatpush.msra.mxu0 %v1532
    %2385 = vmatpush.msra.mxu0 %v1529
    %2386 = vmatpush.msra.mxu0 %v1526
    %2387 = vmatmul.f32.gmra.mxu0 %v2370
    %v2388 = vpop.f32.mrf.mxu0
    %v2389 = vadd.f32 0.0, %v2388
    %2390 = vdwg.mxu0
    %2391 = vmatpush.msra.mxu0 %v1572
    %2392 = vmatpush.msra.mxu0 %v1569
    %2393 = vmatpush.msra.mxu0 %v1566
    %2394 = vmatpush.msra.mxu0 %v1563
    %2395 = vmatpush.msra.mxu0 %v1560
    %2396 = vmatpush.msra.mxu0 %v1557
    %2397 = vmatpush.msra.mxu0 %v1554
    %2398 = vmatpush.msra.mxu0 %v1551
    %2399 = vmatpush.msra.mxu0 %v1548
    %2400 = vmatpush.msra.mxu0 %v1545
    %2401 = vmatpush.msra.mxu0 %v1542
    %2402 = vmatpush.msra.mxu0 %v1539
    %2403 = vmatpush.msra.mxu0 %v1536
    %2404 = vmatpush.msra.mxu0 %v1533
    %2405 = vmatpush.msra.mxu0 %v1530
    %2406 = vmatpush.msra.mxu0 %v1527
    %2407 = vmatmul.f32.gmra.mxu0 %v2370
    %v2408 = vpop.f32.mrf.mxu0
    %v2409 = vadd.f32 0.0, %v2408
    %2410 = vdwg.mxu0
    %2411 = vmatpush.msra.mxu0 %v1573
    %2412 = vmatpush.msra.mxu0 %v1570
    %2413 = vmatpush.msra.mxu0 %v1567
    %2414 = vmatpush.msra.mxu0 %v1564
    %2415 = vmatpush.msra.mxu0 %v1561
    %2416 = vmatpush.msra.mxu0 %v1558
    %2417 = vmatpush.msra.mxu0 %v1555
    %2418 = vmatpush.msra.mxu0 %v1552
    %2419 = vmatpush.msra.mxu0 %v1549
    %2420 = vmatpush.msra.mxu0 %v1546
    %2421 = vmatpush.msra.mxu0 %v1543
    %2422 = vmatpush.msra.mxu0 %v1540
    %2423 = vmatpush.msra.mxu0 %v1537
    %2424 = vmatpush.msra.mxu0 %v1534
    %2425 = vmatpush.msra.mxu0 %v1531
    %2426 = vmatpush.msra.mxu0 %v1528
    %2427 = vmatmul.f32.gmra.mxu0 %v2370
    %v2428 = vpop.f32.mrf.mxu0
    %v2429 = vadd.f32 0.0, %v2428
    %2430 = vdwg.mxu0
    %v2431 = vld [vmem:[%s1256] sm:$0xff]
    %v2432 = vld [vmem:[%s1256 + $0x8] sm:$0xff]
    %v2433 = vld [vmem:[%s1256 + $0x10] sm:$0xff]
    %v2434 = vadd.f32 %v2431, %v2389
    %v2435 = vadd.f32 %v2432, %v2409
    %v2436 = vxor.u32 %v2434, 2147483648
    %v2437 = vxor.u32 %v2435, 2147483648
    %v2438 = vmul.f32 %v2436, 1.442695
    %v2439 = vpow.pop %v2438
    %v2440 = vmul.f32 %v2437, 1.442695
    %v2441 = vpow.pop %v2440
    %v2442 = vadd.f32 %v2439, 1.0
    %v2443 = vadd.f32 %v2441, 1.0
    %v2444 = vrcp.pop %v2442
    %v2445 = vmul.f32 %v2442, %v2444
    %v2446 = vsub.f32 1.0, %v2445
    %v2447 = vmul.f32 %v2444, %v2446
    %v2448 = vadd.f32 %v2444, %v2447
    %vm2449 = vweird.f32 %v2442
    %vm2450 = vweird.f32 %v2444
    %vm2451 = vmor %vm2449, %vm2450
    %v2452 = vsel %vm2451, %v2444, %v2448
    %v2453 = vand.u32 2147483647, %v2442
    %vm2454 = vcmp.eq.f32.partialorder %v2453, 8.507059e+37
    %v2455 = vand.u32 %v2442, 2147483648
    %v2456 = vor.u32 1.1754944e-38, %v2455
    %v2457 = vsel %vm2454, %v2456, %v2452
    %v2458 = vmul.f32 1.0, %v2457
    %v2459 = vrcp.pop %v2443
    %v2460 = vmul.f32 %v2443, %v2459
    %v2461 = vsub.f32 1.0, %v2460
    %v2462 = vmul.f32 %v2459, %v2461
    %v2463 = vadd.f32 %v2459, %v2462
    %vm2464 = vweird.f32 %v2443
    %vm2465 = vweird.f32 %v2459
    %vm2466 = vmor %vm2464, %vm2465
    %v2467 = vsel %vm2466, %v2459, %v2463
    %v2468 = vand.u32 2147483647, %v2443
    %vm2469 = vcmp.eq.f32.partialorder %v2468, 8.507059e+37
    %v2470 = vand.u32 %v2443, 2147483648
    %v2471 = vor.u32 1.1754944e-38, %v2470
    %v2472 = vsel %vm2469, %v2471, %v2467
    %v2473 = vmul.f32 1.0, %v2472
    %v2474 = vadd.f32 %v2429, %v1681
    %v2475 = vmul.f32 %v2458, %v2474
    %v2476 = vadd.f32 %v2433, %v2475
    %v2477 = vtanh.pop %v2476
    %v2478 = vsub.f32 1.0, %v2473
    %v2479 = vmul.f32 %v2478, %v2477
    %v2480 = vmul.f32 %v2473, %v2370
    %v2481 = vadd.f32 %v2479, %v2480
    %2482 = vst [vmem:[#allocation4] sm:$0xff] %v2481
    %v2483 = vld [vmem:[#allocation4] sm:$0xff]
    %v2484 = vld [vmem:[#allocation13] sm:$0xff]
    %v2485 = vld [vmem:[#allocation13 + $0x8] sm:$0xff]
    %v2486 = vld [vmem:[#allocation13 + $0x10] sm:$0xff]
    %v2487 = vld [vmem:[#allocation13 + $0x18] sm:$0xff]
    %v2488 = vld [vmem:[#allocation13 + $0x20] sm:$0xff]
    %v2489 = vld [vmem:[#allocation13 + $0x28] sm:$0xff]
    %v2490 = vld [vmem:[#allocation13 + $0x30] sm:$0xff]
    %v2491 = vld [vmem:[#allocation13 + $0x38] sm:$0xff]
    %v2492 = vld [vmem:[#allocation13 + $0x40] sm:$0xff]
    %v2493 = vld [vmem:[#allocation13 + $0x48] sm:$0xff]
    %v2494 = vld [vmem:[#allocation13 + $0x50] sm:$0xff]
    %v2495 = vld [vmem:[#allocation13 + $0x58] sm:$0xff]
    %v2496 = vld [vmem:[#allocation13 + $0x60] sm:$0xff]
    %v2497 = vld [vmem:[#allocation13 + $0x68] sm:$0xff]
    %v2498 = vld [vmem:[#allocation13 + $0x70] sm:$0xff]
    %v2499 = vld [vmem:[#allocation13 + $0x78] sm:$0xff]
    %v2500 = vld [vmem:[%s6] sm:$0x1]
    %v2502 = vperm.slane %v2500, 0
    %2504 = vmatpush.msra.mxu0 %v2499
    %2505 = vmatpush.msra.mxu0 %v2498
    %2506 = vmatpush.msra.mxu0 %v2497
    %2507 = vmatpush.msra.mxu0 %v2496
    %2508 = vmatpush.msra.mxu0 %v2495
    %2509 = vmatpush.msra.mxu0 %v2494
    %2510 = vmatpush.msra.mxu0 %v2493
    %2511 = vmatpush.msra.mxu0 %v2492
    %2512 = vmatpush.msra.mxu0 %v2491
    %2513 = vmatpush.msra.mxu0 %v2490
    %2514 = vmatpush.msra.mxu0 %v2489
    %2515 = vmatpush.msra.mxu0 %v2488
    %2516 = vmatpush.msra.mxu0 %v2487
    %2517 = vmatpush.msra.mxu0 %v2486
    %2518 = vmatpush.msra.mxu0 %v2485
    %2519 = vmatpush.msra.mxu0 %v2484
    %2520 = vmatmul.f32.gmra.mxu0 %v2483
    %v2521 = vpop.f32.mrf.mxu0
    %v2522 = vadd.f32 %v2502, %v2521
    %2523 = vdwg.mxu0
    %2524 = vst [vmem:[#allocation14] sm:$0xff] %v2522
    // Predicated region
    $region50: #{tpu_custom_call.1} parent=1 // pred_check
      _
    $region51: #{tpu_custom_call.1} parent=1 // pred_check_branch
      %2526 = sbr.rel (0) target = $region53
    $region52: #{tpu_custom_call.1} parent=1 // pred_region
      %2528 = vsyncadd [#allocation7], 0
      %s2530 = sshll.u32 [#allocation14], 4
      %s2531 = int_to_ptr.vmem [resolvable:$true] %s2530
      %s2532 = sshll.u32 %s7, 4
      %s2533 = int_to_ptr.hbm [resolvable:$true] %s2532
      %2535 = dma.vmem_to_hbm [thread:$0]  %s2531, 128, %s2533, [#allocation7]
    $region53: #{tpu_custom_call.1} parent=1 // pred_fallthru
      _
    // Predicated region
    $region54: #{tpu_custom_call.1} parent=1 // pred_check
      _
    $region55: #{tpu_custom_call.1} parent=1 // pred_check_branch
      %2537 = sbr.rel (0) target = $region57
    $region56: #{tpu_custom_call.1} parent=1 // pred_region
      %2539 = dma.done [#allocation7], 128
    $region57: #{tpu_custom_call.1} parent=1 // pred_fallthru
      _
    %2540 = vsyncpa [#allocation6], 1
    %2541 = vsyncpa [#allocation9], 1
    %2542 = vsyncpa [#allocation12], 1
    %2543 = vsyncpa [#allocation7], 1

</llo_original>
